<compile_context>
chip_gen: v7x
topology: tpu7x:2x2x1
jax: 0.10.0
libtpu: 0.0.40
codegen_flags: <defaults>
</compile_context>

<pallas_src>
import jax
import jax.numpy as jnp
from jax.experimental import pallas as pl
from jax.experimental.pallas import tpu as pltpu

IN_FC = 2        # input features (pos_enc=False)
HID = 32         # hidden_size_first/mid/last
OUT = 3          # fc_last output features
TILE_N_MAX = 16384   # lane-tile cap: keeps live VMEM under v5e's 16 MiB scoped default

# Column layout of the f32 "smalls" slab (shape (HID, HID)):
#   cols 0:2 -> W0^T (fc_first weight, (32, 2))
#   cols 2:4 -> W2x^T (x-part of skip-layer weight, (32, 2))
#   col 4 -> b0, col 5 -> b1, col 6 -> b2, col 7 -> b3   (each (32,))
#   col 8 -> b_last padded (rows 0:3 valid)
_C_W0, _C_W2X, _C_B0, _C_B1, _C_B2, _C_B3, _C_BL = 0, 2, 4, 5, 6, 7, 8


def _round_up(a, b):
    return (a + b - 1) // b * b


def _choose_tile(N, tile_n):
    """N-aware lane-tile choice.

    - Large default tile (8192) amortizes the ~0.35 us per-grid-step overhead.
    - Hard cap of 16384 lanes keeps live VMEM (~0.5 KB/lane + double buffers)
      under v5e's 16 MiB default scoped-VMEM limit; never binding on v6e/v7x.
    - At small step counts, force an even number of steps so v7x's two
      TensorCores (grid axis is "parallel") get balanced work; the extra step
      is ~free on single-core v5e/v6e.
    - Tiles are rebalanced to minimize padded lanes.
    """
    tile = _round_up(min(max(tile_n, 128), TILE_N_MAX), 128)
    steps = pl.cdiv(N, tile)
    if 1 < steps <= 8 and steps % 2 == 1:
        steps += 1
    tile = min(tile, _round_up(pl.cdiv(N, steps), 128))
    n_pad = _round_up(N, tile)
    return tile, n_pad


def mlp_kernel(vpu_ref, mxu_ref, wl_ref, x_ref, out_ref):
    xt = x_ref[...]                          # (2, tile)  batch on lanes
    tile = xt.shape[1]
    smalls = vpu_ref[...]                    # (32, 32) f32 small params

    w0c0 = smalls[:, _C_W0:_C_W0 + 1]        # (32, 1) lane-broadcast columns
    w0c1 = smalls[:, _C_W0 + 1:_C_W0 + 2]
    w2c0 = smalls[:, _C_W2X:_C_W2X + 1]
    w2c1 = smalls[:, _C_W2X + 1:_C_W2X + 2]
    b0 = smalls[:, _C_B0:_C_B0 + 1]
    b1 = smalls[:, _C_B1:_C_B1 + 1]
    b2 = smalls[:, _C_B2:_C_B2 + 1]
    b3 = smalls[:, _C_B3:_C_B3 + 1]
    bl = smalls[0:OUT, _C_BL:_C_BL + 1]      # (3, 1)

    # Broadcast the two input rows to (32, tile) ONCE and reuse for both
    # x-projections (JAX does not CSE broadcast_in_dim).  xproj2's VPU work can
    # then hide under the layer-1 MXU dot.
    x0 = jnp.broadcast_to(xt[0:1, :], (HID, tile))
    x1 = jnp.broadcast_to(xt[1:2, :], (HID, tile))
    xproj0 = w0c0 * x0 + w0c1 * x1 + b0      # fc_first pre-act (K=2: VPU FMAs)
    xproj2 = w2c0 * x0 + w2c1 * x1 + b2      # x-part of skip layer, used later

    # fc_first + relu
    h = jnp.maximum(xproj0, 0.0)

    # fc_list[0] + relu : bf16 MXU operands, f32 accumulation, f32 bias/ReLU.
    h = jnp.maximum(
        jnp.dot(mxu_ref[0], h.astype(jnp.bfloat16),
                preferred_element_type=jnp.float32) + b1, 0.0)

    # fc_list[1] with skip: W2 @ cat([x, h]) = W2x @ x + W2h @ h
    h = jnp.maximum(
        jnp.dot(mxu_ref[1], h.astype(jnp.bfloat16),
                preferred_element_type=jnp.float32) + xproj2, 0.0)

    # fc_list[2] + relu
    h = jnp.maximum(
        jnp.dot(mxu_ref[2], h.astype(jnp.bfloat16),
                preferred_element_type=jnp.float32) + b3, 0.0)

    # fc_last (no activation): weight packed into 8 rows -> (8, tile) result.
    out8 = jnp.dot(wl_ref[...], h.astype(jnp.bfloat16),
                   preferred_element_type=jnp.float32)
    out_ref[...] = (out8[0:OUT, :] + bl).astype(out_ref.dtype)


def pack_params(params):
    """Pack weights/biases into (f32 smalls slab, bf16 MXU slab, bf16 fc_last).

    Weights come in as (in_features, out_features); biases as (out_features,).
    """
    (w0, b0), (w1, b1), (w2, b2), (w3, b3), (wl, bl) = params
    w2x, w2h = w2[:IN_FC], w2[IN_FC:]        # split of cat([x, h]) weight

    vpu = jnp.zeros((HID, HID), jnp.float32)
    vpu = vpu.at[:, _C_W0:_C_W0 + IN_FC].set(w0.T)
    vpu = vpu.at[:, _C_W2X:_C_W2X + IN_FC].set(w2x.T)
    vpu = vpu.at[:, _C_B0].set(b0)
    vpu = vpu.at[:, _C_B1].set(b1)
    vpu = vpu.at[:, _C_B2].set(b2)
    vpu = vpu.at[:, _C_B3].set(b3)
    vpu = vpu.at[:OUT, _C_BL].set(bl)

    mxu = jnp.zeros((3, HID, HID), jnp.bfloat16)
    mxu = mxu.at[0].set(w1.T.astype(jnp.bfloat16))
    mxu = mxu.at[1].set(w2h.T.astype(jnp.bfloat16))
    mxu = mxu.at[2].set(w3.T.astype(jnp.bfloat16))

    wl8 = jnp.zeros((8, HID), jnp.bfloat16)
    wl8 = wl8.at[:OUT].set(wl.T.astype(jnp.bfloat16))
    return vpu, mxu, wl8


def mlp_forward_fm(x_fm, vpu_slab, mxu_slab, wl8, *, tile_n=8192):
    """Feature-major forward: x_fm is (2, N) f32, returns (3, N) f32.

    Preferred interface: no wrapper-side transpose HBM passes; pad/slice only
    when N is not a multiple of the chosen tile.
    """
    in_fc, N = x_fm.shape
    assert in_fc == IN_FC, "kernel is specialized to 2-D inputs (pos_enc=False)"
    tile, n_pad = _choose_tile(N, tile_n)
    x_in = x_fm if n_pad == N else jnp.pad(x_fm, ((0, 0), (0, n_pad - N)))

    out_fm = pl.pallas_call(
        mlp_kernel,
        out_shape=jax.ShapeDtypeStruct((OUT, n_pad), jnp.float32),
        grid_spec=pltpu.PrefetchScalarGridSpec(
            num_scalar_prefetch=0,
            grid=(n_pad // tile,),
            in_specs=[
                pl.BlockSpec((HID, HID), lambda i: (0, 0)),        # resident f32 smalls
                pl.BlockSpec((3, HID, HID), lambda i: (0, 0, 0)),  # resident bf16 weights
                pl.BlockSpec((8, HID), lambda i: (0, 0)),          # resident bf16 fc_last
                pl.BlockSpec((IN_FC, tile), lambda i: (0, i)),     # x tile (lane-dense)
            ],
            out_specs=pl.BlockSpec((OUT, tile), lambda i: (0, i)),
        ),
        compiler_params=pltpu.CompilerParams(
            dimension_semantics=("parallel",)),
    )(vpu_slab, mxu_slab, wl8, x_in)

    return out_fm if n_pad == N else out_fm[:, :N]


def mlp_forward(x, vpu_slab, mxu_slab, wl8, *, tile_n=8192):
    """Row-major compatibility wrapper matching PyTorch (N, 2) -> (N, 3).

    Prefer mlp_forward_fm in a feature-major pipeline to avoid the two
    transpose HBM passes below.
    """
    return mlp_forward_fm(x.T, vpu_slab, mxu_slab, wl8, tile_n=tile_n).T


def mlp_reference(x, params):
    """Pure-f32 reference (exact semantics of the PyTorch module)."""
    (w0, b0), (w1, b1), (w2, b2), (w3, b3), (wl, bl) = params
    h = jax.nn.relu(x @ w0 + b0)
    h = jax.nn.relu(h @ w1 + b1)
    h = jax.nn.relu(jnp.concatenate([x, h], axis=-1) @ w2 + b2)   # skip at layer 2
    h = jax.nn.relu(h @ w3 + b3)
    return h @ wl + bl


def mlp_reference_bf16(x, params):
    """Reference matching the kernel's numerics: bf16 MXU operands, f32 accum."""
    bf = jnp.bfloat16
    (w0, b0), (w1, b1), (w2, b2), (w3, b3), (wl, bl) = params
    w2x, w2h = w2[:IN_FC], w2[IN_FC:]
    h = jax.nn.relu(x @ w0 + b0)
    h = jax.nn.relu(jnp.dot(h.astype(bf), w1.astype(bf),
                            preferred_element_type=jnp.float32) + b1)
    h = jax.nn.relu(x @ w2x
                    + jnp.dot(h.astype(bf), w2h.astype(bf),
                              preferred_element_type=jnp.float32) + b2)
    h = jax.nn.relu(jnp.dot(h.astype(bf), w3.astype(bf),
                            preferred_element_type=jnp.float32) + b3)
    return jnp.dot(h.astype(bf), wl.astype(bf),
                   preferred_element_type=jnp.float32) + bl


def init_params(key):
    def lin(k, fan_in, fan_out):
        kw, kb = jax.random.split(k)
        w = jax.random.normal(kw, (fan_in, fan_out), jnp.float32) * 0.1
        b = jax.random.normal(kb, (fan_out,), jnp.float32) * 0.01
        return w, b

    ks = jax.random.split(key, 5)
    return (lin(ks[0], IN_FC, HID),            # fc_first
            lin(ks[1], HID, HID),              # fc_list[0]
            lin(ks[2], IN_FC + HID, HID),      # fc_list[1]  (skip: cat([x, h]))
            lin(ks[3], HID, HID),              # fc_list[2]
            lin(ks[4], HID, OUT))              # fc_last


if __name__ == "__main__":
    key = jax.random.PRNGKey(0)
    kx, kp = jax.random.split(key)

    params = init_params(kp)
    vpu_slab, mxu_slab, wl8 = pack_params(params)

    # Main check via the feature-major entry point (no wrapper transposes; N is
    # a multiple of the tile, so no pad/slice either).
    N = 4096
    x = jax.random.normal(kx, (N, IN_FC), jnp.float32)
    out_fm = jax.block_until_ready(mlp_forward_fm(x.T, vpu_slab, mxu_slab, wl8))
    assert out_fm.shape == (OUT, N)
    out = out_fm.T

    ref16 = mlp_reference_bf16(x, params)      # numerics-matched reference
    ref32 = mlp_reference(x, params)           # exact module semantics
    assert jnp.allclose(out, ref16, atol=1e-3, rtol=1e-3)
    assert jnp.allclose(out, ref32, atol=5e-2, rtol=5e-2)

    # Ragged batch via the row-major compatibility wrapper (pad/slice path).
    x_small = x[:300]
    out_small = jax.block_until_ready(mlp_forward(x_small, vpu_slab, mxu_slab, wl8))
    assert out_small.shape == (300, OUT)
    assert jnp.allclose(out_small, mlp_reference_bf16(x_small, params),
                        atol=1e-3, rtol=1e-3)
    assert jnp.allclose(out_small, mlp_reference(x_small, params),
                        atol=5e-2, rtol=5e-2)

    print("KERNEL_OK")
</pallas_src>

<mosaic_0001>
module attributes {stable_mosaic.version = 11 : i64} {
  func.func @mlp_kernel(%arg0: i32, %arg1: memref<32x32xf32, #tpu.memory_space<vmem>>, %arg2: memref<3x32x32xbf16, #tpu.memory_space<vmem>>, %arg3: memref<8x32xbf16, #tpu.memory_space<vmem>>, %arg4: memref<2x4096xf32, #tpu.memory_space<vmem>>, %arg5: memref<3x4096xf32, #tpu.memory_space<vmem>>) attributes {dimension_semantics = [#tpu.dimension_semantics<parallel>], iteration_bounds = array<i64: 1>, scalar_prefetch = 0 : i64, scratch_operands = 0 : i64, tpu.core_type = #tpu.core_type<tc>, window_params = [{pipeline_mode = #tpu.pipeline_mode<synchronous>, transform_indices = @transform_0, window_bounds = array<i64: 32, 32>}, {pipeline_mode = #tpu.pipeline_mode<synchronous>, transform_indices = @transform_1, window_bounds = array<i64: 3, 32, 32>}, {pipeline_mode = #tpu.pipeline_mode<synchronous>, transform_indices = @transform_2, window_bounds = array<i64: 8, 32>}, {transform_indices = @transform_3, window_bounds = array<i64: 2, 4096>}, {transform_indices = @transform_4, window_bounds = array<i64: 3, 4096>}]} {
    %c0 = arith.constant 0 : index
    %c0_0 = arith.constant 0 : index
    %0 = vector.load %arg4[%c0, %c0_0] : memref<2x4096xf32, #tpu.memory_space<vmem>>, vector<2x4096xf32>
    %c0_1 = arith.constant 0 : index
    %c0_2 = arith.constant 0 : index
    %1 = vector.load %arg1[%c0_1, %c0_2] : memref<32x32xf32, #tpu.memory_space<vmem>>, vector<32x32xf32>
    %2 = vector.extract_strided_slice %1 {offsets = [0, 0], sizes = [32, 1], strides = [1, 1]} : vector<32x32xf32> to vector<32x1xf32>
    %3 = vector.extract_strided_slice %1 {offsets = [0, 1], sizes = [32, 1], strides = [1, 1]} : vector<32x32xf32> to vector<32x1xf32>
    %4 = vector.extract_strided_slice %1 {offsets = [0, 2], sizes = [32, 1], strides = [1, 1]} : vector<32x32xf32> to vector<32x1xf32>
    %5 = vector.extract_strided_slice %1 {offsets = [0, 3], sizes = [32, 1], strides = [1, 1]} : vector<32x32xf32> to vector<32x1xf32>
    %6 = vector.extract_strided_slice %1 {offsets = [0, 4], sizes = [32, 1], strides = [1, 1]} : vector<32x32xf32> to vector<32x1xf32>
    %7 = vector.extract_strided_slice %1 {offsets = [0, 5], sizes = [32, 1], strides = [1, 1]} : vector<32x32xf32> to vector<32x1xf32>
    %8 = vector.extract_strided_slice %1 {offsets = [0, 6], sizes = [32, 1], strides = [1, 1]} : vector<32x32xf32> to vector<32x1xf32>
    %9 = vector.extract_strided_slice %1 {offsets = [0, 7], sizes = [32, 1], strides = [1, 1]} : vector<32x32xf32> to vector<32x1xf32>
    %10 = vector.extract_strided_slice %1 {offsets = [0, 8], sizes = [3, 1], strides = [1, 1]} : vector<32x32xf32> to vector<3x1xf32>
    %11 = vector.extract_strided_slice %0 {offsets = [0, 0], sizes = [1, 4096], strides = [1, 1]} : vector<2x4096xf32> to vector<1x4096xf32>
    %12 = vector.shape_cast %11 : vector<1x4096xf32> to vector<1x4096xf32>
    %13 = vector.broadcast %12 : vector<1x4096xf32> to vector<32x4096xf32>
    %14 = vector.extract_strided_slice %0 {offsets = [1, 0], sizes = [1, 4096], strides = [1, 1]} : vector<2x4096xf32> to vector<1x4096xf32>
    %15 = vector.shape_cast %14 : vector<1x4096xf32> to vector<1x4096xf32>
    %16 = vector.broadcast %15 : vector<1x4096xf32> to vector<32x4096xf32>
    %17 = vector.broadcast %2 : vector<32x1xf32> to vector<32x4096xf32>
    %18 = arith.mulf %17, %13 : vector<32x4096xf32>
    %19 = vector.broadcast %3 : vector<32x1xf32> to vector<32x4096xf32>
    %20 = arith.mulf %19, %16 : vector<32x4096xf32>
    %21 = arith.addf %18, %20 : vector<32x4096xf32>
    %22 = vector.broadcast %6 : vector<32x1xf32> to vector<32x4096xf32>
    %23 = arith.addf %21, %22 : vector<32x4096xf32>
    %24 = vector.broadcast %4 : vector<32x1xf32> to vector<32x4096xf32>
    %25 = arith.mulf %24, %13 : vector<32x4096xf32>
    %26 = vector.broadcast %5 : vector<32x1xf32> to vector<32x4096xf32>
    %27 = arith.mulf %26, %16 : vector<32x4096xf32>
    %28 = arith.addf %25, %27 : vector<32x4096xf32>
    %29 = vector.broadcast %8 : vector<32x1xf32> to vector<32x4096xf32>
    %30 = arith.addf %28, %29 : vector<32x4096xf32>
    %cst = arith.constant 0.000000e+00 : f32
    %31 = vector.broadcast %cst : f32 to vector<32x4096xf32>
    %32 = arith.maximumf %23, %31 : vector<32x4096xf32>
    %c0_3 = arith.constant 0 : index
    %c0_4 = arith.constant 0 : index
    %c0_5 = arith.constant 0 : index
    %33 = vector.load %arg2[%c0_3, %c0_4, %c0_5] : memref<3x32x32xbf16, #tpu.memory_space<vmem>>, vector<1x32x32xbf16>
    %34 = vector.shape_cast %33 : vector<1x32x32xbf16> to vector<32x32xbf16>
    %35 = arith.truncf %32 : vector<32x4096xf32> to vector<32x4096xbf16>
    %cst_6 = arith.constant dense<0.000000e+00> : vector<32x4096xf32>
    %36 = tpu.matmul %34, %35, %cst_6 {dimension_numbers = #tpu.dot_dimension_numbers<[1], [0], [0], [1], [0, 0, 1, 1], [], []>} : vector<32x32xbf16>, vector<32x4096xbf16>, vector<32x4096xf32> -> vector<32x4096xf32>
    %37 = vector.broadcast %7 : vector<32x1xf32> to vector<32x4096xf32>
    %38 = arith.addf %36, %37 : vector<32x4096xf32>
    %cst_7 = arith.constant 0.000000e+00 : f32
    %39 = vector.broadcast %cst_7 : f32 to vector<32x4096xf32>
    %40 = arith.maximumf %38, %39 : vector<32x4096xf32>
    %c1 = arith.constant 1 : index
    %c0_8 = arith.constant 0 : index
    %c0_9 = arith.constant 0 : index
    %41 = vector.load %arg2[%c1, %c0_8, %c0_9] : memref<3x32x32xbf16, #tpu.memory_space<vmem>>, vector<1x32x32xbf16>
    %42 = vector.shape_cast %41 : vector<1x32x32xbf16> to vector<32x32xbf16>
    %43 = arith.truncf %40 : vector<32x4096xf32> to vector<32x4096xbf16>
    %cst_10 = arith.constant dense<0.000000e+00> : vector<32x4096xf32>
    %44 = tpu.matmul %42, %43, %cst_10 {dimension_numbers = #tpu.dot_dimension_numbers<[1], [0], [0], [1], [0, 0, 1, 1], [], []>} : vector<32x32xbf16>, vector<32x4096xbf16>, vector<32x4096xf32> -> vector<32x4096xf32>
    %45 = arith.addf %44, %30 : vector<32x4096xf32>
    %cst_11 = arith.constant 0.000000e+00 : f32
    %46 = vector.broadcast %cst_11 : f32 to vector<32x4096xf32>
    %47 = arith.maximumf %45, %46 : vector<32x4096xf32>
    %c2 = arith.constant 2 : index
    %c0_12 = arith.constant 0 : index
    %c0_13 = arith.constant 0 : index
    %48 = vector.load %arg2[%c2, %c0_12, %c0_13] : memref<3x32x32xbf16, #tpu.memory_space<vmem>>, vector<1x32x32xbf16>
    %49 = vector.shape_cast %48 : vector<1x32x32xbf16> to vector<32x32xbf16>
    %50 = arith.truncf %47 : vector<32x4096xf32> to vector<32x4096xbf16>
    %cst_14 = arith.constant dense<0.000000e+00> : vector<32x4096xf32>
    %51 = tpu.matmul %49, %50, %cst_14 {dimension_numbers = #tpu.dot_dimension_numbers<[1], [0], [0], [1], [0, 0, 1, 1], [], []>} : vector<32x32xbf16>, vector<32x4096xbf16>, vector<32x4096xf32> -> vector<32x4096xf32>
    %52 = vector.broadcast %9 : vector<32x1xf32> to vector<32x4096xf32>
    %53 = arith.addf %51, %52 : vector<32x4096xf32>
    %cst_15 = arith.constant 0.000000e+00 : f32
    %54 = vector.broadcast %cst_15 : f32 to vector<32x4096xf32>
    %55 = arith.maximumf %53, %54 : vector<32x4096xf32>
    %c0_16 = arith.constant 0 : index
    %c0_17 = arith.constant 0 : index
    %56 = vector.load %arg3[%c0_16, %c0_17] : memref<8x32xbf16, #tpu.memory_space<vmem>>, vector<8x32xbf16>
    %57 = arith.truncf %55 : vector<32x4096xf32> to vector<32x4096xbf16>
    %cst_18 = arith.constant dense<0.000000e+00> : vector<8x4096xf32>
    %58 = tpu.matmul %56, %57, %cst_18 {dimension_numbers = #tpu.dot_dimension_numbers<[1], [0], [0], [1], [0, 0, 1, 1], [], []>} : vector<8x32xbf16>, vector<32x4096xbf16>, vector<8x4096xf32> -> vector<8x4096xf32>
    %59 = vector.extract_strided_slice %58 {offsets = [0, 0], sizes = [3, 4096], strides = [1, 1]} : vector<8x4096xf32> to vector<3x4096xf32>
    %60 = vector.broadcast %10 : vector<3x1xf32> to vector<3x4096xf32>
    %61 = arith.addf %59, %60 : vector<3x4096xf32>
    %c0_19 = arith.constant 0 : index
    %c0_20 = arith.constant 0 : index
    %62 = vector.load %arg5[%c0_19, %c0_20] : memref<3x4096xf32, #tpu.memory_space<vmem>>, vector<3x4096xf32>
    tpu.vector_store %arg5[%c0_19, %c0_20], %61 {strides = array<i32>} : memref<3x4096xf32, #tpu.memory_space<vmem>>, vector<3x4096xf32>,
    return
  }
  func.func @transform_0(%arg0: i32) -> (i32, i32) {
    %c0_i32 = arith.constant 0 : i32
    %c0_i32_0 = arith.constant 0 : i32
    %c0_i32_1 = arith.constant 0 : i32
    return %c0_i32, %c0_i32_0 : i32, i32
  }
  func.func @transform_1(%arg0: i32) -> (i32, i32, i32) {
    %c0_i32 = arith.constant 0 : i32
    %c0_i32_0 = arith.constant 0 : i32
    %c0_i32_1 = arith.constant 0 : i32
    %c0_i32_2 = arith.constant 0 : i32
    return %c0_i32, %c0_i32_0, %c0_i32_1 : i32, i32, i32
  }
  func.func @transform_2(%arg0: i32) -> (i32, i32) {
    %c0_i32 = arith.constant 0 : i32
    %c0_i32_0 = arith.constant 0 : i32
    %c0_i32_1 = arith.constant 0 : i32
    return %c0_i32, %c0_i32_0 : i32, i32
  }
  func.func @transform_3(%arg0: i32) -> (i32, i32) {
    %c0_i32 = arith.constant 0 : i32
    %c0_i32_0 = arith.constant 0 : i32
    return %c0_i32, %arg0 : i32, i32
  }
  func.func @transform_4(%arg0: i32) -> (i32, i32) {
    %c0_i32 = arith.constant 0 : i32
    %c0_i32_0 = arith.constant 0 : i32
    return %c0_i32, %arg0 : i32, i32
  }
}

</mosaic_0001>

<llo_original>
// kernel: tpu_custom_call.1
$region0: #{tpu_custom_call.1}
  #allocation0 [shape = 'u32[]', space=smem, size = 0x4, offset = 0x4, fixed_abs, tag = 'smem constant byte address 0x4 - core index']
  #allocation1 [shape = 'u32[144,128]{1,0:T(1,128)}', space=vmem, size = 0x12000, scoped, tag = 'internal scratch']
  %s0 = inlined_call_operand.hbm [shape: f32[32,32], index: 0, kind: input, shape index: {}]
  %s1 = inlined_call_operand.hbm [shape: bf16[3,32,32], index: 1, kind: input, shape index: {}]
  %s2 = inlined_call_operand.vmem [shape: bf16[8,32], index: 2, kind: input, shape index: {}]
  %s3 = inlined_call_operand.hbm [shape: f32[2,4096], index: 3, kind: input, shape index: {}]
  %s4 = inlined_call_operand.hbm [shape: f32[3,4096], index: 4, kind: output, shape index: {}]
  %s5 = sld [smem:[#allocation0]]
  $region38: #{tpu_custom_call.1} parent=0
    _
  %s7 = ssub.s32 1, %s5
  %s8 = scalar_select 0, %s7, %s5
  $region1: #{tpu_custom_call.1} parent=0
    #allocation2 [shape = 'u8[16384]{0}', space=vmem, size = 0x4000, scoped, tag = 'input window, operand 0, single buffered']
    #allocation3 [shape = 's32[1]{0}', space=sflag, size = 0x4, scoped, tag = 'scoped memory for tpu_custom_call.1']
    #allocation4 [shape = 's32[1]{0}', space=sflag, size = 0x4, scoped, tag = 'scoped memory for tpu_custom_call.1']
    #allocation5 [shape = 'u8[24576]{0}', space=vmem, size = 0x6000, scoped, tag = 'input window, operand 1, single buffered']
    #allocation6 [shape = 's32[1]{0}', space=sflag, size = 0x4, scoped, tag = 'scoped memory for tpu_custom_call.1']
    #allocation7 [shape = 'u8[32768]{0}', space=vmem, size = 0x8000, scoped, tag = 'input window, operand 3, single buffered']
    #allocation8 [shape = 'u8[65536]{0}', space=vmem, size = 0x10000, scoped, tag = 'output window, operand 0, single buffered']
    %9 = vsyncpa [#allocation3], 0
    %10 = vsyncpa [#allocation6], 0
    %11 = vsyncpa [#allocation4], 0
    // Predicated region
    $region2: #{tpu_custom_call.1} parent=1 // pred_check
      _
    $region3: #{tpu_custom_call.1} parent=1 // pred_check_branch
      %13 = sbr.rel (0) target = $region5
    $region4: #{tpu_custom_call.1} parent=1 // pred_region
      %s15 = ssub.s32 512, 512
      %16 = vsyncadd [#allocation3], %s15
      %s17 = sshll.u32 [#allocation2], 4
      %s18 = int_to_ptr.vmem [resolvable:$true] %s17
      %23 = dma.hbm_to_vmem [thread:$0]  %s0, 512, %s18, [#allocation3], 128, 128, 8
    $region5: #{tpu_custom_call.1} parent=1 // pred_fallthru
      _
    // Predicated region
    $region6: #{tpu_custom_call.1} parent=1 // pred_check
      _
    $region7: #{tpu_custom_call.1} parent=1 // pred_check_branch
      %25 = sbr.rel (0) target = $region9
    $region8: #{tpu_custom_call.1} parent=1 // pred_region
      %s27 = ssub.s32 768, 768
      %28 = vsyncadd [#allocation6], %s27
      %s29 = sshll.u32 [#allocation5], 4
      %s30 = int_to_ptr.vmem [resolvable:$true] %s29
      %35 = dma.hbm_to_vmem [thread:$0]  %s1, 768, %s30, [#allocation6], 64, 64, 4
    $region9: #{tpu_custom_call.1} parent=1 // pred_fallthru
      _
    // Predicated region
    $region10: #{tpu_custom_call.1} parent=1 // pred_check
      _
    $region11: #{tpu_custom_call.1} parent=1 // pred_check_branch
      %37 = sbr.rel (0) target = $region13
    $region12: #{tpu_custom_call.1} parent=1 // pred_region
      _
    $region13: #{tpu_custom_call.1} parent=1 // pred_fallthru
      _
    // Predicated region
    $region14: #{tpu_custom_call.1} parent=1 // pred_check
      _
    $region15: #{tpu_custom_call.1} parent=1 // pred_check_branch
      %39 = sbr.rel (0) target = $region17
    $region16: #{tpu_custom_call.1} parent=1 // pred_region
      %s41 = ssub.s32 1024, 1024
      %42 = vsyncadd [#allocation6], %s41
      %s44 = sshll.u32 [#allocation7], 4
      %s45 = int_to_ptr.vmem [resolvable:$true] %s44
      %47 = dma.hbm_to_vmem [thread:$0]  %s3, 1024, %s45, [#allocation6]
    $region17: #{tpu_custom_call.1} parent=1 // pred_fallthru
      _
    // Predicated region
    $region18: #{tpu_custom_call.1} parent=1 // pred_check
      _
    $region19: #{tpu_custom_call.1} parent=1 // pred_check_branch
      %49 = sbr.rel (0) target = $region21
    $region20: #{tpu_custom_call.1} parent=1 // pred_region
      %50 = dma.done [#allocation3], 512
    $region21: #{tpu_custom_call.1} parent=1 // pred_fallthru
      _
    // Predicated region
    $region22: #{tpu_custom_call.1} parent=1 // pred_check
      _
    $region23: #{tpu_custom_call.1} parent=1 // pred_check_branch
      %52 = sbr.rel (0) target = $region25
    $region24: #{tpu_custom_call.1} parent=1 // pred_region
      %53 = dma.done [#allocation6], 768
    $region25: #{tpu_custom_call.1} parent=1 // pred_fallthru
      _
    // Predicated region
    $region26: #{tpu_custom_call.1} parent=1 // pred_check
      _
    $region27: #{tpu_custom_call.1} parent=1 // pred_check_branch
      %55 = sbr.rel (0) target = $region29
    $region28: #{tpu_custom_call.1} parent=1 // pred_region
      %56 = dma.done [#allocation6], 1024
    $region29: #{tpu_custom_call.1} parent=1 // pred_fallthru
      _
    %v58 = vld [vmem:[#allocation7] sm:$0xff]
    %v59 = vld [vmem:[#allocation7 + $0x8] sm:$0xff]
    %v60 = vld [vmem:[#allocation7 + $0x10] sm:$0xff]
    %v61 = vld [vmem:[#allocation7 + $0x18] sm:$0xff]
    %v62 = vld [vmem:[#allocation7 + $0x20] sm:$0xff]
    %v63 = vld [vmem:[#allocation7 + $0x28] sm:$0xff]
    %v64 = vld [vmem:[#allocation7 + $0x30] sm:$0xff]
    %v65 = vld [vmem:[#allocation7 + $0x38] sm:$0xff]
    %v66 = vld [vmem:[#allocation2] sm:$0xff]
    %v67 = vld [vmem:[#allocation2 + $0x8] sm:$0xff]
    %v68 = vld [vmem:[#allocation2 + $0x10] sm:$0xff]
    %v69 = vld [vmem:[#allocation2 + $0x18] sm:$0xff]
    %v78 = vlaneseq
    %v79 = vshrl.u32 %v78, 7
    %v80 = vsub.s32 0, %v79
    %v81 = vrot.slane %v58, %v80
    %v82 = vlaneseq
    %v83 = vshrl.u32 %v82, 7
    %v84 = vsub.s32 2, %v83
    %v85 = vrot.slane %v58, %v84
    %v86 = vlaneseq
    %v87 = vshrl.u32 %v86, 7
    %v88 = vsub.s32 4, %v87
    %v89 = vrot.slane %v58, %v88
    %v90 = vlaneseq
    %v91 = vshrl.u32 %v90, 7
    %v92 = vsub.s32 6, %v91
    %v93 = vrot.slane %v58, %v92
    %v94 = vlaneseq
    %v95 = vshrl.u32 %v94, 7
    %v96 = vsub.s32 0, %v95
    %v97 = vrot.slane %v59, %v96
    %v98 = vlaneseq
    %v99 = vshrl.u32 %v98, 7
    %v100 = vsub.s32 2, %v99
    %v101 = vrot.slane %v59, %v100
    %v102 = vlaneseq
    %v103 = vshrl.u32 %v102, 7
    %v104 = vsub.s32 4, %v103
    %v105 = vrot.slane %v59, %v104
    %v106 = vlaneseq
    %v107 = vshrl.u32 %v106, 7
    %v108 = vsub.s32 6, %v107
    %v109 = vrot.slane %v59, %v108
    %v110 = vlaneseq
    %v111 = vshrl.u32 %v110, 7
    %v112 = vsub.s32 0, %v111
    %v113 = vrot.slane %v60, %v112
    %v114 = vlaneseq
    %v115 = vshrl.u32 %v114, 7
    %v116 = vsub.s32 2, %v115
    %v117 = vrot.slane %v60, %v116
    %v118 = vlaneseq
    %v119 = vshrl.u32 %v118, 7
    %v120 = vsub.s32 4, %v119
    %v121 = vrot.slane %v60, %v120
    %v122 = vlaneseq
    %v123 = vshrl.u32 %v122, 7
    %v124 = vsub.s32 6, %v123
    %v125 = vrot.slane %v60, %v124
    %v126 = vlaneseq
    %v127 = vshrl.u32 %v126, 7
    %v128 = vsub.s32 0, %v127
    %v129 = vrot.slane %v61, %v128
    %v130 = vlaneseq
    %v131 = vshrl.u32 %v130, 7
    %v132 = vsub.s32 2, %v131
    %v133 = vrot.slane %v61, %v132
    %v134 = vlaneseq
    %v135 = vshrl.u32 %v134, 7
    %v136 = vsub.s32 4, %v135
    %v137 = vrot.slane %v61, %v136
    %v138 = vlaneseq
    %v139 = vshrl.u32 %v138, 7
    %v140 = vsub.s32 6, %v139
    %v141 = vrot.slane %v61, %v140
    %v142 = vlaneseq
    %v143 = vshrl.u32 %v142, 7
    %v144 = vsub.s32 0, %v143
    %v145 = vrot.slane %v62, %v144
    %v146 = vlaneseq
    %v147 = vshrl.u32 %v146, 7
    %v148 = vsub.s32 2, %v147
    %v149 = vrot.slane %v62, %v148
    %v150 = vlaneseq
    %v151 = vshrl.u32 %v150, 7
    %v152 = vsub.s32 4, %v151
    %v153 = vrot.slane %v62, %v152
    %v154 = vlaneseq
    %v155 = vshrl.u32 %v154, 7
    %v156 = vsub.s32 6, %v155
    %v157 = vrot.slane %v62, %v156
    %v158 = vlaneseq
    %v159 = vshrl.u32 %v158, 7
    %v160 = vsub.s32 0, %v159
    %v161 = vrot.slane %v63, %v160
    %v162 = vlaneseq
    %v163 = vshrl.u32 %v162, 7
    %v164 = vsub.s32 2, %v163
    %v165 = vrot.slane %v63, %v164
    %v166 = vlaneseq
    %v167 = vshrl.u32 %v166, 7
    %v168 = vsub.s32 4, %v167
    %v169 = vrot.slane %v63, %v168
    %v170 = vlaneseq
    %v171 = vshrl.u32 %v170, 7
    %v172 = vsub.s32 6, %v171
    %v173 = vrot.slane %v63, %v172
    %v174 = vlaneseq
    %v175 = vshrl.u32 %v174, 7
    %v176 = vsub.s32 0, %v175
    %v177 = vrot.slane %v64, %v176
    %v178 = vlaneseq
    %v179 = vshrl.u32 %v178, 7
    %v180 = vsub.s32 2, %v179
    %v181 = vrot.slane %v64, %v180
    %v182 = vlaneseq
    %v183 = vshrl.u32 %v182, 7
    %v184 = vsub.s32 4, %v183
    %v185 = vrot.slane %v64, %v184
    %v186 = vlaneseq
    %v187 = vshrl.u32 %v186, 7
    %v188 = vsub.s32 6, %v187
    %v189 = vrot.slane %v64, %v188
    %v190 = vlaneseq
    %v191 = vshrl.u32 %v190, 7
    %v192 = vsub.s32 0, %v191
    %v193 = vrot.slane %v65, %v192
    %v194 = vlaneseq
    %v195 = vshrl.u32 %v194, 7
    %v196 = vsub.s32 2, %v195
    %v197 = vrot.slane %v65, %v196
    %v198 = vlaneseq
    %v199 = vshrl.u32 %v198, 7
    %v200 = vsub.s32 4, %v199
    %v201 = vrot.slane %v65, %v200
    %v202 = vlaneseq
    %v203 = vshrl.u32 %v202, 7
    %v204 = vsub.s32 6, %v203
    %v205 = vrot.slane %v65, %v204
    %v238 = vlaneseq
    %v239 = vshrl.u32 %v238, 7
    %v240 = vsub.s32 0, %v239
    %v241 = vrot.slane %v81, %v240
    %v242 = vlaneseq
    %v243 = vshrl.u32 %v242, 7
    %v244 = vsub.s32 0, %v243
    %v245 = vrot.slane %v85, %v244
    %v246 = vlaneseq
    %v247 = vshrl.u32 %v246, 7
    %v248 = vsub.s32 0, %v247
    %v249 = vrot.slane %v89, %v248
    %v250 = vlaneseq
    %v251 = vshrl.u32 %v250, 7
    %v252 = vsub.s32 0, %v251
    %v253 = vrot.slane %v93, %v252
    %v254 = vlaneseq
    %v255 = vshrl.u32 %v254, 7
    %v256 = vsub.s32 0, %v255
    %v257 = vrot.slane %v97, %v256
    %v258 = vlaneseq
    %v259 = vshrl.u32 %v258, 7
    %v260 = vsub.s32 0, %v259
    %v261 = vrot.slane %v101, %v260
    %v262 = vlaneseq
    %v263 = vshrl.u32 %v262, 7
    %v264 = vsub.s32 0, %v263
    %v265 = vrot.slane %v105, %v264
    %v266 = vlaneseq
    %v267 = vshrl.u32 %v266, 7
    %v268 = vsub.s32 0, %v267
    %v269 = vrot.slane %v109, %v268
    %v270 = vlaneseq
    %v271 = vshrl.u32 %v270, 7
    %v272 = vsub.s32 0, %v271
    %v273 = vrot.slane %v113, %v272
    %v274 = vlaneseq
    %v275 = vshrl.u32 %v274, 7
    %v276 = vsub.s32 0, %v275
    %v277 = vrot.slane %v117, %v276
    %v278 = vlaneseq
    %v279 = vshrl.u32 %v278, 7
    %v280 = vsub.s32 0, %v279
    %v281 = vrot.slane %v121, %v280
    %v282 = vlaneseq
    %v283 = vshrl.u32 %v282, 7
    %v284 = vsub.s32 0, %v283
    %v285 = vrot.slane %v125, %v284
    %v286 = vlaneseq
    %v287 = vshrl.u32 %v286, 7
    %v288 = vsub.s32 0, %v287
    %v289 = vrot.slane %v129, %v288
    %v290 = vlaneseq
    %v291 = vshrl.u32 %v290, 7
    %v292 = vsub.s32 0, %v291
    %v293 = vrot.slane %v133, %v292
    %v294 = vlaneseq
    %v295 = vshrl.u32 %v294, 7
    %v296 = vsub.s32 0, %v295
    %v297 = vrot.slane %v137, %v296
    %v298 = vlaneseq
    %v299 = vshrl.u32 %v298, 7
    %v300 = vsub.s32 0, %v299
    %v301 = vrot.slane %v141, %v300
    %v302 = vlaneseq
    %v303 = vshrl.u32 %v302, 7
    %v304 = vsub.s32 0, %v303
    %v305 = vrot.slane %v145, %v304
    %v306 = vlaneseq
    %v307 = vshrl.u32 %v306, 7
    %v308 = vsub.s32 0, %v307
    %v309 = vrot.slane %v149, %v308
    %v310 = vlaneseq
    %v311 = vshrl.u32 %v310, 7
    %v312 = vsub.s32 0, %v311
    %v313 = vrot.slane %v153, %v312
    %v314 = vlaneseq
    %v315 = vshrl.u32 %v314, 7
    %v316 = vsub.s32 0, %v315
    %v317 = vrot.slane %v157, %v316
    %v318 = vlaneseq
    %v319 = vshrl.u32 %v318, 7
    %v320 = vsub.s32 0, %v319
    %v321 = vrot.slane %v161, %v320
    %v322 = vlaneseq
    %v323 = vshrl.u32 %v322, 7
    %v324 = vsub.s32 0, %v323
    %v325 = vrot.slane %v165, %v324
    %v326 = vlaneseq
    %v327 = vshrl.u32 %v326, 7
    %v328 = vsub.s32 0, %v327
    %v329 = vrot.slane %v169, %v328
    %v330 = vlaneseq
    %v331 = vshrl.u32 %v330, 7
    %v332 = vsub.s32 0, %v331
    %v333 = vrot.slane %v173, %v332
    %v334 = vlaneseq
    %v335 = vshrl.u32 %v334, 7
    %v336 = vsub.s32 0, %v335
    %v337 = vrot.slane %v177, %v336
    %v338 = vlaneseq
    %v339 = vshrl.u32 %v338, 7
    %v340 = vsub.s32 0, %v339
    %v341 = vrot.slane %v181, %v340
    %v342 = vlaneseq
    %v343 = vshrl.u32 %v342, 7
    %v344 = vsub.s32 0, %v343
    %v345 = vrot.slane %v185, %v344
    %v346 = vlaneseq
    %v347 = vshrl.u32 %v346, 7
    %v348 = vsub.s32 0, %v347
    %v349 = vrot.slane %v189, %v348
    %v350 = vlaneseq
    %v351 = vshrl.u32 %v350, 7
    %v352 = vsub.s32 0, %v351
    %v353 = vrot.slane %v193, %v352
    %v354 = vlaneseq
    %v355 = vshrl.u32 %v354, 7
    %v356 = vsub.s32 0, %v355
    %v357 = vrot.slane %v197, %v356
    %v358 = vlaneseq
    %v359 = vshrl.u32 %v358, 7
    %v360 = vsub.s32 0, %v359
    %v361 = vrot.slane %v201, %v360
    %v362 = vlaneseq
    %v363 = vshrl.u32 %v362, 7
    %v364 = vsub.s32 0, %v363
    %v365 = vrot.slane %v205, %v364
    %v366 = vlaneseq
    %v367 = vshrl.u32 %v366, 7
    %v368 = vsub.s32 1, %v367
    %v369 = vrot.slane %v58, %v368
    %v370 = vlaneseq
    %v371 = vshrl.u32 %v370, 7
    %v372 = vsub.s32 3, %v371
    %v373 = vrot.slane %v58, %v372
    %v374 = vlaneseq
    %v375 = vshrl.u32 %v374, 7
    %v376 = vsub.s32 5, %v375
    %v377 = vrot.slane %v58, %v376
    %v378 = vlaneseq
    %v379 = vshrl.u32 %v378, 7
    %v380 = vsub.s32 7, %v379
    %v381 = vrot.slane %v58, %v380
    %v382 = vlaneseq
    %v383 = vshrl.u32 %v382, 7
    %v384 = vsub.s32 1, %v383
    %v385 = vrot.slane %v59, %v384
    %v386 = vlaneseq
    %v387 = vshrl.u32 %v386, 7
    %v388 = vsub.s32 3, %v387
    %v389 = vrot.slane %v59, %v388
    %v390 = vlaneseq
    %v391 = vshrl.u32 %v390, 7
    %v392 = vsub.s32 5, %v391
    %v393 = vrot.slane %v59, %v392
    %v394 = vlaneseq
    %v395 = vshrl.u32 %v394, 7
    %v396 = vsub.s32 7, %v395
    %v397 = vrot.slane %v59, %v396
    %v398 = vlaneseq
    %v399 = vshrl.u32 %v398, 7
    %v400 = vsub.s32 1, %v399
    %v401 = vrot.slane %v60, %v400
    %v402 = vlaneseq
    %v403 = vshrl.u32 %v402, 7
    %v404 = vsub.s32 3, %v403
    %v405 = vrot.slane %v60, %v404
    %v406 = vlaneseq
    %v407 = vshrl.u32 %v406, 7
    %v408 = vsub.s32 5, %v407
    %v409 = vrot.slane %v60, %v408
    %v410 = vlaneseq
    %v411 = vshrl.u32 %v410, 7
    %v412 = vsub.s32 7, %v411
    %v413 = vrot.slane %v60, %v412
    %v414 = vlaneseq
    %v415 = vshrl.u32 %v414, 7
    %v416 = vsub.s32 1, %v415
    %v417 = vrot.slane %v61, %v416
    %v418 = vlaneseq
    %v419 = vshrl.u32 %v418, 7
    %v420 = vsub.s32 3, %v419
    %v421 = vrot.slane %v61, %v420
    %v422 = vlaneseq
    %v423 = vshrl.u32 %v422, 7
    %v424 = vsub.s32 5, %v423
    %v425 = vrot.slane %v61, %v424
    %v426 = vlaneseq
    %v427 = vshrl.u32 %v426, 7
    %v428 = vsub.s32 7, %v427
    %v429 = vrot.slane %v61, %v428
    %v430 = vlaneseq
    %v431 = vshrl.u32 %v430, 7
    %v432 = vsub.s32 1, %v431
    %v433 = vrot.slane %v62, %v432
    %v434 = vlaneseq
    %v435 = vshrl.u32 %v434, 7
    %v436 = vsub.s32 3, %v435
    %v437 = vrot.slane %v62, %v436
    %v438 = vlaneseq
    %v439 = vshrl.u32 %v438, 7
    %v440 = vsub.s32 5, %v439
    %v441 = vrot.slane %v62, %v440
    %v442 = vlaneseq
    %v443 = vshrl.u32 %v442, 7
    %v444 = vsub.s32 7, %v443
    %v445 = vrot.slane %v62, %v444
    %v446 = vlaneseq
    %v447 = vshrl.u32 %v446, 7
    %v448 = vsub.s32 1, %v447
    %v449 = vrot.slane %v63, %v448
    %v450 = vlaneseq
    %v451 = vshrl.u32 %v450, 7
    %v452 = vsub.s32 3, %v451
    %v453 = vrot.slane %v63, %v452
    %v454 = vlaneseq
    %v455 = vshrl.u32 %v454, 7
    %v456 = vsub.s32 5, %v455
    %v457 = vrot.slane %v63, %v456
    %v458 = vlaneseq
    %v459 = vshrl.u32 %v458, 7
    %v460 = vsub.s32 7, %v459
    %v461 = vrot.slane %v63, %v460
    %v462 = vlaneseq
    %v463 = vshrl.u32 %v462, 7
    %v464 = vsub.s32 1, %v463
    %v465 = vrot.slane %v64, %v464
    %v466 = vlaneseq
    %v467 = vshrl.u32 %v466, 7
    %v468 = vsub.s32 3, %v467
    %v469 = vrot.slane %v64, %v468
    %v470 = vlaneseq
    %v471 = vshrl.u32 %v470, 7
    %v472 = vsub.s32 5, %v471
    %v473 = vrot.slane %v64, %v472
    %v474 = vlaneseq
    %v475 = vshrl.u32 %v474, 7
    %v476 = vsub.s32 7, %v475
    %v477 = vrot.slane %v64, %v476
    %v478 = vlaneseq
    %v479 = vshrl.u32 %v478, 7
    %v480 = vsub.s32 1, %v479
    %v481 = vrot.slane %v65, %v480
    %v482 = vlaneseq
    %v483 = vshrl.u32 %v482, 7
    %v484 = vsub.s32 3, %v483
    %v485 = vrot.slane %v65, %v484
    %v486 = vlaneseq
    %v487 = vshrl.u32 %v486, 7
    %v488 = vsub.s32 5, %v487
    %v489 = vrot.slane %v65, %v488
    %v490 = vlaneseq
    %v491 = vshrl.u32 %v490, 7
    %v492 = vsub.s32 7, %v491
    %v493 = vrot.slane %v65, %v492
    %v526 = vlaneseq
    %v527 = vshrl.u32 %v526, 7
    %v528 = vsub.s32 1, %v527
    %v529 = vrot.slane %v369, %v528
    %v530 = vlaneseq
    %v531 = vshrl.u32 %v530, 7
    %v532 = vsub.s32 1, %v531
    %v533 = vrot.slane %v373, %v532
    %v534 = vlaneseq
    %v535 = vshrl.u32 %v534, 7
    %v536 = vsub.s32 1, %v535
    %v537 = vrot.slane %v377, %v536
    %v538 = vlaneseq
    %v539 = vshrl.u32 %v538, 7
    %v540 = vsub.s32 1, %v539
    %v541 = vrot.slane %v381, %v540
    %v542 = vlaneseq
    %v543 = vshrl.u32 %v542, 7
    %v544 = vsub.s32 1, %v543
    %v545 = vrot.slane %v385, %v544
    %v546 = vlaneseq
    %v547 = vshrl.u32 %v546, 7
    %v548 = vsub.s32 1, %v547
    %v549 = vrot.slane %v389, %v548
    %v550 = vlaneseq
    %v551 = vshrl.u32 %v550, 7
    %v552 = vsub.s32 1, %v551
    %v553 = vrot.slane %v393, %v552
    %v554 = vlaneseq
    %v555 = vshrl.u32 %v554, 7
    %v556 = vsub.s32 1, %v555
    %v557 = vrot.slane %v397, %v556
    %v558 = vlaneseq
    %v559 = vshrl.u32 %v558, 7
    %v560 = vsub.s32 1, %v559
    %v561 = vrot.slane %v401, %v560
    %v562 = vlaneseq
    %v563 = vshrl.u32 %v562, 7
    %v564 = vsub.s32 1, %v563
    %v565 = vrot.slane %v405, %v564
    %v566 = vlaneseq
    %v567 = vshrl.u32 %v566, 7
    %v568 = vsub.s32 1, %v567
    %v569 = vrot.slane %v409, %v568
    %v570 = vlaneseq
    %v571 = vshrl.u32 %v570, 7
    %v572 = vsub.s32 1, %v571
    %v573 = vrot.slane %v413, %v572
    %v574 = vlaneseq
    %v575 = vshrl.u32 %v574, 7
    %v576 = vsub.s32 1, %v575
    %v577 = vrot.slane %v417, %v576
    %v578 = vlaneseq
    %v579 = vshrl.u32 %v578, 7
    %v580 = vsub.s32 1, %v579
    %v581 = vrot.slane %v421, %v580
    %v582 = vlaneseq
    %v583 = vshrl.u32 %v582, 7
    %v584 = vsub.s32 1, %v583
    %v585 = vrot.slane %v425, %v584
    %v586 = vlaneseq
    %v587 = vshrl.u32 %v586, 7
    %v588 = vsub.s32 1, %v587
    %v589 = vrot.slane %v429, %v588
    %v590 = vlaneseq
    %v591 = vshrl.u32 %v590, 7
    %v592 = vsub.s32 1, %v591
    %v593 = vrot.slane %v433, %v592
    %v594 = vlaneseq
    %v595 = vshrl.u32 %v594, 7
    %v596 = vsub.s32 1, %v595
    %v597 = vrot.slane %v437, %v596
    %v598 = vlaneseq
    %v599 = vshrl.u32 %v598, 7
    %v600 = vsub.s32 1, %v599
    %v601 = vrot.slane %v441, %v600
    %v602 = vlaneseq
    %v603 = vshrl.u32 %v602, 7
    %v604 = vsub.s32 1, %v603
    %v605 = vrot.slane %v445, %v604
    %v606 = vlaneseq
    %v607 = vshrl.u32 %v606, 7
    %v608 = vsub.s32 1, %v607
    %v609 = vrot.slane %v449, %v608
    %v610 = vlaneseq
    %v611 = vshrl.u32 %v610, 7
    %v612 = vsub.s32 1, %v611
    %v613 = vrot.slane %v453, %v612
    %v614 = vlaneseq
    %v615 = vshrl.u32 %v614, 7
    %v616 = vsub.s32 1, %v615
    %v617 = vrot.slane %v457, %v616
    %v618 = vlaneseq
    %v619 = vshrl.u32 %v618, 7
    %v620 = vsub.s32 1, %v619
    %v621 = vrot.slane %v461, %v620
    %v622 = vlaneseq
    %v623 = vshrl.u32 %v622, 7
    %v624 = vsub.s32 1, %v623
    %v625 = vrot.slane %v465, %v624
    %v626 = vlaneseq
    %v627 = vshrl.u32 %v626, 7
    %v628 = vsub.s32 1, %v627
    %v629 = vrot.slane %v469, %v628
    %v630 = vlaneseq
    %v631 = vshrl.u32 %v630, 7
    %v632 = vsub.s32 1, %v631
    %v633 = vrot.slane %v473, %v632
    %v634 = vlaneseq
    %v635 = vshrl.u32 %v634, 7
    %v636 = vsub.s32 1, %v635
    %v637 = vrot.slane %v477, %v636
    %v638 = vlaneseq
    %v639 = vshrl.u32 %v638, 7
    %v640 = vsub.s32 1, %v639
    %v641 = vrot.slane %v481, %v640
    %v642 = vlaneseq
    %v643 = vshrl.u32 %v642, 7
    %v644 = vsub.s32 1, %v643
    %v645 = vrot.slane %v485, %v644
    %v646 = vlaneseq
    %v647 = vshrl.u32 %v646, 7
    %v648 = vsub.s32 1, %v647
    %v649 = vrot.slane %v489, %v648
    %v650 = vlaneseq
    %v651 = vshrl.u32 %v650, 7
    %v652 = vsub.s32 1, %v651
    %v653 = vrot.slane %v493, %v652
    %655 = vset.pattern.permute.xlu0 0
    %656 = vperm.xlu0 %655, %v66
    %v657 = vpop.permute.xlu0 %656
    %660 = vset.pattern.permute.xlu0 0
    %661 = vperm.xlu0 %660, %v67
    %v662 = vpop.permute.xlu0 %661
    %665 = vset.pattern.permute.xlu0 0
    %666 = vperm.xlu0 %665, %v68
    %v667 = vpop.permute.xlu0 %666
    %670 = vset.pattern.permute.xlu0 0
    %671 = vperm.xlu0 %670, %v69
    %v672 = vpop.permute.xlu0 %671
    %v674 = vmul.f32 %v657, %v241
    %v675 = vmul.f32 %v657, %v245
    %v676 = vmul.f32 %v657, %v249
    %v677 = vmul.f32 %v657, %v253
    %v678 = vmul.f32 %v657, %v257
    %v679 = vmul.f32 %v657, %v261
    %v680 = vmul.f32 %v657, %v265
    %v681 = vmul.f32 %v657, %v269
    %v682 = vmul.f32 %v657, %v273
    %v683 = vmul.f32 %v657, %v277
    %v684 = vmul.f32 %v657, %v281
    %v685 = vmul.f32 %v657, %v285
    %v686 = vmul.f32 %v657, %v289
    %v687 = vmul.f32 %v657, %v293
    %v688 = vmul.f32 %v657, %v297
    %v689 = vmul.f32 %v657, %v301
    %v690 = vmul.f32 %v657, %v305
    %v691 = vmul.f32 %v657, %v309
    %v692 = vmul.f32 %v657, %v313
    %v693 = vmul.f32 %v657, %v317
    %v694 = vmul.f32 %v657, %v321
    %v695 = vmul.f32 %v657, %v325
    %v696 = vmul.f32 %v657, %v329
    %v697 = vmul.f32 %v657, %v333
    %v698 = vmul.f32 %v657, %v337
    %v699 = vmul.f32 %v657, %v341
    %v700 = vmul.f32 %v657, %v345
    %v701 = vmul.f32 %v657, %v349
    %v702 = vmul.f32 %v657, %v353
    %v703 = vmul.f32 %v657, %v357
    %v704 = vmul.f32 %v657, %v361
    %v705 = vmul.f32 %v657, %v365
    %v706 = vmul.f32 %v662, %v241
    %v707 = vmul.f32 %v662, %v245
    %v708 = vmul.f32 %v662, %v249
    %v709 = vmul.f32 %v662, %v253
    %v710 = vmul.f32 %v662, %v257
    %v711 = vmul.f32 %v662, %v261
    %v712 = vmul.f32 %v662, %v265
    %v713 = vmul.f32 %v662, %v269
    %v714 = vmul.f32 %v662, %v273
    %v715 = vmul.f32 %v662, %v277
    %v716 = vmul.f32 %v662, %v281
    %v717 = vmul.f32 %v662, %v285
    %v718 = vmul.f32 %v662, %v289
    %v719 = vmul.f32 %v662, %v293
    %v720 = vmul.f32 %v662, %v297
    %v721 = vmul.f32 %v662, %v301
    %v722 = vmul.f32 %v662, %v305
    %v723 = vmul.f32 %v662, %v309
    %v724 = vmul.f32 %v662, %v313
    %v725 = vmul.f32 %v662, %v317
    %v726 = vmul.f32 %v662, %v321
    %v727 = vmul.f32 %v662, %v325
    %v728 = vmul.f32 %v662, %v329
    %v729 = vmul.f32 %v662, %v333
    %v730 = vmul.f32 %v662, %v337
    %v731 = vmul.f32 %v662, %v341
    %v732 = vmul.f32 %v662, %v345
    %v733 = vmul.f32 %v662, %v349
    %v734 = vmul.f32 %v662, %v353
    %v735 = vmul.f32 %v662, %v357
    %v736 = vmul.f32 %v662, %v361
    %v737 = vmul.f32 %v662, %v365
    %v738 = vmul.f32 %v667, %v241
    %v739 = vmul.f32 %v667, %v245
    %v740 = vmul.f32 %v667, %v249
    %v741 = vmul.f32 %v667, %v253
    %v742 = vmul.f32 %v667, %v257
    %v743 = vmul.f32 %v667, %v261
    %v744 = vmul.f32 %v667, %v265
    %v745 = vmul.f32 %v667, %v269
    %v746 = vmul.f32 %v667, %v273
    %v747 = vmul.f32 %v667, %v277
    %v748 = vmul.f32 %v667, %v281
    %v749 = vmul.f32 %v667, %v285
    %v750 = vmul.f32 %v667, %v289
    %v751 = vmul.f32 %v667, %v293
    %v752 = vmul.f32 %v667, %v297
    %v753 = vmul.f32 %v667, %v301
    %v754 = vmul.f32 %v667, %v305
    %v755 = vmul.f32 %v667, %v309
    %v756 = vmul.f32 %v667, %v313
    %v757 = vmul.f32 %v667, %v317
    %v758 = vmul.f32 %v667, %v321
    %v759 = vmul.f32 %v667, %v325
    %v760 = vmul.f32 %v667, %v329
    %v761 = vmul.f32 %v667, %v333
    %v762 = vmul.f32 %v667, %v337
    %v763 = vmul.f32 %v667, %v341
    %v764 = vmul.f32 %v667, %v345
    %v765 = vmul.f32 %v667, %v349
    %v766 = vmul.f32 %v667, %v353
    %v767 = vmul.f32 %v667, %v357
    %v768 = vmul.f32 %v667, %v361
    %v769 = vmul.f32 %v667, %v365
    %v770 = vmul.f32 %v672, %v241
    %v771 = vmul.f32 %v672, %v245
    %v772 = vmul.f32 %v672, %v249
    %v773 = vmul.f32 %v672, %v253
    %v774 = vmul.f32 %v672, %v257
    %v775 = vmul.f32 %v672, %v261
    %v776 = vmul.f32 %v672, %v265
    %v777 = vmul.f32 %v672, %v269
    %v778 = vmul.f32 %v672, %v273
    %v779 = vmul.f32 %v672, %v277
    %v780 = vmul.f32 %v672, %v281
    %v781 = vmul.f32 %v672, %v285
    %v782 = vmul.f32 %v672, %v289
    %v783 = vmul.f32 %v672, %v293
    %v784 = vmul.f32 %v672, %v297
    %v785 = vmul.f32 %v672, %v301
    %v786 = vmul.f32 %v672, %v305
    %v787 = vmul.f32 %v672, %v309
    %v788 = vmul.f32 %v672, %v313
    %v789 = vmul.f32 %v672, %v317
    %v790 = vmul.f32 %v672, %v321
    %v791 = vmul.f32 %v672, %v325
    %v792 = vmul.f32 %v672, %v329
    %v793 = vmul.f32 %v672, %v333
    %v794 = vmul.f32 %v672, %v337
    %v795 = vmul.f32 %v672, %v341
    %v796 = vmul.f32 %v672, %v345
    %v797 = vmul.f32 %v672, %v349
    %v798 = vmul.f32 %v672, %v353
    %v799 = vmul.f32 %v672, %v357
    %v800 = vmul.f32 %v672, %v361
    %v801 = vmul.f32 %v672, %v365
    %802 = vset.pattern.permute.xlu0 1
    %803 = vperm.xlu0 %802, %v66
    %v804 = vpop.permute.xlu0 %803
    %806 = vset.pattern.permute.xlu0 1
    %807 = vperm.xlu0 %806, %v67
    %v808 = vpop.permute.xlu0 %807
    %810 = vset.pattern.permute.xlu0 1
    %811 = vperm.xlu0 %810, %v68
    %v812 = vpop.permute.xlu0 %811
    %814 = vset.pattern.permute.xlu0 1
    %815 = vperm.xlu0 %814, %v69
    %v816 = vpop.permute.xlu0 %815
    %v818 = vmul.f32 %v804, %v529
    %v819 = vmul.f32 %v804, %v533
    %v820 = vmul.f32 %v804, %v537
    %v821 = vmul.f32 %v804, %v541
    %v822 = vmul.f32 %v804, %v545
    %v823 = vmul.f32 %v804, %v549
    %v824 = vmul.f32 %v804, %v553
    %v825 = vmul.f32 %v804, %v557
    %v826 = vmul.f32 %v804, %v561
    %v827 = vmul.f32 %v804, %v565
    %v828 = vmul.f32 %v804, %v569
    %v829 = vmul.f32 %v804, %v573
    %v830 = vmul.f32 %v804, %v577
    %v831 = vmul.f32 %v804, %v581
    %v832 = vmul.f32 %v804, %v585
    %v833 = vmul.f32 %v804, %v589
    %v834 = vmul.f32 %v804, %v593
    %v835 = vmul.f32 %v804, %v597
    %v836 = vmul.f32 %v804, %v601
    %v837 = vmul.f32 %v804, %v605
    %v838 = vmul.f32 %v804, %v609
    %v839 = vmul.f32 %v804, %v613
    %v840 = vmul.f32 %v804, %v617
    %v841 = vmul.f32 %v804, %v621
    %v842 = vmul.f32 %v804, %v625
    %v843 = vmul.f32 %v804, %v629
    %v844 = vmul.f32 %v804, %v633
    %v845 = vmul.f32 %v804, %v637
    %v846 = vmul.f32 %v804, %v641
    %v847 = vmul.f32 %v804, %v645
    %v848 = vmul.f32 %v804, %v649
    %v849 = vmul.f32 %v804, %v653
    %v850 = vmul.f32 %v808, %v529
    %v851 = vmul.f32 %v808, %v533
    %v852 = vmul.f32 %v808, %v537
    %v853 = vmul.f32 %v808, %v541
    %v854 = vmul.f32 %v808, %v545
    %v855 = vmul.f32 %v808, %v549
    %v856 = vmul.f32 %v808, %v553
    %v857 = vmul.f32 %v808, %v557
    %v858 = vmul.f32 %v808, %v561
    %v859 = vmul.f32 %v808, %v565
    %v860 = vmul.f32 %v808, %v569
    %v861 = vmul.f32 %v808, %v573
    %v862 = vmul.f32 %v808, %v577
    %v863 = vmul.f32 %v808, %v581
    %v864 = vmul.f32 %v808, %v585
    %v865 = vmul.f32 %v808, %v589
    %v866 = vmul.f32 %v808, %v593
    %v867 = vmul.f32 %v808, %v597
    %v868 = vmul.f32 %v808, %v601
    %v869 = vmul.f32 %v808, %v605
    %v870 = vmul.f32 %v808, %v609
    %v871 = vmul.f32 %v808, %v613
    %v872 = vmul.f32 %v808, %v617
    %v873 = vmul.f32 %v808, %v621
    %v874 = vmul.f32 %v808, %v625
    %v875 = vmul.f32 %v808, %v629
    %v876 = vmul.f32 %v808, %v633
    %v877 = vmul.f32 %v808, %v637
    %v878 = vmul.f32 %v808, %v641
    %v879 = vmul.f32 %v808, %v645
    %v880 = vmul.f32 %v808, %v649
    %v881 = vmul.f32 %v808, %v653
    %v882 = vmul.f32 %v812, %v529
    %v883 = vmul.f32 %v812, %v533
    %v884 = vmul.f32 %v812, %v537
    %v885 = vmul.f32 %v812, %v541
    %v886 = vmul.f32 %v812, %v545
    %v887 = vmul.f32 %v812, %v549
    %v888 = vmul.f32 %v812, %v553
    %v889 = vmul.f32 %v812, %v557
    %v890 = vmul.f32 %v812, %v561
    %v891 = vmul.f32 %v812, %v565
    %v892 = vmul.f32 %v812, %v569
    %v893 = vmul.f32 %v812, %v573
    %v894 = vmul.f32 %v812, %v577
    %v895 = vmul.f32 %v812, %v581
    %v896 = vmul.f32 %v812, %v585
    %v897 = vmul.f32 %v812, %v589
    %v898 = vmul.f32 %v812, %v593
    %v899 = vmul.f32 %v812, %v597
    %v900 = vmul.f32 %v812, %v601
    %v901 = vmul.f32 %v812, %v605
    %v902 = vmul.f32 %v812, %v609
    %v903 = vmul.f32 %v812, %v613
    %v904 = vmul.f32 %v812, %v617
    %v905 = vmul.f32 %v812, %v621
    %v906 = vmul.f32 %v812, %v625
    %v907 = vmul.f32 %v812, %v629
    %v908 = vmul.f32 %v812, %v633
    %v909 = vmul.f32 %v812, %v637
    %v910 = vmul.f32 %v812, %v641
    %v911 = vmul.f32 %v812, %v645
    %v912 = vmul.f32 %v812, %v649
    %v913 = vmul.f32 %v812, %v653
    %v914 = vmul.f32 %v816, %v529
    %v915 = vmul.f32 %v816, %v533
    %v916 = vmul.f32 %v816, %v537
    %v917 = vmul.f32 %v816, %v541
    %v918 = vmul.f32 %v816, %v545
    %v919 = vmul.f32 %v816, %v549
    %v920 = vmul.f32 %v816, %v553
    %v921 = vmul.f32 %v816, %v557
    %v922 = vmul.f32 %v816, %v561
    %v923 = vmul.f32 %v816, %v565
    %v924 = vmul.f32 %v816, %v569
    %v925 = vmul.f32 %v816, %v573
    %v926 = vmul.f32 %v816, %v577
    %v927 = vmul.f32 %v816, %v581
    %v928 = vmul.f32 %v816, %v585
    %v929 = vmul.f32 %v816, %v589
    %v930 = vmul.f32 %v816, %v593
    %v931 = vmul.f32 %v816, %v597
    %v932 = vmul.f32 %v816, %v601
    %v933 = vmul.f32 %v816, %v605
    %v934 = vmul.f32 %v816, %v609
    %v935 = vmul.f32 %v816, %v613
    %v936 = vmul.f32 %v816, %v617
    %v937 = vmul.f32 %v816, %v621
    %v938 = vmul.f32 %v816, %v625
    %v939 = vmul.f32 %v816, %v629
    %v940 = vmul.f32 %v816, %v633
    %v941 = vmul.f32 %v816, %v637
    %v942 = vmul.f32 %v816, %v641
    %v943 = vmul.f32 %v816, %v645
    %v944 = vmul.f32 %v816, %v649
    %v945 = vmul.f32 %v816, %v653
    %v946 = vadd.f32 %v674, %v818
    %v947 = vadd.f32 %v675, %v819
    %v948 = vadd.f32 %v676, %v820
    %v949 = vadd.f32 %v677, %v821
    %v950 = vadd.f32 %v678, %v822
    %v951 = vadd.f32 %v679, %v823
    %v952 = vadd.f32 %v680, %v824
    %v953 = vadd.f32 %v681, %v825
    %v954 = vadd.f32 %v682, %v826
    %v955 = vadd.f32 %v683, %v827
    %v956 = vadd.f32 %v684, %v828
    %v957 = vadd.f32 %v685, %v829
    %v958 = vadd.f32 %v686, %v830
    %v959 = vadd.f32 %v687, %v831
    %v960 = vadd.f32 %v688, %v832
    %v961 = vadd.f32 %v689, %v833
    %v962 = vadd.f32 %v690, %v834
    %v963 = vadd.f32 %v691, %v835
    %v964 = vadd.f32 %v692, %v836
    %v965 = vadd.f32 %v693, %v837
    %v966 = vadd.f32 %v694, %v838
    %v967 = vadd.f32 %v695, %v839
    %v968 = vadd.f32 %v696, %v840
    %v969 = vadd.f32 %v697, %v841
    %v970 = vadd.f32 %v698, %v842
    %v971 = vadd.f32 %v699, %v843
    %v972 = vadd.f32 %v700, %v844
    %v973 = vadd.f32 %v701, %v845
    %v974 = vadd.f32 %v702, %v846
    %v975 = vadd.f32 %v703, %v847
    %v976 = vadd.f32 %v704, %v848
    %v977 = vadd.f32 %v705, %v849
    %v978 = vadd.f32 %v706, %v850
    %v979 = vadd.f32 %v707, %v851
    %v980 = vadd.f32 %v708, %v852
    %v981 = vadd.f32 %v709, %v853
    %v982 = vadd.f32 %v710, %v854
    %v983 = vadd.f32 %v711, %v855
    %v984 = vadd.f32 %v712, %v856
    %v985 = vadd.f32 %v713, %v857
    %v986 = vadd.f32 %v714, %v858
    %v987 = vadd.f32 %v715, %v859
    %v988 = vadd.f32 %v716, %v860
    %v989 = vadd.f32 %v717, %v861
    %v990 = vadd.f32 %v718, %v862
    %v991 = vadd.f32 %v719, %v863
    %v992 = vadd.f32 %v720, %v864
    %v993 = vadd.f32 %v721, %v865
    %v994 = vadd.f32 %v722, %v866
    %v995 = vadd.f32 %v723, %v867
    %v996 = vadd.f32 %v724, %v868
    %v997 = vadd.f32 %v725, %v869
    %v998 = vadd.f32 %v726, %v870
    %v999 = vadd.f32 %v727, %v871
    %v1000 = vadd.f32 %v728, %v872
    %v1001 = vadd.f32 %v729, %v873
    %v1002 = vadd.f32 %v730, %v874
    %v1003 = vadd.f32 %v731, %v875
    %v1004 = vadd.f32 %v732, %v876
    %v1005 = vadd.f32 %v733, %v877
    %v1006 = vadd.f32 %v734, %v878
    %v1007 = vadd.f32 %v735, %v879
    %v1008 = vadd.f32 %v736, %v880
    %v1009 = vadd.f32 %v737, %v881
    %v1010 = vadd.f32 %v738, %v882
    %v1011 = vadd.f32 %v739, %v883
    %v1012 = vadd.f32 %v740, %v884
    %v1013 = vadd.f32 %v741, %v885
    %v1014 = vadd.f32 %v742, %v886
    %v1015 = vadd.f32 %v743, %v887
    %v1016 = vadd.f32 %v744, %v888
    %v1017 = vadd.f32 %v745, %v889
    %v1018 = vadd.f32 %v746, %v890
    %v1019 = vadd.f32 %v747, %v891
    %v1020 = vadd.f32 %v748, %v892
    %v1021 = vadd.f32 %v749, %v893
    %v1022 = vadd.f32 %v750, %v894
    %v1023 = vadd.f32 %v751, %v895
    %v1024 = vadd.f32 %v752, %v896
    %v1025 = vadd.f32 %v753, %v897
    %v1026 = vadd.f32 %v754, %v898
    %v1027 = vadd.f32 %v755, %v899
    %v1028 = vadd.f32 %v756, %v900
    %v1029 = vadd.f32 %v757, %v901
    %v1030 = vadd.f32 %v758, %v902
    %v1031 = vadd.f32 %v759, %v903
    %v1032 = vadd.f32 %v760, %v904
    %v1033 = vadd.f32 %v761, %v905
    %v1034 = vadd.f32 %v762, %v906
    %v1035 = vadd.f32 %v763, %v907
    %v1036 = vadd.f32 %v764, %v908
    %v1037 = vadd.f32 %v765, %v909
    %v1038 = vadd.f32 %v766, %v910
    %v1039 = vadd.f32 %v767, %v911
    %v1040 = vadd.f32 %v768, %v912
    %v1041 = vadd.f32 %v769, %v913
    %v1042 = vadd.f32 %v770, %v914
    %v1043 = vadd.f32 %v771, %v915
    %v1044 = vadd.f32 %v772, %v916
    %v1045 = vadd.f32 %v773, %v917
    %v1046 = vadd.f32 %v774, %v918
    %v1047 = vadd.f32 %v775, %v919
    %v1048 = vadd.f32 %v776, %v920
    %v1049 = vadd.f32 %v777, %v921
    %v1050 = vadd.f32 %v778, %v922
    %v1051 = vadd.f32 %v779, %v923
    %v1052 = vadd.f32 %v780, %v924
    %v1053 = vadd.f32 %v781, %v925
    %v1054 = vadd.f32 %v782, %v926
    %v1055 = vadd.f32 %v783, %v927
    %v1056 = vadd.f32 %v784, %v928
    %v1057 = vadd.f32 %v785, %v929
    %v1058 = vadd.f32 %v786, %v930
    %v1059 = vadd.f32 %v787, %v931
    %v1060 = vadd.f32 %v788, %v932
    %v1061 = vadd.f32 %v789, %v933
    %v1062 = vadd.f32 %v790, %v934
    %v1063 = vadd.f32 %v791, %v935
    %v1064 = vadd.f32 %v792, %v936
    %v1065 = vadd.f32 %v793, %v937
    %v1066 = vadd.f32 %v794, %v938
    %v1067 = vadd.f32 %v795, %v939
    %v1068 = vadd.f32 %v796, %v940
    %v1069 = vadd.f32 %v797, %v941
    %v1070 = vadd.f32 %v798, %v942
    %v1071 = vadd.f32 %v799, %v943
    %v1072 = vadd.f32 %v800, %v944
    %v1073 = vadd.f32 %v801, %v945
    %1074 = vset.pattern.permute.xlu0 4
    %1075 = vperm.xlu0 %1074, %v66
    %v1076 = vpop.permute.xlu0 %1075
    %1078 = vset.pattern.permute.xlu0 4
    %1079 = vperm.xlu0 %1078, %v67
    %v1080 = vpop.permute.xlu0 %1079
    %1082 = vset.pattern.permute.xlu0 4
    %1083 = vperm.xlu0 %1082, %v68
    %v1084 = vpop.permute.xlu0 %1083
    %1086 = vset.pattern.permute.xlu0 4
    %1087 = vperm.xlu0 %1086, %v69
    %v1088 = vpop.permute.xlu0 %1087
    %v1090 = vadd.f32 %v946, %v1076
    %v1091 = vadd.f32 %v947, %v1076
    %v1092 = vadd.f32 %v948, %v1076
    %v1093 = vadd.f32 %v949, %v1076
    %v1094 = vadd.f32 %v950, %v1076
    %v1095 = vadd.f32 %v951, %v1076
    %v1096 = vadd.f32 %v952, %v1076
    %v1097 = vadd.f32 %v953, %v1076
    %v1098 = vadd.f32 %v954, %v1076
    %v1099 = vadd.f32 %v955, %v1076
    %v1100 = vadd.f32 %v956, %v1076
    %v1101 = vadd.f32 %v957, %v1076
    %v1102 = vadd.f32 %v958, %v1076
    %v1103 = vadd.f32 %v959, %v1076
    %v1104 = vadd.f32 %v960, %v1076
    %v1105 = vadd.f32 %v961, %v1076
    %v1106 = vadd.f32 %v962, %v1076
    %v1107 = vadd.f32 %v963, %v1076
    %v1108 = vadd.f32 %v964, %v1076
    %v1109 = vadd.f32 %v965, %v1076
    %v1110 = vadd.f32 %v966, %v1076
    %v1111 = vadd.f32 %v967, %v1076
    %v1112 = vadd.f32 %v968, %v1076
    %v1113 = vadd.f32 %v969, %v1076
    %v1114 = vadd.f32 %v970, %v1076
    %v1115 = vadd.f32 %v971, %v1076
    %v1116 = vadd.f32 %v972, %v1076
    %v1117 = vadd.f32 %v973, %v1076
    %v1118 = vadd.f32 %v974, %v1076
    %v1119 = vadd.f32 %v975, %v1076
    %v1120 = vadd.f32 %v976, %v1076
    %v1121 = vadd.f32 %v977, %v1076
    %v1122 = vadd.f32 %v978, %v1080
    %v1123 = vadd.f32 %v979, %v1080
    %v1124 = vadd.f32 %v980, %v1080
    %v1125 = vadd.f32 %v981, %v1080
    %v1126 = vadd.f32 %v982, %v1080
    %v1127 = vadd.f32 %v983, %v1080
    %v1128 = vadd.f32 %v984, %v1080
    %v1129 = vadd.f32 %v985, %v1080
    %v1130 = vadd.f32 %v986, %v1080
    %v1131 = vadd.f32 %v987, %v1080
    %v1132 = vadd.f32 %v988, %v1080
    %v1133 = vadd.f32 %v989, %v1080
    %v1134 = vadd.f32 %v990, %v1080
    %v1135 = vadd.f32 %v991, %v1080
    %v1136 = vadd.f32 %v992, %v1080
    %v1137 = vadd.f32 %v993, %v1080
    %v1138 = vadd.f32 %v994, %v1080
    %v1139 = vadd.f32 %v995, %v1080
    %v1140 = vadd.f32 %v996, %v1080
    %v1141 = vadd.f32 %v997, %v1080
    %v1142 = vadd.f32 %v998, %v1080
    %v1143 = vadd.f32 %v999, %v1080
    %v1144 = vadd.f32 %v1000, %v1080
    %v1145 = vadd.f32 %v1001, %v1080
    %v1146 = vadd.f32 %v1002, %v1080
    %v1147 = vadd.f32 %v1003, %v1080
    %v1148 = vadd.f32 %v1004, %v1080
    %v1149 = vadd.f32 %v1005, %v1080
    %v1150 = vadd.f32 %v1006, %v1080
    %v1151 = vadd.f32 %v1007, %v1080
    %v1152 = vadd.f32 %v1008, %v1080
    %v1153 = vadd.f32 %v1009, %v1080
    %v1154 = vadd.f32 %v1010, %v1084
    %v1155 = vadd.f32 %v1011, %v1084
    %v1156 = vadd.f32 %v1012, %v1084
    %v1157 = vadd.f32 %v1013, %v1084
    %v1158 = vadd.f32 %v1014, %v1084
    %v1159 = vadd.f32 %v1015, %v1084
    %v1160 = vadd.f32 %v1016, %v1084
    %v1161 = vadd.f32 %v1017, %v1084
    %v1162 = vadd.f32 %v1018, %v1084
    %v1163 = vadd.f32 %v1019, %v1084
    %v1164 = vadd.f32 %v1020, %v1084
    %v1165 = vadd.f32 %v1021, %v1084
    %v1166 = vadd.f32 %v1022, %v1084
    %v1167 = vadd.f32 %v1023, %v1084
    %v1168 = vadd.f32 %v1024, %v1084
    %v1169 = vadd.f32 %v1025, %v1084
    %v1170 = vadd.f32 %v1026, %v1084
    %v1171 = vadd.f32 %v1027, %v1084
    %v1172 = vadd.f32 %v1028, %v1084
    %v1173 = vadd.f32 %v1029, %v1084
    %v1174 = vadd.f32 %v1030, %v1084
    %v1175 = vadd.f32 %v1031, %v1084
    %v1176 = vadd.f32 %v1032, %v1084
    %v1177 = vadd.f32 %v1033, %v1084
    %v1178 = vadd.f32 %v1034, %v1084
    %v1179 = vadd.f32 %v1035, %v1084
    %v1180 = vadd.f32 %v1036, %v1084
    %v1181 = vadd.f32 %v1037, %v1084
    %v1182 = vadd.f32 %v1038, %v1084
    %v1183 = vadd.f32 %v1039, %v1084
    %v1184 = vadd.f32 %v1040, %v1084
    %v1185 = vadd.f32 %v1041, %v1084
    %v1186 = vadd.f32 %v1042, %v1088
    %v1187 = vadd.f32 %v1043, %v1088
    %v1188 = vadd.f32 %v1044, %v1088
    %v1189 = vadd.f32 %v1045, %v1088
    %v1190 = vadd.f32 %v1046, %v1088
    %v1191 = vadd.f32 %v1047, %v1088
    %v1192 = vadd.f32 %v1048, %v1088
    %v1193 = vadd.f32 %v1049, %v1088
    %v1194 = vadd.f32 %v1050, %v1088
    %v1195 = vadd.f32 %v1051, %v1088
    %v1196 = vadd.f32 %v1052, %v1088
    %v1197 = vadd.f32 %v1053, %v1088
    %v1198 = vadd.f32 %v1054, %v1088
    %v1199 = vadd.f32 %v1055, %v1088
    %v1200 = vadd.f32 %v1056, %v1088
    %v1201 = vadd.f32 %v1057, %v1088
    %v1202 = vadd.f32 %v1058, %v1088
    %v1203 = vadd.f32 %v1059, %v1088
    %v1204 = vadd.f32 %v1060, %v1088
    %v1205 = vadd.f32 %v1061, %v1088
    %v1206 = vadd.f32 %v1062, %v1088
    %v1207 = vadd.f32 %v1063, %v1088
    %v1208 = vadd.f32 %v1064, %v1088
    %v1209 = vadd.f32 %v1065, %v1088
    %v1210 = vadd.f32 %v1066, %v1088
    %v1211 = vadd.f32 %v1067, %v1088
    %v1212 = vadd.f32 %v1068, %v1088
    %v1213 = vadd.f32 %v1069, %v1088
    %v1214 = vadd.f32 %v1070, %v1088
    %v1215 = vadd.f32 %v1071, %v1088
    %v1216 = vadd.f32 %v1072, %v1088
    %v1217 = vadd.f32 %v1073, %v1088
    %1218 = vset.pattern.permute.xlu0 2
    %1219 = vperm.xlu0 %1218, %v66
    %v1220 = vpop.permute.xlu0 %1219
    %1222 = vset.pattern.permute.xlu0 2
    %1223 = vperm.xlu0 %1222, %v67
    %v1224 = vpop.permute.xlu0 %1223
    %1226 = vset.pattern.permute.xlu0 2
    %1227 = vperm.xlu0 %1226, %v68
    %v1228 = vpop.permute.xlu0 %1227
    %1230 = vset.pattern.permute.xlu0 2
    %1231 = vperm.xlu0 %1230, %v69
    %v1232 = vpop.permute.xlu0 %1231
    %v1234 = vmul.f32 %v1220, %v241
    %v1235 = vmul.f32 %v1220, %v245
    %v1236 = vmul.f32 %v1220, %v249
    %v1237 = vmul.f32 %v1220, %v253
    %v1238 = vmul.f32 %v1220, %v257
    %v1239 = vmul.f32 %v1220, %v261
    %v1240 = vmul.f32 %v1220, %v265
    %v1241 = vmul.f32 %v1220, %v269
    %v1242 = vmul.f32 %v1220, %v273
    %v1243 = vmul.f32 %v1220, %v277
    %v1244 = vmul.f32 %v1220, %v281
    %v1245 = vmul.f32 %v1220, %v285
    %v1246 = vmul.f32 %v1220, %v289
    %v1247 = vmul.f32 %v1220, %v293
    %v1248 = vmul.f32 %v1220, %v297
    %v1249 = vmul.f32 %v1220, %v301
    %v1250 = vmul.f32 %v1220, %v305
    %v1251 = vmul.f32 %v1220, %v309
    %v1252 = vmul.f32 %v1220, %v313
    %v1253 = vmul.f32 %v1220, %v317
    %v1254 = vmul.f32 %v1220, %v321
    %v1255 = vmul.f32 %v1220, %v325
    %v1256 = vmul.f32 %v1220, %v329
    %v1257 = vmul.f32 %v1220, %v333
    %v1258 = vmul.f32 %v1220, %v337
    %v1259 = vmul.f32 %v1220, %v341
    %v1260 = vmul.f32 %v1220, %v345
    %v1261 = vmul.f32 %v1220, %v349
    %v1262 = vmul.f32 %v1220, %v353
    %v1263 = vmul.f32 %v1220, %v357
    %v1264 = vmul.f32 %v1220, %v361
    %v1265 = vmul.f32 %v1220, %v365
    %v1266 = vmul.f32 %v1224, %v241
    %v1267 = vmul.f32 %v1224, %v245
    %v1268 = vmul.f32 %v1224, %v249
    %v1269 = vmul.f32 %v1224, %v253
    %v1270 = vmul.f32 %v1224, %v257
    %v1271 = vmul.f32 %v1224, %v261
    %v1272 = vmul.f32 %v1224, %v265
    %v1273 = vmul.f32 %v1224, %v269
    %v1274 = vmul.f32 %v1224, %v273
    %v1275 = vmul.f32 %v1224, %v277
    %v1276 = vmul.f32 %v1224, %v281
    %v1277 = vmul.f32 %v1224, %v285
    %v1278 = vmul.f32 %v1224, %v289
    %v1279 = vmul.f32 %v1224, %v293
    %v1280 = vmul.f32 %v1224, %v297
    %v1281 = vmul.f32 %v1224, %v301
    %v1282 = vmul.f32 %v1224, %v305
    %v1283 = vmul.f32 %v1224, %v309
    %v1284 = vmul.f32 %v1224, %v313
    %v1285 = vmul.f32 %v1224, %v317
    %v1286 = vmul.f32 %v1224, %v321
    %v1287 = vmul.f32 %v1224, %v325
    %v1288 = vmul.f32 %v1224, %v329
    %v1289 = vmul.f32 %v1224, %v333
    %v1290 = vmul.f32 %v1224, %v337
    %v1291 = vmul.f32 %v1224, %v341
    %v1292 = vmul.f32 %v1224, %v345
    %v1293 = vmul.f32 %v1224, %v349
    %v1294 = vmul.f32 %v1224, %v353
    %v1295 = vmul.f32 %v1224, %v357
    %v1296 = vmul.f32 %v1224, %v361
    %v1297 = vmul.f32 %v1224, %v365
    %v1298 = vmul.f32 %v1228, %v241
    %v1299 = vmul.f32 %v1228, %v245
    %v1300 = vmul.f32 %v1228, %v249
    %v1301 = vmul.f32 %v1228, %v253
    %v1302 = vmul.f32 %v1228, %v257
    %v1303 = vmul.f32 %v1228, %v261
    %v1304 = vmul.f32 %v1228, %v265
    %v1305 = vmul.f32 %v1228, %v269
    %v1306 = vmul.f32 %v1228, %v273
    %v1307 = vmul.f32 %v1228, %v277
    %v1308 = vmul.f32 %v1228, %v281
    %v1309 = vmul.f32 %v1228, %v285
    %v1310 = vmul.f32 %v1228, %v289
    %v1311 = vmul.f32 %v1228, %v293
    %v1312 = vmul.f32 %v1228, %v297
    %v1313 = vmul.f32 %v1228, %v301
    %v1314 = vmul.f32 %v1228, %v305
    %v1315 = vmul.f32 %v1228, %v309
    %v1316 = vmul.f32 %v1228, %v313
    %v1317 = vmul.f32 %v1228, %v317
    %v1318 = vmul.f32 %v1228, %v321
    %v1319 = vmul.f32 %v1228, %v325
    %v1320 = vmul.f32 %v1228, %v329
    %v1321 = vmul.f32 %v1228, %v333
    %v1322 = vmul.f32 %v1228, %v337
    %v1323 = vmul.f32 %v1228, %v341
    %v1324 = vmul.f32 %v1228, %v345
    %v1325 = vmul.f32 %v1228, %v349
    %v1326 = vmul.f32 %v1228, %v353
    %v1327 = vmul.f32 %v1228, %v357
    %v1328 = vmul.f32 %v1228, %v361
    %v1329 = vmul.f32 %v1228, %v365
    %v1330 = vmul.f32 %v1232, %v241
    %v1331 = vmul.f32 %v1232, %v245
    %v1332 = vmul.f32 %v1232, %v249
    %v1333 = vmul.f32 %v1232, %v253
    %v1334 = vmul.f32 %v1232, %v257
    %v1335 = vmul.f32 %v1232, %v261
    %v1336 = vmul.f32 %v1232, %v265
    %v1337 = vmul.f32 %v1232, %v269
    %v1338 = vmul.f32 %v1232, %v273
    %v1339 = vmul.f32 %v1232, %v277
    %v1340 = vmul.f32 %v1232, %v281
    %v1341 = vmul.f32 %v1232, %v285
    %v1342 = vmul.f32 %v1232, %v289
    %v1343 = vmul.f32 %v1232, %v293
    %v1344 = vmul.f32 %v1232, %v297
    %v1345 = vmul.f32 %v1232, %v301
    %v1346 = vmul.f32 %v1232, %v305
    %v1347 = vmul.f32 %v1232, %v309
    %v1348 = vmul.f32 %v1232, %v313
    %v1349 = vmul.f32 %v1232, %v317
    %v1350 = vmul.f32 %v1232, %v321
    %v1351 = vmul.f32 %v1232, %v325
    %v1352 = vmul.f32 %v1232, %v329
    %v1353 = vmul.f32 %v1232, %v333
    %v1354 = vmul.f32 %v1232, %v337
    %v1355 = vmul.f32 %v1232, %v341
    %v1356 = vmul.f32 %v1232, %v345
    %v1357 = vmul.f32 %v1232, %v349
    %v1358 = vmul.f32 %v1232, %v353
    %v1359 = vmul.f32 %v1232, %v357
    %v1360 = vmul.f32 %v1232, %v361
    %v1361 = vmul.f32 %v1232, %v365
    %1362 = vset.pattern.permute.xlu0 3
    %1363 = vperm.xlu0 %1362, %v66
    %v1364 = vpop.permute.xlu0 %1363
    %1366 = vset.pattern.permute.xlu0 3
    %1367 = vperm.xlu0 %1366, %v67
    %v1368 = vpop.permute.xlu0 %1367
    %1370 = vset.pattern.permute.xlu0 3
    %1371 = vperm.xlu0 %1370, %v68
    %v1372 = vpop.permute.xlu0 %1371
    %1374 = vset.pattern.permute.xlu0 3
    %1375 = vperm.xlu0 %1374, %v69
    %v1376 = vpop.permute.xlu0 %1375
    %v1378 = vmul.f32 %v1364, %v529
    %v1379 = vmul.f32 %v1364, %v533
    %v1380 = vmul.f32 %v1364, %v537
    %v1381 = vmul.f32 %v1364, %v541
    %v1382 = vmul.f32 %v1364, %v545
    %v1383 = vmul.f32 %v1364, %v549
    %v1384 = vmul.f32 %v1364, %v553
    %v1385 = vmul.f32 %v1364, %v557
    %v1386 = vmul.f32 %v1364, %v561
    %v1387 = vmul.f32 %v1364, %v565
    %v1388 = vmul.f32 %v1364, %v569
    %v1389 = vmul.f32 %v1364, %v573
    %v1390 = vmul.f32 %v1364, %v577
    %v1391 = vmul.f32 %v1364, %v581
    %v1392 = vmul.f32 %v1364, %v585
    %v1393 = vmul.f32 %v1364, %v589
    %v1394 = vmul.f32 %v1364, %v593
    %v1395 = vmul.f32 %v1364, %v597
    %v1396 = vmul.f32 %v1364, %v601
    %v1397 = vmul.f32 %v1364, %v605
    %v1398 = vmul.f32 %v1364, %v609
    %v1399 = vmul.f32 %v1364, %v613
    %v1400 = vmul.f32 %v1364, %v617
    %v1401 = vmul.f32 %v1364, %v621
    %v1402 = vmul.f32 %v1364, %v625
    %v1403 = vmul.f32 %v1364, %v629
    %v1404 = vmul.f32 %v1364, %v633
    %v1405 = vmul.f32 %v1364, %v637
    %v1406 = vmul.f32 %v1364, %v641
    %v1407 = vmul.f32 %v1364, %v645
    %v1408 = vmul.f32 %v1364, %v649
    %v1409 = vmul.f32 %v1364, %v653
    %v1410 = vmul.f32 %v1368, %v529
    %v1411 = vmul.f32 %v1368, %v533
    %v1412 = vmul.f32 %v1368, %v537
    %v1413 = vmul.f32 %v1368, %v541
    %v1414 = vmul.f32 %v1368, %v545
    %v1415 = vmul.f32 %v1368, %v549
    %v1416 = vmul.f32 %v1368, %v553
    %v1417 = vmul.f32 %v1368, %v557
    %v1418 = vmul.f32 %v1368, %v561
    %v1419 = vmul.f32 %v1368, %v565
    %v1420 = vmul.f32 %v1368, %v569
    %v1421 = vmul.f32 %v1368, %v573
    %v1422 = vmul.f32 %v1368, %v577
    %v1423 = vmul.f32 %v1368, %v581
    %v1424 = vmul.f32 %v1368, %v585
    %v1425 = vmul.f32 %v1368, %v589
    %v1426 = vmul.f32 %v1368, %v593
    %v1427 = vmul.f32 %v1368, %v597
    %v1428 = vmul.f32 %v1368, %v601
    %v1429 = vmul.f32 %v1368, %v605
    %v1430 = vmul.f32 %v1368, %v609
    %v1431 = vmul.f32 %v1368, %v613
    %v1432 = vmul.f32 %v1368, %v617
    %v1433 = vmul.f32 %v1368, %v621
    %v1434 = vmul.f32 %v1368, %v625
    %v1435 = vmul.f32 %v1368, %v629
    %v1436 = vmul.f32 %v1368, %v633
    %v1437 = vmul.f32 %v1368, %v637
    %v1438 = vmul.f32 %v1368, %v641
    %v1439 = vmul.f32 %v1368, %v645
    %v1440 = vmul.f32 %v1368, %v649
    %v1441 = vmul.f32 %v1368, %v653
    %v1442 = vmul.f32 %v1372, %v529
    %v1443 = vmul.f32 %v1372, %v533
    %v1444 = vmul.f32 %v1372, %v537
    %v1445 = vmul.f32 %v1372, %v541
    %v1446 = vmul.f32 %v1372, %v545
    %v1447 = vmul.f32 %v1372, %v549
    %v1448 = vmul.f32 %v1372, %v553
    %v1449 = vmul.f32 %v1372, %v557
    %v1450 = vmul.f32 %v1372, %v561
    %v1451 = vmul.f32 %v1372, %v565
    %v1452 = vmul.f32 %v1372, %v569
    %v1453 = vmul.f32 %v1372, %v573
    %v1454 = vmul.f32 %v1372, %v577
    %v1455 = vmul.f32 %v1372, %v581
    %v1456 = vmul.f32 %v1372, %v585
    %v1457 = vmul.f32 %v1372, %v589
    %v1458 = vmul.f32 %v1372, %v593
    %v1459 = vmul.f32 %v1372, %v597
    %v1460 = vmul.f32 %v1372, %v601
    %v1461 = vmul.f32 %v1372, %v605
    %v1462 = vmul.f32 %v1372, %v609
    %v1463 = vmul.f32 %v1372, %v613
    %v1464 = vmul.f32 %v1372, %v617
    %v1465 = vmul.f32 %v1372, %v621
    %v1466 = vmul.f32 %v1372, %v625
    %v1467 = vmul.f32 %v1372, %v629
    %v1468 = vmul.f32 %v1372, %v633
    %v1469 = vmul.f32 %v1372, %v637
    %v1470 = vmul.f32 %v1372, %v641
    %v1471 = vmul.f32 %v1372, %v645
    %v1472 = vmul.f32 %v1372, %v649
    %v1473 = vmul.f32 %v1372, %v653
    %v1474 = vmul.f32 %v1376, %v529
    %v1475 = vmul.f32 %v1376, %v533
    %v1476 = vmul.f32 %v1376, %v537
    %v1477 = vmul.f32 %v1376, %v541
    %v1478 = vmul.f32 %v1376, %v545
    %v1479 = vmul.f32 %v1376, %v549
    %v1480 = vmul.f32 %v1376, %v553
    %v1481 = vmul.f32 %v1376, %v557
    %v1482 = vmul.f32 %v1376, %v561
    %v1483 = vmul.f32 %v1376, %v565
    %v1484 = vmul.f32 %v1376, %v569
    %v1485 = vmul.f32 %v1376, %v573
    %v1486 = vmul.f32 %v1376, %v577
    %v1487 = vmul.f32 %v1376, %v581
    %v1488 = vmul.f32 %v1376, %v585
    %v1489 = vmul.f32 %v1376, %v589
    %v1490 = vmul.f32 %v1376, %v593
    %v1491 = vmul.f32 %v1376, %v597
    %v1492 = vmul.f32 %v1376, %v601
    %v1493 = vmul.f32 %v1376, %v605
    %v1494 = vmul.f32 %v1376, %v609
    %v1495 = vmul.f32 %v1376, %v613
    %v1496 = vmul.f32 %v1376, %v617
    %v1497 = vmul.f32 %v1376, %v621
    %v1498 = vmul.f32 %v1376, %v625
    %v1499 = vmul.f32 %v1376, %v629
    %v1500 = vmul.f32 %v1376, %v633
    %v1501 = vmul.f32 %v1376, %v637
    %v1502 = vmul.f32 %v1376, %v641
    %v1503 = vmul.f32 %v1376, %v645
    %v1504 = vmul.f32 %v1376, %v649
    %v1505 = vmul.f32 %v1376, %v653
    %v1506 = vadd.f32 %v1234, %v1378
    %v1507 = vadd.f32 %v1235, %v1379
    %v1508 = vadd.f32 %v1236, %v1380
    %v1509 = vadd.f32 %v1237, %v1381
    %v1510 = vadd.f32 %v1238, %v1382
    %v1511 = vadd.f32 %v1239, %v1383
    %v1512 = vadd.f32 %v1240, %v1384
    %v1513 = vadd.f32 %v1241, %v1385
    %v1514 = vadd.f32 %v1242, %v1386
    %v1515 = vadd.f32 %v1243, %v1387
    %v1516 = vadd.f32 %v1244, %v1388
    %v1517 = vadd.f32 %v1245, %v1389
    %v1518 = vadd.f32 %v1246, %v1390
    %v1519 = vadd.f32 %v1247, %v1391
    %v1520 = vadd.f32 %v1248, %v1392
    %v1521 = vadd.f32 %v1249, %v1393
    %v1522 = vadd.f32 %v1250, %v1394
    %v1523 = vadd.f32 %v1251, %v1395
    %v1524 = vadd.f32 %v1252, %v1396
    %v1525 = vadd.f32 %v1253, %v1397
    %v1526 = vadd.f32 %v1254, %v1398
    %v1527 = vadd.f32 %v1255, %v1399
    %v1528 = vadd.f32 %v1256, %v1400
    %v1529 = vadd.f32 %v1257, %v1401
    %v1530 = vadd.f32 %v1258, %v1402
    %v1531 = vadd.f32 %v1259, %v1403
    %v1532 = vadd.f32 %v1260, %v1404
    %v1533 = vadd.f32 %v1261, %v1405
    %v1534 = vadd.f32 %v1262, %v1406
    %v1535 = vadd.f32 %v1263, %v1407
    %v1536 = vadd.f32 %v1264, %v1408
    %v1537 = vadd.f32 %v1265, %v1409
    %v1538 = vadd.f32 %v1266, %v1410
    %v1539 = vadd.f32 %v1267, %v1411
    %v1540 = vadd.f32 %v1268, %v1412
    %v1541 = vadd.f32 %v1269, %v1413
    %v1542 = vadd.f32 %v1270, %v1414
    %v1543 = vadd.f32 %v1271, %v1415
    %v1544 = vadd.f32 %v1272, %v1416
    %v1545 = vadd.f32 %v1273, %v1417
    %v1546 = vadd.f32 %v1274, %v1418
    %v1547 = vadd.f32 %v1275, %v1419
    %v1548 = vadd.f32 %v1276, %v1420
    %v1549 = vadd.f32 %v1277, %v1421
    %v1550 = vadd.f32 %v1278, %v1422
    %v1551 = vadd.f32 %v1279, %v1423
    %v1552 = vadd.f32 %v1280, %v1424
    %v1553 = vadd.f32 %v1281, %v1425
    %v1554 = vadd.f32 %v1282, %v1426
    %v1555 = vadd.f32 %v1283, %v1427
    %v1556 = vadd.f32 %v1284, %v1428
    %v1557 = vadd.f32 %v1285, %v1429
    %v1558 = vadd.f32 %v1286, %v1430
    %v1559 = vadd.f32 %v1287, %v1431
    %v1560 = vadd.f32 %v1288, %v1432
    %v1561 = vadd.f32 %v1289, %v1433
    %v1562 = vadd.f32 %v1290, %v1434
    %v1563 = vadd.f32 %v1291, %v1435
    %v1564 = vadd.f32 %v1292, %v1436
    %v1565 = vadd.f32 %v1293, %v1437
    %v1566 = vadd.f32 %v1294, %v1438
    %v1567 = vadd.f32 %v1295, %v1439
    %v1568 = vadd.f32 %v1296, %v1440
    %v1569 = vadd.f32 %v1297, %v1441
    %v1570 = vadd.f32 %v1298, %v1442
    %v1571 = vadd.f32 %v1299, %v1443
    %v1572 = vadd.f32 %v1300, %v1444
    %v1573 = vadd.f32 %v1301, %v1445
    %v1574 = vadd.f32 %v1302, %v1446
    %v1575 = vadd.f32 %v1303, %v1447
    %v1576 = vadd.f32 %v1304, %v1448
    %v1577 = vadd.f32 %v1305, %v1449
    %v1578 = vadd.f32 %v1306, %v1450
    %v1579 = vadd.f32 %v1307, %v1451
    %v1580 = vadd.f32 %v1308, %v1452
    %v1581 = vadd.f32 %v1309, %v1453
    %v1582 = vadd.f32 %v1310, %v1454
    %v1583 = vadd.f32 %v1311, %v1455
    %v1584 = vadd.f32 %v1312, %v1456
    %v1585 = vadd.f32 %v1313, %v1457
    %v1586 = vadd.f32 %v1314, %v1458
    %v1587 = vadd.f32 %v1315, %v1459
    %v1588 = vadd.f32 %v1316, %v1460
    %v1589 = vadd.f32 %v1317, %v1461
    %v1590 = vadd.f32 %v1318, %v1462
    %v1591 = vadd.f32 %v1319, %v1463
    %v1592 = vadd.f32 %v1320, %v1464
    %v1593 = vadd.f32 %v1321, %v1465
    %v1594 = vadd.f32 %v1322, %v1466
    %v1595 = vadd.f32 %v1323, %v1467
    %v1596 = vadd.f32 %v1324, %v1468
    %v1597 = vadd.f32 %v1325, %v1469
    %v1598 = vadd.f32 %v1326, %v1470
    %v1599 = vadd.f32 %v1327, %v1471
    %v1600 = vadd.f32 %v1328, %v1472
    %v1601 = vadd.f32 %v1329, %v1473
    %v1602 = vadd.f32 %v1330, %v1474
    %v1603 = vadd.f32 %v1331, %v1475
    %v1604 = vadd.f32 %v1332, %v1476
    %v1605 = vadd.f32 %v1333, %v1477
    %v1606 = vadd.f32 %v1334, %v1478
    %v1607 = vadd.f32 %v1335, %v1479
    %v1608 = vadd.f32 %v1336, %v1480
    %v1609 = vadd.f32 %v1337, %v1481
    %v1610 = vadd.f32 %v1338, %v1482
    %v1611 = vadd.f32 %v1339, %v1483
    %v1612 = vadd.f32 %v1340, %v1484
    %v1613 = vadd.f32 %v1341, %v1485
    %v1614 = vadd.f32 %v1342, %v1486
    %v1615 = vadd.f32 %v1343, %v1487
    %v1616 = vadd.f32 %v1344, %v1488
    %v1617 = vadd.f32 %v1345, %v1489
    %v1618 = vadd.f32 %v1346, %v1490
    %v1619 = vadd.f32 %v1347, %v1491
    %v1620 = vadd.f32 %v1348, %v1492
    %v1621 = vadd.f32 %v1349, %v1493
    %v1622 = vadd.f32 %v1350, %v1494
    %v1623 = vadd.f32 %v1351, %v1495
    %v1624 = vadd.f32 %v1352, %v1496
    %v1625 = vadd.f32 %v1353, %v1497
    %v1626 = vadd.f32 %v1354, %v1498
    %v1627 = vadd.f32 %v1355, %v1499
    %v1628 = vadd.f32 %v1356, %v1500
    %v1629 = vadd.f32 %v1357, %v1501
    %v1630 = vadd.f32 %v1358, %v1502
    %v1631 = vadd.f32 %v1359, %v1503
    %v1632 = vadd.f32 %v1360, %v1504
    %v1633 = vadd.f32 %v1361, %v1505
    %1634 = vset.pattern.permute.xlu0 6
    %1635 = vperm.xlu0 %1634, %v66
    %v1636 = vpop.permute.xlu0 %1635
    %1638 = vset.pattern.permute.xlu0 6
    %1639 = vperm.xlu0 %1638, %v67
    %v1640 = vpop.permute.xlu0 %1639
    %1642 = vset.pattern.permute.xlu0 6
    %1643 = vperm.xlu0 %1642, %v68
    %v1644 = vpop.permute.xlu0 %1643
    %1646 = vset.pattern.permute.xlu0 6
    %1647 = vperm.xlu0 %1646, %v69
    %v1648 = vpop.permute.xlu0 %1647
    %v1650 = vadd.f32 %v1506, %v1636
    %v1651 = vadd.f32 %v1507, %v1636
    %v1652 = vadd.f32 %v1508, %v1636
    %v1653 = vadd.f32 %v1509, %v1636
    %v1654 = vadd.f32 %v1510, %v1636
    %v1655 = vadd.f32 %v1511, %v1636
    %v1656 = vadd.f32 %v1512, %v1636
    %v1657 = vadd.f32 %v1513, %v1636
    %v1658 = vadd.f32 %v1514, %v1636
    %v1659 = vadd.f32 %v1515, %v1636
    %v1660 = vadd.f32 %v1516, %v1636
    %v1661 = vadd.f32 %v1517, %v1636
    %v1662 = vadd.f32 %v1518, %v1636
    %v1663 = vadd.f32 %v1519, %v1636
    %v1664 = vadd.f32 %v1520, %v1636
    %v1665 = vadd.f32 %v1521, %v1636
    %v1666 = vadd.f32 %v1522, %v1636
    %v1667 = vadd.f32 %v1523, %v1636
    %v1668 = vadd.f32 %v1524, %v1636
    %v1669 = vadd.f32 %v1525, %v1636
    %v1670 = vadd.f32 %v1526, %v1636
    %v1671 = vadd.f32 %v1527, %v1636
    %v1672 = vadd.f32 %v1528, %v1636
    %v1673 = vadd.f32 %v1529, %v1636
    %v1674 = vadd.f32 %v1530, %v1636
    %v1675 = vadd.f32 %v1531, %v1636
    %v1676 = vadd.f32 %v1532, %v1636
    %v1677 = vadd.f32 %v1533, %v1636
    %v1678 = vadd.f32 %v1534, %v1636
    %v1679 = vadd.f32 %v1535, %v1636
    %v1680 = vadd.f32 %v1536, %v1636
    %v1681 = vadd.f32 %v1537, %v1636
    %v1682 = vadd.f32 %v1538, %v1640
    %v1683 = vadd.f32 %v1539, %v1640
    %v1684 = vadd.f32 %v1540, %v1640
    %v1685 = vadd.f32 %v1541, %v1640
    %v1686 = vadd.f32 %v1542, %v1640
    %v1687 = vadd.f32 %v1543, %v1640
    %v1688 = vadd.f32 %v1544, %v1640
    %v1689 = vadd.f32 %v1545, %v1640
    %v1690 = vadd.f32 %v1546, %v1640
    %v1691 = vadd.f32 %v1547, %v1640
    %v1692 = vadd.f32 %v1548, %v1640
    %v1693 = vadd.f32 %v1549, %v1640
    %v1694 = vadd.f32 %v1550, %v1640
    %v1695 = vadd.f32 %v1551, %v1640
    %v1696 = vadd.f32 %v1552, %v1640
    %v1697 = vadd.f32 %v1553, %v1640
    %v1698 = vadd.f32 %v1554, %v1640
    %v1699 = vadd.f32 %v1555, %v1640
    %v1700 = vadd.f32 %v1556, %v1640
    %v1701 = vadd.f32 %v1557, %v1640
    %v1702 = vadd.f32 %v1558, %v1640
    %v1703 = vadd.f32 %v1559, %v1640
    %v1704 = vadd.f32 %v1560, %v1640
    %v1705 = vadd.f32 %v1561, %v1640
    %v1706 = vadd.f32 %v1562, %v1640
    %v1707 = vadd.f32 %v1563, %v1640
    %v1708 = vadd.f32 %v1564, %v1640
    %v1709 = vadd.f32 %v1565, %v1640
    %v1710 = vadd.f32 %v1566, %v1640
    %v1711 = vadd.f32 %v1567, %v1640
    %v1712 = vadd.f32 %v1568, %v1640
    %v1713 = vadd.f32 %v1569, %v1640
    %v1714 = vadd.f32 %v1570, %v1644
    %v1715 = vadd.f32 %v1571, %v1644
    %v1716 = vadd.f32 %v1572, %v1644
    %v1717 = vadd.f32 %v1573, %v1644
    %v1718 = vadd.f32 %v1574, %v1644
    %v1719 = vadd.f32 %v1575, %v1644
    %v1720 = vadd.f32 %v1576, %v1644
    %v1721 = vadd.f32 %v1577, %v1644
    %v1722 = vadd.f32 %v1578, %v1644
    %v1723 = vadd.f32 %v1579, %v1644
    %v1724 = vadd.f32 %v1580, %v1644
    %v1725 = vadd.f32 %v1581, %v1644
    %v1726 = vadd.f32 %v1582, %v1644
    %v1727 = vadd.f32 %v1583, %v1644
    %v1728 = vadd.f32 %v1584, %v1644
    %v1729 = vadd.f32 %v1585, %v1644
    %v1730 = vadd.f32 %v1586, %v1644
    %v1731 = vadd.f32 %v1587, %v1644
    %v1732 = vadd.f32 %v1588, %v1644
    %v1733 = vadd.f32 %v1589, %v1644
    %v1734 = vadd.f32 %v1590, %v1644
    %v1735 = vadd.f32 %v1591, %v1644
    %v1736 = vadd.f32 %v1592, %v1644
    %v1737 = vadd.f32 %v1593, %v1644
    %v1738 = vadd.f32 %v1594, %v1644
    %v1739 = vadd.f32 %v1595, %v1644
    %v1740 = vadd.f32 %v1596, %v1644
    %v1741 = vadd.f32 %v1597, %v1644
    %v1742 = vadd.f32 %v1598, %v1644
    %v1743 = vadd.f32 %v1599, %v1644
    %v1744 = vadd.f32 %v1600, %v1644
    %v1745 = vadd.f32 %v1601, %v1644
    %v1746 = vadd.f32 %v1602, %v1648
    %v1747 = vadd.f32 %v1603, %v1648
    %v1748 = vadd.f32 %v1604, %v1648
    %v1749 = vadd.f32 %v1605, %v1648
    %v1750 = vadd.f32 %v1606, %v1648
    %v1751 = vadd.f32 %v1607, %v1648
    %v1752 = vadd.f32 %v1608, %v1648
    %v1753 = vadd.f32 %v1609, %v1648
    %v1754 = vadd.f32 %v1610, %v1648
    %v1755 = vadd.f32 %v1611, %v1648
    %v1756 = vadd.f32 %v1612, %v1648
    %v1757 = vadd.f32 %v1613, %v1648
    %v1758 = vadd.f32 %v1614, %v1648
    %v1759 = vadd.f32 %v1615, %v1648
    %v1760 = vadd.f32 %v1616, %v1648
    %v1761 = vadd.f32 %v1617, %v1648
    %v1762 = vadd.f32 %v1618, %v1648
    %v1763 = vadd.f32 %v1619, %v1648
    %v1764 = vadd.f32 %v1620, %v1648
    %v1765 = vadd.f32 %v1621, %v1648
    %v1766 = vadd.f32 %v1622, %v1648
    %v1767 = vadd.f32 %v1623, %v1648
    %v1768 = vadd.f32 %v1624, %v1648
    %v1769 = vadd.f32 %v1625, %v1648
    %v1770 = vadd.f32 %v1626, %v1648
    %v1771 = vadd.f32 %v1627, %v1648
    %v1772 = vadd.f32 %v1628, %v1648
    %v1773 = vadd.f32 %v1629, %v1648
    %v1774 = vadd.f32 %v1630, %v1648
    %v1775 = vadd.f32 %v1631, %v1648
    %v1776 = vadd.f32 %v1632, %v1648
    %v1777 = vadd.f32 %v1633, %v1648
    %v1778 = vmax.f32 %v1090, 0.0
    %v1779 = vmax.f32 %v1091, 0.0
    %v1780 = vmax.f32 %v1092, 0.0
    %v1781 = vmax.f32 %v1093, 0.0
    %v1782 = vmax.f32 %v1094, 0.0
    %v1783 = vmax.f32 %v1095, 0.0
    %v1784 = vmax.f32 %v1096, 0.0
    %v1785 = vmax.f32 %v1097, 0.0
    %v1786 = vmax.f32 %v1098, 0.0
    %v1787 = vmax.f32 %v1099, 0.0
    %v1788 = vmax.f32 %v1100, 0.0
    %v1789 = vmax.f32 %v1101, 0.0
    %v1790 = vmax.f32 %v1102, 0.0
    %v1791 = vmax.f32 %v1103, 0.0
    %v1792 = vmax.f32 %v1104, 0.0
    %v1793 = vmax.f32 %v1105, 0.0
    %v1794 = vmax.f32 %v1106, 0.0
    %v1795 = vmax.f32 %v1107, 0.0
    %v1796 = vmax.f32 %v1108, 0.0
    %v1797 = vmax.f32 %v1109, 0.0
    %v1798 = vmax.f32 %v1110, 0.0
    %v1799 = vmax.f32 %v1111, 0.0
    %v1800 = vmax.f32 %v1112, 0.0
    %v1801 = vmax.f32 %v1113, 0.0
    %v1802 = vmax.f32 %v1114, 0.0
    %v1803 = vmax.f32 %v1115, 0.0
    %v1804 = vmax.f32 %v1116, 0.0
    %v1805 = vmax.f32 %v1117, 0.0
    %v1806 = vmax.f32 %v1118, 0.0
    %v1807 = vmax.f32 %v1119, 0.0
    %v1808 = vmax.f32 %v1120, 0.0
    %v1809 = vmax.f32 %v1121, 0.0
    %v1810 = vmax.f32 %v1122, 0.0
    %v1811 = vmax.f32 %v1123, 0.0
    %v1812 = vmax.f32 %v1124, 0.0
    %v1813 = vmax.f32 %v1125, 0.0
    %v1814 = vmax.f32 %v1126, 0.0
    %v1815 = vmax.f32 %v1127, 0.0
    %v1816 = vmax.f32 %v1128, 0.0
    %v1817 = vmax.f32 %v1129, 0.0
    %v1818 = vmax.f32 %v1130, 0.0
    %v1819 = vmax.f32 %v1131, 0.0
    %v1820 = vmax.f32 %v1132, 0.0
    %v1821 = vmax.f32 %v1133, 0.0
    %v1822 = vmax.f32 %v1134, 0.0
    %v1823 = vmax.f32 %v1135, 0.0
    %v1824 = vmax.f32 %v1136, 0.0
    %v1825 = vmax.f32 %v1137, 0.0
    %v1826 = vmax.f32 %v1138, 0.0
    %v1827 = vmax.f32 %v1139, 0.0
    %v1828 = vmax.f32 %v1140, 0.0
    %v1829 = vmax.f32 %v1141, 0.0
    %v1830 = vmax.f32 %v1142, 0.0
    %v1831 = vmax.f32 %v1143, 0.0
    %v1832 = vmax.f32 %v1144, 0.0
    %v1833 = vmax.f32 %v1145, 0.0
    %v1834 = vmax.f32 %v1146, 0.0
    %v1835 = vmax.f32 %v1147, 0.0
    %v1836 = vmax.f32 %v1148, 0.0
    %v1837 = vmax.f32 %v1149, 0.0
    %v1838 = vmax.f32 %v1150, 0.0
    %v1839 = vmax.f32 %v1151, 0.0
    %v1840 = vmax.f32 %v1152, 0.0
    %v1841 = vmax.f32 %v1153, 0.0
    %v1842 = vmax.f32 %v1154, 0.0
    %v1843 = vmax.f32 %v1155, 0.0
    %v1844 = vmax.f32 %v1156, 0.0
    %v1845 = vmax.f32 %v1157, 0.0
    %v1846 = vmax.f32 %v1158, 0.0
    %v1847 = vmax.f32 %v1159, 0.0
    %v1848 = vmax.f32 %v1160, 0.0
    %v1849 = vmax.f32 %v1161, 0.0
    %v1850 = vmax.f32 %v1162, 0.0
    %v1851 = vmax.f32 %v1163, 0.0
    %v1852 = vmax.f32 %v1164, 0.0
    %v1853 = vmax.f32 %v1165, 0.0
    %v1854 = vmax.f32 %v1166, 0.0
    %v1855 = vmax.f32 %v1167, 0.0
    %v1856 = vmax.f32 %v1168, 0.0
    %v1857 = vmax.f32 %v1169, 0.0
    %v1858 = vmax.f32 %v1170, 0.0
    %v1859 = vmax.f32 %v1171, 0.0
    %v1860 = vmax.f32 %v1172, 0.0
    %v1861 = vmax.f32 %v1173, 0.0
    %v1862 = vmax.f32 %v1174, 0.0
    %v1863 = vmax.f32 %v1175, 0.0
    %v1864 = vmax.f32 %v1176, 0.0
    %v1865 = vmax.f32 %v1177, 0.0
    %v1866 = vmax.f32 %v1178, 0.0
    %v1867 = vmax.f32 %v1179, 0.0
    %v1868 = vmax.f32 %v1180, 0.0
    %v1869 = vmax.f32 %v1181, 0.0
    %v1870 = vmax.f32 %v1182, 0.0
    %v1871 = vmax.f32 %v1183, 0.0
    %v1872 = vmax.f32 %v1184, 0.0
    %v1873 = vmax.f32 %v1185, 0.0
    %v1874 = vmax.f32 %v1186, 0.0
    %v1875 = vmax.f32 %v1187, 0.0
    %v1876 = vmax.f32 %v1188, 0.0
    %v1877 = vmax.f32 %v1189, 0.0
    %v1878 = vmax.f32 %v1190, 0.0
    %v1879 = vmax.f32 %v1191, 0.0
    %v1880 = vmax.f32 %v1192, 0.0
    %v1881 = vmax.f32 %v1193, 0.0
    %v1882 = vmax.f32 %v1194, 0.0
    %v1883 = vmax.f32 %v1195, 0.0
    %v1884 = vmax.f32 %v1196, 0.0
    %v1885 = vmax.f32 %v1197, 0.0
    %v1886 = vmax.f32 %v1198, 0.0
    %v1887 = vmax.f32 %v1199, 0.0
    %v1888 = vmax.f32 %v1200, 0.0
    %v1889 = vmax.f32 %v1201, 0.0
    %v1890 = vmax.f32 %v1202, 0.0
    %v1891 = vmax.f32 %v1203, 0.0
    %v1892 = vmax.f32 %v1204, 0.0
    %v1893 = vmax.f32 %v1205, 0.0
    %v1894 = vmax.f32 %v1206, 0.0
    %v1895 = vmax.f32 %v1207, 0.0
    %v1896 = vmax.f32 %v1208, 0.0
    %v1897 = vmax.f32 %v1209, 0.0
    %v1898 = vmax.f32 %v1210, 0.0
    %v1899 = vmax.f32 %v1211, 0.0
    %v1900 = vmax.f32 %v1212, 0.0
    %v1901 = vmax.f32 %v1213, 0.0
    %v1902 = vmax.f32 %v1214, 0.0
    %v1903 = vmax.f32 %v1215, 0.0
    %v1904 = vmax.f32 %v1216, 0.0
    %v1905 = vmax.f32 %v1217, 0.0
    %v1906 = vld [vmem:[#allocation5] sm:$0xf]
    %v1907 = vld [vmem:[#allocation5 + $0x4] sm:$0xf]
    %v1908 = vld [vmem:[#allocation5 + $0x8] sm:$0xf]
    %v1909 = vld [vmem:[#allocation5 + $0xc] sm:$0xf]
    %v1910 = vpack.c.bf16 %v1810, %v1778
    %v1911 = vpack.c.bf16 %v1811, %v1779
    %v1912 = vpack.c.bf16 %v1812, %v1780
    %v1913 = vpack.c.bf16 %v1813, %v1781
    %v1914 = vpack.c.bf16 %v1814, %v1782
    %v1915 = vpack.c.bf16 %v1815, %v1783
    %v1916 = vpack.c.bf16 %v1816, %v1784
    %v1917 = vpack.c.bf16 %v1817, %v1785
    %v1918 = vpack.c.bf16 %v1818, %v1786
    %v1919 = vpack.c.bf16 %v1819, %v1787
    %v1920 = vpack.c.bf16 %v1820, %v1788
    %v1921 = vpack.c.bf16 %v1821, %v1789
    %v1922 = vpack.c.bf16 %v1822, %v1790
    %v1923 = vpack.c.bf16 %v1823, %v1791
    %v1924 = vpack.c.bf16 %v1824, %v1792
    %v1925 = vpack.c.bf16 %v1825, %v1793
    %v1926 = vpack.c.bf16 %v1826, %v1794
    %v1927 = vpack.c.bf16 %v1827, %v1795
    %v1928 = vpack.c.bf16 %v1828, %v1796
    %v1929 = vpack.c.bf16 %v1829, %v1797
    %v1930 = vpack.c.bf16 %v1830, %v1798
    %v1931 = vpack.c.bf16 %v1831, %v1799
    %v1932 = vpack.c.bf16 %v1832, %v1800
    %v1933 = vpack.c.bf16 %v1833, %v1801
    %v1934 = vpack.c.bf16 %v1834, %v1802
    %v1935 = vpack.c.bf16 %v1835, %v1803
    %v1936 = vpack.c.bf16 %v1836, %v1804
    %v1937 = vpack.c.bf16 %v1837, %v1805
    %v1938 = vpack.c.bf16 %v1838, %v1806
    %v1939 = vpack.c.bf16 %v1839, %v1807
    %v1940 = vpack.c.bf16 %v1840, %v1808
    %v1941 = vpack.c.bf16 %v1841, %v1809
    %v1942 = vpack.c.bf16 %v1874, %v1842
    %v1943 = vpack.c.bf16 %v1875, %v1843
    %v1944 = vpack.c.bf16 %v1876, %v1844
    %v1945 = vpack.c.bf16 %v1877, %v1845
    %v1946 = vpack.c.bf16 %v1878, %v1846
    %v1947 = vpack.c.bf16 %v1879, %v1847
    %v1948 = vpack.c.bf16 %v1880, %v1848
    %v1949 = vpack.c.bf16 %v1881, %v1849
    %v1950 = vpack.c.bf16 %v1882, %v1850
    %v1951 = vpack.c.bf16 %v1883, %v1851
    %v1952 = vpack.c.bf16 %v1884, %v1852
    %v1953 = vpack.c.bf16 %v1885, %v1853
    %v1954 = vpack.c.bf16 %v1886, %v1854
    %v1955 = vpack.c.bf16 %v1887, %v1855
    %v1956 = vpack.c.bf16 %v1888, %v1856
    %v1957 = vpack.c.bf16 %v1889, %v1857
    %v1958 = vpack.c.bf16 %v1890, %v1858
    %v1959 = vpack.c.bf16 %v1891, %v1859
    %v1960 = vpack.c.bf16 %v1892, %v1860
    %v1961 = vpack.c.bf16 %v1893, %v1861
    %v1962 = vpack.c.bf16 %v1894, %v1862
    %v1963 = vpack.c.bf16 %v1895, %v1863
    %v1964 = vpack.c.bf16 %v1896, %v1864
    %v1965 = vpack.c.bf16 %v1897, %v1865
    %v1966 = vpack.c.bf16 %v1898, %v1866
    %v1967 = vpack.c.bf16 %v1899, %v1867
    %v1968 = vpack.c.bf16 %v1900, %v1868
    %v1969 = vpack.c.bf16 %v1901, %v1869
    %v1970 = vpack.c.bf16 %v1902, %v1870
    %v1971 = vpack.c.bf16 %v1903, %v1871
    %v1972 = vpack.c.bf16 %v1904, %v1872
    %v1973 = vpack.c.bf16 %v1905, %v1873
    %1974 = vset.pattern.permute.xlu0 5
    %1975 = vperm.xlu0 %1974, %v66
    %v1976 = vpop.permute.xlu0 %1975
    %1978 = vset.pattern.permute.xlu0 5
    %1979 = vperm.xlu0 %1978, %v67
    %v1980 = vpop.permute.xlu0 %1979
    %1982 = vset.pattern.permute.xlu0 5
    %1983 = vperm.xlu0 %1982, %v68
    %v1984 = vpop.permute.xlu0 %1983
    %1986 = vset.pattern.permute.xlu0 5
    %1987 = vperm.xlu0 %1986, %v69
    %v1988 = vpop.permute.xlu0 %1987
    %v1994 = vunpack.c.l.b16 %v1906
    %v1995 = vunpack.c.l.b16 %v1907
    %v1996 = vunpack.c.l.b16 %v1908
    %v1997 = vunpack.c.l.b16 %v1909
    %v1998 = vpack.c.b16 %v1995, %v1994
    %v1999 = vpack.c.b16 %v1997, %v1996
    %vm2000 = vcmask 261120
    %v2002 = vsel %vm2000, %v1998, 0
    %v2005 = vsel %vm2000, %v1999, 0
    %2007 = vmatprep.subr.bf16.mxu0 %v1911
    %2008 = vmatpush1.bf16.msra.mxu0 %v1910
    %2009 = vmatprep.subr.bf16.mxu0 %v1943
    %2010 = vmatpush1.bf16.msra.mxu0 %v1942
    %2011 = vmatprep.subr.bf16.mxu0 0
    %2012 = vmatpush1.bf16.msra.mxu0 0
    %2013 = vmatprep.subr.bf16.mxu0 0
    %2014 = vmatpush1.bf16.msra.mxu0 0
    %2015 = vmatprep.subr.bf16.mxu0 0
    %2016 = vmatpush1.bf16.msra.mxu0 0
    %2017 = vmatprep.subr.bf16.mxu0 0
    %2018 = vmatpush1.bf16.msra.mxu0 0
    %2019 = vmatprep.subr.bf16.mxu0 0
    %2020 = vmatpush1.bf16.msra.mxu0 0
    %2021 = vmatprep.subr.bf16.mxu0 0
    %2022 = vmatpush1.bf16.msra.mxu0 0
    %2023 = vmatprep.subr.bf16.mxu0 0
    %2024 = vmatpush1.bf16.msra.mxu0 0
    %2025 = vmatprep.subr.bf16.mxu0 0
    %2026 = vmatpush1.bf16.msra.mxu0 0
    %2027 = vmatprep.subr.bf16.mxu0 0
    %2028 = vmatpush1.bf16.msra.mxu0 0
    %2029 = vmatprep.subr.bf16.mxu0 0
    %2030 = vmatpush1.bf16.msra.mxu0 0
    %2031 = vmatprep.subr.bf16.mxu0 0
    %2032 = vmatpush1.bf16.msra.mxu0 0
    %2033 = vmatprep.subr.bf16.mxu0 0
    %2034 = vmatpush1.bf16.msra.mxu0 0
    %2035 = vmatprep.subr.bf16.mxu0 0
    %2036 = vmatpush1.bf16.msra.mxu0 0
    %2037 = vmatprep.subr.bf16.mxu0 0
    %2038 = vmatpush1.bf16.msra.mxu0 0
    %2039 = vmatprep.mubr.bf16.mxu0 0
    %2040 = vmatmul.mubr.bf16.gmra.mrb[0].mxu0 %v2002
    %v2041 = vpop.f32.mrb[0].mxu0
    %v2042 = vadd.f32 %v1976, %v2041
    %v2043 = vpop.f32.mrb[0].mxu0
    %v2044 = vadd.f32 %v1976, %v2043
    %v2045 = vpop.f32.mrb[0].mxu0
    %v2046 = vadd.f32 %v1980, %v2045
    %v2047 = vpop.f32.mrb[0].mxu0
    %v2048 = vadd.f32 %v1980, %v2047
    %2049 = vmatprep.mubr.bf16.mxu0 0
    %2050 = vmatmul.mubr.bf16.gmra.mrb[0].mxu0 %v2005
    %v2051 = vpop.f32.mrb[0].mxu0
    %v2052 = vadd.f32 %v1984, %v2051
    %v2053 = vpop.f32.mrb[0].mxu0
    %v2054 = vadd.f32 %v1984, %v2053
    %v2055 = vpop.f32.mrb[0].mxu0
    %v2056 = vadd.f32 %v1988, %v2055
    %v2057 = vpop.f32.mrb[0].mxu0
    %v2058 = vadd.f32 %v1988, %v2057
    %2059 = vdwg.mxu0
    %2060 = vmatprep.subr.bf16.mxu0 %v1913
    %2061 = vmatpush1.bf16.msra.mxu0 %v1912
    %2062 = vmatprep.subr.bf16.mxu0 %v1945
    %2063 = vmatpush1.bf16.msra.mxu0 %v1944
    %2064 = vmatprep.subr.bf16.mxu0 0
    %2065 = vmatpush1.bf16.msra.mxu0 0
    %2066 = vmatprep.subr.bf16.mxu0 0
    %2067 = vmatpush1.bf16.msra.mxu0 0
    %2068 = vmatprep.subr.bf16.mxu0 0
    %2069 = vmatpush1.bf16.msra.mxu0 0
    %2070 = vmatprep.subr.bf16.mxu0 0
    %2071 = vmatpush1.bf16.msra.mxu0 0
    %2072 = vmatprep.subr.bf16.mxu0 0
    %2073 = vmatpush1.bf16.msra.mxu0 0
    %2074 = vmatprep.subr.bf16.mxu0 0
    %2075 = vmatpush1.bf16.msra.mxu0 0
    %2076 = vmatprep.subr.bf16.mxu0 0
    %2077 = vmatpush1.bf16.msra.mxu0 0
    %2078 = vmatprep.subr.bf16.mxu0 0
    %2079 = vmatpush1.bf16.msra.mxu0 0
    %2080 = vmatprep.subr.bf16.mxu0 0
    %2081 = vmatpush1.bf16.msra.mxu0 0
    %2082 = vmatprep.subr.bf16.mxu0 0
    %2083 = vmatpush1.bf16.msra.mxu0 0
    %2084 = vmatprep.subr.bf16.mxu0 0
    %2085 = vmatpush1.bf16.msra.mxu0 0
    %2086 = vmatprep.subr.bf16.mxu0 0
    %2087 = vmatpush1.bf16.msra.mxu0 0
    %2088 = vmatprep.subr.bf16.mxu0 0
    %2089 = vmatpush1.bf16.msra.mxu0 0
    %2090 = vmatprep.subr.bf16.mxu0 0
    %2091 = vmatpush1.bf16.msra.mxu0 0
    %2092 = vmatprep.mubr.bf16.mxu0 0
    %2093 = vmatmul.mubr.bf16.gmra.mrb[0].mxu0 %v2002
    %v2094 = vpop.f32.mrb[0].mxu0
    %v2095 = vadd.f32 %v1976, %v2094
    %v2096 = vpop.f32.mrb[0].mxu0
    %v2097 = vadd.f32 %v1976, %v2096
    %v2098 = vpop.f32.mrb[0].mxu0
    %v2099 = vadd.f32 %v1980, %v2098
    %v2100 = vpop.f32.mrb[0].mxu0
    %v2101 = vadd.f32 %v1980, %v2100
    %2102 = vmatprep.mubr.bf16.mxu0 0
    %2103 = vmatmul.mubr.bf16.gmra.mrb[0].mxu0 %v2005
    %v2104 = vpop.f32.mrb[0].mxu0
    %v2105 = vadd.f32 %v1984, %v2104
    %v2106 = vpop.f32.mrb[0].mxu0
    %v2107 = vadd.f32 %v1984, %v2106
    %v2108 = vpop.f32.mrb[0].mxu0
    %v2109 = vadd.f32 %v1988, %v2108
    %v2110 = vpop.f32.mrb[0].mxu0
    %v2111 = vadd.f32 %v1988, %v2110
    %2112 = vdwg.mxu0
    %2113 = vmatprep.subr.bf16.mxu0 %v1915
    %2114 = vmatpush1.bf16.msra.mxu0 %v1914
    %2115 = vmatprep.subr.bf16.mxu0 %v1947
    %2116 = vmatpush1.bf16.msra.mxu0 %v1946
    %2117 = vmatprep.subr.bf16.mxu0 0
    %2118 = vmatpush1.bf16.msra.mxu0 0
    %2119 = vmatprep.subr.bf16.mxu0 0
    %2120 = vmatpush1.bf16.msra.mxu0 0
    %2121 = vmatprep.subr.bf16.mxu0 0
    %2122 = vmatpush1.bf16.msra.mxu0 0
    %2123 = vmatprep.subr.bf16.mxu0 0
    %2124 = vmatpush1.bf16.msra.mxu0 0
    %2125 = vmatprep.subr.bf16.mxu0 0
    %2126 = vmatpush1.bf16.msra.mxu0 0
    %2127 = vmatprep.subr.bf16.mxu0 0
    %2128 = vmatpush1.bf16.msra.mxu0 0
    %2129 = vmatprep.subr.bf16.mxu0 0
    %2130 = vmatpush1.bf16.msra.mxu0 0
    %2131 = vmatprep.subr.bf16.mxu0 0
    %2132 = vmatpush1.bf16.msra.mxu0 0
    %2133 = vmatprep.subr.bf16.mxu0 0
    %2134 = vmatpush1.bf16.msra.mxu0 0
    %2135 = vmatprep.subr.bf16.mxu0 0
    %2136 = vmatpush1.bf16.msra.mxu0 0
    %2137 = vmatprep.subr.bf16.mxu0 0
    %2138 = vmatpush1.bf16.msra.mxu0 0
    %2139 = vmatprep.subr.bf16.mxu0 0
    %2140 = vmatpush1.bf16.msra.mxu0 0
    %2141 = vmatprep.subr.bf16.mxu0 0
    %2142 = vmatpush1.bf16.msra.mxu0 0
    %2143 = vmatprep.subr.bf16.mxu0 0
    %2144 = vmatpush1.bf16.msra.mxu0 0
    %2145 = vmatprep.mubr.bf16.mxu0 0
    %2146 = vmatmul.mubr.bf16.gmra.mrb[0].mxu0 %v2002
    %v2147 = vpop.f32.mrb[0].mxu0
    %v2148 = vadd.f32 %v1976, %v2147
    %v2149 = vpop.f32.mrb[0].mxu0
    %v2150 = vadd.f32 %v1976, %v2149
    %v2151 = vpop.f32.mrb[0].mxu0
    %v2152 = vadd.f32 %v1980, %v2151
    %v2153 = vpop.f32.mrb[0].mxu0
    %v2154 = vadd.f32 %v1980, %v2153
    %2155 = vmatprep.mubr.bf16.mxu0 0
    %2156 = vmatmul.mubr.bf16.gmra.mrb[0].mxu0 %v2005
    %v2157 = vpop.f32.mrb[0].mxu0
    %v2158 = vadd.f32 %v1984, %v2157
    %v2159 = vpop.f32.mrb[0].mxu0
    %v2160 = vadd.f32 %v1984, %v2159
    %v2161 = vpop.f32.mrb[0].mxu0
    %v2162 = vadd.f32 %v1988, %v2161
    %v2163 = vpop.f32.mrb[0].mxu0
    %v2164 = vadd.f32 %v1988, %v2163
    %2165 = vdwg.mxu0
    %2166 = vmatprep.subr.bf16.mxu0 %v1917
    %2167 = vmatpush1.bf16.msra.mxu0 %v1916
    %2168 = vmatprep.subr.bf16.mxu0 %v1949
    %2169 = vmatpush1.bf16.msra.mxu0 %v1948
    %2170 = vmatprep.subr.bf16.mxu0 0
    %2171 = vmatpush1.bf16.msra.mxu0 0
    %2172 = vmatprep.subr.bf16.mxu0 0
    %2173 = vmatpush1.bf16.msra.mxu0 0
    %2174 = vmatprep.subr.bf16.mxu0 0
    %2175 = vmatpush1.bf16.msra.mxu0 0
    %2176 = vmatprep.subr.bf16.mxu0 0
    %2177 = vmatpush1.bf16.msra.mxu0 0
    %2178 = vmatprep.subr.bf16.mxu0 0
    %2179 = vmatpush1.bf16.msra.mxu0 0
    %2180 = vmatprep.subr.bf16.mxu0 0
    %2181 = vmatpush1.bf16.msra.mxu0 0
    %2182 = vmatprep.subr.bf16.mxu0 0
    %2183 = vmatpush1.bf16.msra.mxu0 0
    %2184 = vmatprep.subr.bf16.mxu0 0
    %2185 = vmatpush1.bf16.msra.mxu0 0
    %2186 = vmatprep.subr.bf16.mxu0 0
    %2187 = vmatpush1.bf16.msra.mxu0 0
    %2188 = vmatprep.subr.bf16.mxu0 0
    %2189 = vmatpush1.bf16.msra.mxu0 0
    %2190 = vmatprep.subr.bf16.mxu0 0
    %2191 = vmatpush1.bf16.msra.mxu0 0
    %2192 = vmatprep.subr.bf16.mxu0 0
    %2193 = vmatpush1.bf16.msra.mxu0 0
    %2194 = vmatprep.subr.bf16.mxu0 0
    %2195 = vmatpush1.bf16.msra.mxu0 0
    %2196 = vmatprep.subr.bf16.mxu0 0
    %2197 = vmatpush1.bf16.msra.mxu0 0
    %2198 = vmatprep.mubr.bf16.mxu0 0
    %2199 = vmatmul.mubr.bf16.gmra.mrb[0].mxu0 %v2002
    %v2200 = vpop.f32.mrb[0].mxu0
    %v2201 = vadd.f32 %v1976, %v2200
    %v2202 = vpop.f32.mrb[0].mxu0
    %v2203 = vadd.f32 %v1976, %v2202
    %v2204 = vpop.f32.mrb[0].mxu0
    %v2205 = vadd.f32 %v1980, %v2204
    %v2206 = vpop.f32.mrb[0].mxu0
    %v2207 = vadd.f32 %v1980, %v2206
    %2208 = vmatprep.mubr.bf16.mxu0 0
    %2209 = vmatmul.mubr.bf16.gmra.mrb[0].mxu0 %v2005
    %v2210 = vpop.f32.mrb[0].mxu0
    %v2211 = vadd.f32 %v1984, %v2210
    %v2212 = vpop.f32.mrb[0].mxu0
    %v2213 = vadd.f32 %v1984, %v2212
    %v2214 = vpop.f32.mrb[0].mxu0
    %v2215 = vadd.f32 %v1988, %v2214
    %v2216 = vpop.f32.mrb[0].mxu0
    %v2217 = vadd.f32 %v1988, %v2216
    %2218 = vdwg.mxu0
    %2219 = vmatprep.subr.bf16.mxu0 %v1919
    %2220 = vmatpush1.bf16.msra.mxu0 %v1918
    %2221 = vmatprep.subr.bf16.mxu0 %v1951
    %2222 = vmatpush1.bf16.msra.mxu0 %v1950
    %2223 = vmatprep.subr.bf16.mxu0 0
    %2224 = vmatpush1.bf16.msra.mxu0 0
    %2225 = vmatprep.subr.bf16.mxu0 0
    %2226 = vmatpush1.bf16.msra.mxu0 0
    %2227 = vmatprep.subr.bf16.mxu0 0
    %2228 = vmatpush1.bf16.msra.mxu0 0
    %2229 = vmatprep.subr.bf16.mxu0 0
    %2230 = vmatpush1.bf16.msra.mxu0 0
    %2231 = vmatprep.subr.bf16.mxu0 0
    %2232 = vmatpush1.bf16.msra.mxu0 0
    %2233 = vmatprep.subr.bf16.mxu0 0
    %2234 = vmatpush1.bf16.msra.mxu0 0
    %2235 = vmatprep.subr.bf16.mxu0 0
    %2236 = vmatpush1.bf16.msra.mxu0 0
    %2237 = vmatprep.subr.bf16.mxu0 0
    %2238 = vmatpush1.bf16.msra.mxu0 0
    %2239 = vmatprep.subr.bf16.mxu0 0
    %2240 = vmatpush1.bf16.msra.mxu0 0
    %2241 = vmatprep.subr.bf16.mxu0 0
    %2242 = vmatpush1.bf16.msra.mxu0 0
    %2243 = vmatprep.subr.bf16.mxu0 0
    %2244 = vmatpush1.bf16.msra.mxu0 0
    %2245 = vmatprep.subr.bf16.mxu0 0
    %2246 = vmatpush1.bf16.msra.mxu0 0
    %2247 = vmatprep.subr.bf16.mxu0 0
    %2248 = vmatpush1.bf16.msra.mxu0 0
    %2249 = vmatprep.subr.bf16.mxu0 0
    %2250 = vmatpush1.bf16.msra.mxu0 0
    %2251 = vmatprep.mubr.bf16.mxu0 0
    %2252 = vmatmul.mubr.bf16.gmra.mrb[0].mxu0 %v2002
    %v2253 = vpop.f32.mrb[0].mxu0
    %v2254 = vadd.f32 %v1976, %v2253
    %v2255 = vpop.f32.mrb[0].mxu0
    %v2256 = vadd.f32 %v1976, %v2255
    %v2257 = vpop.f32.mrb[0].mxu0
    %v2258 = vadd.f32 %v1980, %v2257
    %v2259 = vpop.f32.mrb[0].mxu0
    %v2260 = vadd.f32 %v1980, %v2259
    %2261 = vmatprep.mubr.bf16.mxu0 0
    %2262 = vmatmul.mubr.bf16.gmra.mrb[0].mxu0 %v2005
    %v2263 = vpop.f32.mrb[0].mxu0
    %v2264 = vadd.f32 %v1984, %v2263
    %v2265 = vpop.f32.mrb[0].mxu0
    %v2266 = vadd.f32 %v1984, %v2265
    %v2267 = vpop.f32.mrb[0].mxu0
    %v2268 = vadd.f32 %v1988, %v2267
    %v2269 = vpop.f32.mrb[0].mxu0
    %v2270 = vadd.f32 %v1988, %v2269
    %2271 = vdwg.mxu0
    %2272 = vmatprep.subr.bf16.mxu0 %v1921
    %2273 = vmatpush1.bf16.msra.mxu0 %v1920
    %2274 = vmatprep.subr.bf16.mxu0 %v1953
    %2275 = vmatpush1.bf16.msra.mxu0 %v1952
    %2276 = vmatprep.subr.bf16.mxu0 0
    %2277 = vmatpush1.bf16.msra.mxu0 0
    %2278 = vmatprep.subr.bf16.mxu0 0
    %2279 = vmatpush1.bf16.msra.mxu0 0
    %2280 = vmatprep.subr.bf16.mxu0 0
    %2281 = vmatpush1.bf16.msra.mxu0 0
    %2282 = vmatprep.subr.bf16.mxu0 0
    %2283 = vmatpush1.bf16.msra.mxu0 0
    %2284 = vmatprep.subr.bf16.mxu0 0
    %2285 = vmatpush1.bf16.msra.mxu0 0
    %2286 = vmatprep.subr.bf16.mxu0 0
    %2287 = vmatpush1.bf16.msra.mxu0 0
    %2288 = vmatprep.subr.bf16.mxu0 0
    %2289 = vmatpush1.bf16.msra.mxu0 0
    %2290 = vmatprep.subr.bf16.mxu0 0
    %2291 = vmatpush1.bf16.msra.mxu0 0
    %2292 = vmatprep.subr.bf16.mxu0 0
    %2293 = vmatpush1.bf16.msra.mxu0 0
    %2294 = vmatprep.subr.bf16.mxu0 0
    %2295 = vmatpush1.bf16.msra.mxu0 0
    %2296 = vmatprep.subr.bf16.mxu0 0
    %2297 = vmatpush1.bf16.msra.mxu0 0
    %2298 = vmatprep.subr.bf16.mxu0 0
    %2299 = vmatpush1.bf16.msra.mxu0 0
    %2300 = vmatprep.subr.bf16.mxu0 0
    %2301 = vmatpush1.bf16.msra.mxu0 0
    %2302 = vmatprep.subr.bf16.mxu0 0
    %2303 = vmatpush1.bf16.msra.mxu0 0
    %2304 = vmatprep.mubr.bf16.mxu0 0
    %2305 = vmatmul.mubr.bf16.gmra.mrb[0].mxu0 %v2002
    %v2306 = vpop.f32.mrb[0].mxu0
    %v2307 = vadd.f32 %v1976, %v2306
    %v2308 = vpop.f32.mrb[0].mxu0
    %v2309 = vadd.f32 %v1976, %v2308
    %v2310 = vpop.f32.mrb[0].mxu0
    %v2311 = vadd.f32 %v1980, %v2310
    %v2312 = vpop.f32.mrb[0].mxu0
    %v2313 = vadd.f32 %v1980, %v2312
    %2314 = vmatprep.mubr.bf16.mxu0 0
    %2315 = vmatmul.mubr.bf16.gmra.mrb[0].mxu0 %v2005
    %v2316 = vpop.f32.mrb[0].mxu0
    %v2317 = vadd.f32 %v1984, %v2316
    %v2318 = vpop.f32.mrb[0].mxu0
    %v2319 = vadd.f32 %v1984, %v2318
    %v2320 = vpop.f32.mrb[0].mxu0
    %v2321 = vadd.f32 %v1988, %v2320
    %v2322 = vpop.f32.mrb[0].mxu0
    %v2323 = vadd.f32 %v1988, %v2322
    %2324 = vdwg.mxu0
    %2325 = vmatprep.subr.bf16.mxu0 %v1923
    %2326 = vmatpush1.bf16.msra.mxu0 %v1922
    %2327 = vmatprep.subr.bf16.mxu0 %v1955
    %2328 = vmatpush1.bf16.msra.mxu0 %v1954
    %2329 = vmatprep.subr.bf16.mxu0 0
    %2330 = vmatpush1.bf16.msra.mxu0 0
    %2331 = vmatprep.subr.bf16.mxu0 0
    %2332 = vmatpush1.bf16.msra.mxu0 0
    %2333 = vmatprep.subr.bf16.mxu0 0
    %2334 = vmatpush1.bf16.msra.mxu0 0
    %2335 = vmatprep.subr.bf16.mxu0 0
    %2336 = vmatpush1.bf16.msra.mxu0 0
    %2337 = vmatprep.subr.bf16.mxu0 0
    %2338 = vmatpush1.bf16.msra.mxu0 0
    %2339 = vmatprep.subr.bf16.mxu0 0
    %2340 = vmatpush1.bf16.msra.mxu0 0
    %2341 = vmatprep.subr.bf16.mxu0 0
    %2342 = vmatpush1.bf16.msra.mxu0 0
    %2343 = vmatprep.subr.bf16.mxu0 0
    %2344 = vmatpush1.bf16.msra.mxu0 0
    %2345 = vmatprep.subr.bf16.mxu0 0
    %2346 = vmatpush1.bf16.msra.mxu0 0
    %2347 = vmatprep.subr.bf16.mxu0 0
    %2348 = vmatpush1.bf16.msra.mxu0 0
    %2349 = vmatprep.subr.bf16.mxu0 0
    %2350 = vmatpush1.bf16.msra.mxu0 0
    %2351 = vmatprep.subr.bf16.mxu0 0
    %2352 = vmatpush1.bf16.msra.mxu0 0
    %2353 = vmatprep.subr.bf16.mxu0 0
    %2354 = vmatpush1.bf16.msra.mxu0 0
    %2355 = vmatprep.subr.bf16.mxu0 0
    %2356 = vmatpush1.bf16.msra.mxu0 0
    %2357 = vmatprep.mubr.bf16.mxu0 0
    %2358 = vmatmul.mubr.bf16.gmra.mrb[0].mxu0 %v2002
    %v2359 = vpop.f32.mrb[0].mxu0
    %v2360 = vadd.f32 %v1976, %v2359
    %v2361 = vpop.f32.mrb[0].mxu0
    %v2362 = vadd.f32 %v1976, %v2361
    %v2363 = vpop.f32.mrb[0].mxu0
    %v2364 = vadd.f32 %v1980, %v2363
    %v2365 = vpop.f32.mrb[0].mxu0
    %v2366 = vadd.f32 %v1980, %v2365
    %2367 = vmatprep.mubr.bf16.mxu0 0
    %2368 = vmatmul.mubr.bf16.gmra.mrb[0].mxu0 %v2005
    %v2369 = vpop.f32.mrb[0].mxu0
    %v2370 = vadd.f32 %v1984, %v2369
    %v2371 = vpop.f32.mrb[0].mxu0
    %v2372 = vadd.f32 %v1984, %v2371
    %v2373 = vpop.f32.mrb[0].mxu0
    %v2374 = vadd.f32 %v1988, %v2373
    %v2375 = vpop.f32.mrb[0].mxu0
    %v2376 = vadd.f32 %v1988, %v2375
    %2377 = vdwg.mxu0
    %2378 = vmatprep.subr.bf16.mxu0 %v1925
    %2379 = vmatpush1.bf16.msra.mxu0 %v1924
    %2380 = vmatprep.subr.bf16.mxu0 %v1957
    %2381 = vmatpush1.bf16.msra.mxu0 %v1956
    %2382 = vmatprep.subr.bf16.mxu0 0
    %2383 = vmatpush1.bf16.msra.mxu0 0
    %2384 = vmatprep.subr.bf16.mxu0 0
    %2385 = vmatpush1.bf16.msra.mxu0 0
    %2386 = vmatprep.subr.bf16.mxu0 0
    %2387 = vmatpush1.bf16.msra.mxu0 0
    %2388 = vmatprep.subr.bf16.mxu0 0
    %2389 = vmatpush1.bf16.msra.mxu0 0
    %2390 = vmatprep.subr.bf16.mxu0 0
    %2391 = vmatpush1.bf16.msra.mxu0 0
    %2392 = vmatprep.subr.bf16.mxu0 0
    %2393 = vmatpush1.bf16.msra.mxu0 0
    %2394 = vmatprep.subr.bf16.mxu0 0
    %2395 = vmatpush1.bf16.msra.mxu0 0
    %2396 = vmatprep.subr.bf16.mxu0 0
    %2397 = vmatpush1.bf16.msra.mxu0 0
    %2398 = vmatprep.subr.bf16.mxu0 0
    %2399 = vmatpush1.bf16.msra.mxu0 0
    %2400 = vmatprep.subr.bf16.mxu0 0
    %2401 = vmatpush1.bf16.msra.mxu0 0
    %2402 = vmatprep.subr.bf16.mxu0 0
    %2403 = vmatpush1.bf16.msra.mxu0 0
    %2404 = vmatprep.subr.bf16.mxu0 0
    %2405 = vmatpush1.bf16.msra.mxu0 0
    %2406 = vmatprep.subr.bf16.mxu0 0
    %2407 = vmatpush1.bf16.msra.mxu0 0
    %2408 = vmatprep.subr.bf16.mxu0 0
    %2409 = vmatpush1.bf16.msra.mxu0 0
    %2410 = vmatprep.mubr.bf16.mxu0 0
    %2411 = vmatmul.mubr.bf16.gmra.mrb[0].mxu0 %v2002
    %v2412 = vpop.f32.mrb[0].mxu0
    %v2413 = vadd.f32 %v1976, %v2412
    %v2414 = vpop.f32.mrb[0].mxu0
    %v2415 = vadd.f32 %v1976, %v2414
    %v2416 = vpop.f32.mrb[0].mxu0
    %v2417 = vadd.f32 %v1980, %v2416
    %v2418 = vpop.f32.mrb[0].mxu0
    %v2419 = vadd.f32 %v1980, %v2418
    %2420 = vmatprep.mubr.bf16.mxu0 0
    %2421 = vmatmul.mubr.bf16.gmra.mrb[0].mxu0 %v2005
    %v2422 = vpop.f32.mrb[0].mxu0
    %v2423 = vadd.f32 %v1984, %v2422
    %v2424 = vpop.f32.mrb[0].mxu0
    %v2425 = vadd.f32 %v1984, %v2424
    %v2426 = vpop.f32.mrb[0].mxu0
    %v2427 = vadd.f32 %v1988, %v2426
    %v2428 = vpop.f32.mrb[0].mxu0
    %v2429 = vadd.f32 %v1988, %v2428
    %2430 = vdwg.mxu0
    %2431 = vmatprep.subr.bf16.mxu0 %v1927
    %2432 = vmatpush1.bf16.msra.mxu0 %v1926
    %2433 = vmatprep.subr.bf16.mxu0 %v1959
    %2434 = vmatpush1.bf16.msra.mxu0 %v1958
    %2435 = vmatprep.subr.bf16.mxu0 0
    %2436 = vmatpush1.bf16.msra.mxu0 0
    %2437 = vmatprep.subr.bf16.mxu0 0
    %2438 = vmatpush1.bf16.msra.mxu0 0
    %2439 = vmatprep.subr.bf16.mxu0 0
    %2440 = vmatpush1.bf16.msra.mxu0 0
    %2441 = vmatprep.subr.bf16.mxu0 0
    %2442 = vmatpush1.bf16.msra.mxu0 0
    %2443 = vmatprep.subr.bf16.mxu0 0
    %2444 = vmatpush1.bf16.msra.mxu0 0
    %2445 = vmatprep.subr.bf16.mxu0 0
    %2446 = vmatpush1.bf16.msra.mxu0 0
    %2447 = vmatprep.subr.bf16.mxu0 0
    %2448 = vmatpush1.bf16.msra.mxu0 0
    %2449 = vmatprep.subr.bf16.mxu0 0
    %2450 = vmatpush1.bf16.msra.mxu0 0
    %2451 = vmatprep.subr.bf16.mxu0 0
    %2452 = vmatpush1.bf16.msra.mxu0 0
    %2453 = vmatprep.subr.bf16.mxu0 0
    %2454 = vmatpush1.bf16.msra.mxu0 0
    %2455 = vmatprep.subr.bf16.mxu0 0
    %2456 = vmatpush1.bf16.msra.mxu0 0
    %2457 = vmatprep.subr.bf16.mxu0 0
    %2458 = vmatpush1.bf16.msra.mxu0 0
    %2459 = vmatprep.subr.bf16.mxu0 0
    %2460 = vmatpush1.bf16.msra.mxu0 0
    %2461 = vmatprep.subr.bf16.mxu0 0
    %2462 = vmatpush1.bf16.msra.mxu0 0
    %2463 = vmatprep.mubr.bf16.mxu0 0
    %2464 = vmatmul.mubr.bf16.gmra.mrb[0].mxu0 %v2002
    %v2465 = vpop.f32.mrb[0].mxu0
    %v2466 = vadd.f32 %v1976, %v2465
    %v2467 = vpop.f32.mrb[0].mxu0
    %v2468 = vadd.f32 %v1976, %v2467
    %v2469 = vpop.f32.mrb[0].mxu0
    %v2470 = vadd.f32 %v1980, %v2469
    %v2471 = vpop.f32.mrb[0].mxu0
    %v2472 = vadd.f32 %v1980, %v2471
    %2473 = vmatprep.mubr.bf16.mxu0 0
    %2474 = vmatmul.mubr.bf16.gmra.mrb[0].mxu0 %v2005
    %v2475 = vpop.f32.mrb[0].mxu0
    %v2476 = vadd.f32 %v1984, %v2475
    %v2477 = vpop.f32.mrb[0].mxu0
    %v2478 = vadd.f32 %v1984, %v2477
    %v2479 = vpop.f32.mrb[0].mxu0
    %v2480 = vadd.f32 %v1988, %v2479
    %v2481 = vpop.f32.mrb[0].mxu0
    %v2482 = vadd.f32 %v1988, %v2481
    %2483 = vdwg.mxu0
    %2484 = vmatprep.subr.bf16.mxu0 %v1929
    %2485 = vmatpush1.bf16.msra.mxu0 %v1928
    %2486 = vmatprep.subr.bf16.mxu0 %v1961
    %2487 = vmatpush1.bf16.msra.mxu0 %v1960
    %2488 = vmatprep.subr.bf16.mxu0 0
    %2489 = vmatpush1.bf16.msra.mxu0 0
    %2490 = vmatprep.subr.bf16.mxu0 0
    %2491 = vmatpush1.bf16.msra.mxu0 0
    %2492 = vmatprep.subr.bf16.mxu0 0
    %2493 = vmatpush1.bf16.msra.mxu0 0
    %2494 = vmatprep.subr.bf16.mxu0 0
    %2495 = vmatpush1.bf16.msra.mxu0 0
    %2496 = vmatprep.subr.bf16.mxu0 0
    %2497 = vmatpush1.bf16.msra.mxu0 0
    %2498 = vmatprep.subr.bf16.mxu0 0
    %2499 = vmatpush1.bf16.msra.mxu0 0
    %2500 = vmatprep.subr.bf16.mxu0 0
    %2501 = vmatpush1.bf16.msra.mxu0 0
    %2502 = vmatprep.subr.bf16.mxu0 0
    %2503 = vmatpush1.bf16.msra.mxu0 0
    %2504 = vmatprep.subr.bf16.mxu0 0
    %2505 = vmatpush1.bf16.msra.mxu0 0
    %2506 = vmatprep.subr.bf16.mxu0 0
    %2507 = vmatpush1.bf16.msra.mxu0 0
    %2508 = vmatprep.subr.bf16.mxu0 0
    %2509 = vmatpush1.bf16.msra.mxu0 0
    %2510 = vmatprep.subr.bf16.mxu0 0
    %2511 = vmatpush1.bf16.msra.mxu0 0
    %2512 = vmatprep.subr.bf16.mxu0 0
    %2513 = vmatpush1.bf16.msra.mxu0 0
    %2514 = vmatprep.subr.bf16.mxu0 0
    %2515 = vmatpush1.bf16.msra.mxu0 0
    %2516 = vmatprep.mubr.bf16.mxu0 0
    %2517 = vmatmul.mubr.bf16.gmra.mrb[0].mxu0 %v2002
    %v2518 = vpop.f32.mrb[0].mxu0
    %v2519 = vadd.f32 %v1976, %v2518
    %v2520 = vpop.f32.mrb[0].mxu0
    %v2521 = vadd.f32 %v1976, %v2520
    %v2522 = vpop.f32.mrb[0].mxu0
    %v2523 = vadd.f32 %v1980, %v2522
    %v2524 = vpop.f32.mrb[0].mxu0
    %v2525 = vadd.f32 %v1980, %v2524
    %2526 = vmatprep.mubr.bf16.mxu0 0
    %2527 = vmatmul.mubr.bf16.gmra.mrb[0].mxu0 %v2005
    %v2528 = vpop.f32.mrb[0].mxu0
    %v2529 = vadd.f32 %v1984, %v2528
    %v2530 = vpop.f32.mrb[0].mxu0
    %v2531 = vadd.f32 %v1984, %v2530
    %v2532 = vpop.f32.mrb[0].mxu0
    %v2533 = vadd.f32 %v1988, %v2532
    %v2534 = vpop.f32.mrb[0].mxu0
    %v2535 = vadd.f32 %v1988, %v2534
    %2536 = vdwg.mxu0
    %2537 = vmatprep.subr.bf16.mxu0 %v1931
    %2538 = vmatpush1.bf16.msra.mxu0 %v1930
    %2539 = vmatprep.subr.bf16.mxu0 %v1963
    %2540 = vmatpush1.bf16.msra.mxu0 %v1962
    %2541 = vmatprep.subr.bf16.mxu0 0
    %2542 = vmatpush1.bf16.msra.mxu0 0
    %2543 = vmatprep.subr.bf16.mxu0 0
    %2544 = vmatpush1.bf16.msra.mxu0 0
    %2545 = vmatprep.subr.bf16.mxu0 0
    %2546 = vmatpush1.bf16.msra.mxu0 0
    %2547 = vmatprep.subr.bf16.mxu0 0
    %2548 = vmatpush1.bf16.msra.mxu0 0
    %2549 = vmatprep.subr.bf16.mxu0 0
    %2550 = vmatpush1.bf16.msra.mxu0 0
    %2551 = vmatprep.subr.bf16.mxu0 0
    %2552 = vmatpush1.bf16.msra.mxu0 0
    %2553 = vmatprep.subr.bf16.mxu0 0
    %2554 = vmatpush1.bf16.msra.mxu0 0
    %2555 = vmatprep.subr.bf16.mxu0 0
    %2556 = vmatpush1.bf16.msra.mxu0 0
    %2557 = vmatprep.subr.bf16.mxu0 0
    %2558 = vmatpush1.bf16.msra.mxu0 0
    %2559 = vmatprep.subr.bf16.mxu0 0
    %2560 = vmatpush1.bf16.msra.mxu0 0
    %2561 = vmatprep.subr.bf16.mxu0 0
    %2562 = vmatpush1.bf16.msra.mxu0 0
    %2563 = vmatprep.subr.bf16.mxu0 0
    %2564 = vmatpush1.bf16.msra.mxu0 0
    %2565 = vmatprep.subr.bf16.mxu0 0
    %2566 = vmatpush1.bf16.msra.mxu0 0
    %2567 = vmatprep.subr.bf16.mxu0 0
    %2568 = vmatpush1.bf16.msra.mxu0 0
    %2569 = vmatprep.mubr.bf16.mxu0 0
    %2570 = vmatmul.mubr.bf16.gmra.mrb[0].mxu0 %v2002
    %v2571 = vpop.f32.mrb[0].mxu0
    %v2572 = vadd.f32 %v1976, %v2571
    %v2573 = vpop.f32.mrb[0].mxu0
    %v2574 = vadd.f32 %v1976, %v2573
    %v2575 = vpop.f32.mrb[0].mxu0
    %v2576 = vadd.f32 %v1980, %v2575
    %v2577 = vpop.f32.mrb[0].mxu0
    %v2578 = vadd.f32 %v1980, %v2577
    %2579 = vmatprep.mubr.bf16.mxu0 0
    %2580 = vmatmul.mubr.bf16.gmra.mrb[0].mxu0 %v2005
    %v2581 = vpop.f32.mrb[0].mxu0
    %v2582 = vadd.f32 %v1984, %v2581
    %v2583 = vpop.f32.mrb[0].mxu0
    %v2584 = vadd.f32 %v1984, %v2583
    %v2585 = vpop.f32.mrb[0].mxu0
    %v2586 = vadd.f32 %v1988, %v2585
    %v2587 = vpop.f32.mrb[0].mxu0
    %v2588 = vadd.f32 %v1988, %v2587
    %2589 = vdwg.mxu0
    %2590 = vmatprep.subr.bf16.mxu0 %v1933
    %2591 = vmatpush1.bf16.msra.mxu0 %v1932
    %2592 = vmatprep.subr.bf16.mxu0 %v1965
    %2593 = vmatpush1.bf16.msra.mxu0 %v1964
    %2594 = vmatprep.subr.bf16.mxu0 0
    %2595 = vmatpush1.bf16.msra.mxu0 0
    %2596 = vmatprep.subr.bf16.mxu0 0
    %2597 = vmatpush1.bf16.msra.mxu0 0
    %2598 = vmatprep.subr.bf16.mxu0 0
    %2599 = vmatpush1.bf16.msra.mxu0 0
    %2600 = vmatprep.subr.bf16.mxu0 0
    %2601 = vmatpush1.bf16.msra.mxu0 0
    %2602 = vmatprep.subr.bf16.mxu0 0
    %2603 = vmatpush1.bf16.msra.mxu0 0
    %2604 = vmatprep.subr.bf16.mxu0 0
    %2605 = vmatpush1.bf16.msra.mxu0 0
    %2606 = vmatprep.subr.bf16.mxu0 0
    %2607 = vmatpush1.bf16.msra.mxu0 0
    %2608 = vmatprep.subr.bf16.mxu0 0
    %2609 = vmatpush1.bf16.msra.mxu0 0
    %2610 = vmatprep.subr.bf16.mxu0 0
    %2611 = vmatpush1.bf16.msra.mxu0 0
    %2612 = vmatprep.subr.bf16.mxu0 0
    %2613 = vmatpush1.bf16.msra.mxu0 0
    %2614 = vmatprep.subr.bf16.mxu0 0
    %2615 = vmatpush1.bf16.msra.mxu0 0
    %2616 = vmatprep.subr.bf16.mxu0 0
    %2617 = vmatpush1.bf16.msra.mxu0 0
    %2618 = vmatprep.subr.bf16.mxu0 0
    %2619 = vmatpush1.bf16.msra.mxu0 0
    %2620 = vmatprep.subr.bf16.mxu0 0
    %2621 = vmatpush1.bf16.msra.mxu0 0
    %2622 = vmatprep.mubr.bf16.mxu0 0
    %2623 = vmatmul.mubr.bf16.gmra.mrb[0].mxu0 %v2002
    %v2624 = vpop.f32.mrb[0].mxu0
    %v2625 = vadd.f32 %v1976, %v2624
    %v2626 = vpop.f32.mrb[0].mxu0
    %v2627 = vadd.f32 %v1976, %v2626
    %v2628 = vpop.f32.mrb[0].mxu0
    %v2629 = vadd.f32 %v1980, %v2628
    %v2630 = vpop.f32.mrb[0].mxu0
    %v2631 = vadd.f32 %v1980, %v2630
    %2632 = vmatprep.mubr.bf16.mxu0 0
    %2633 = vmatmul.mubr.bf16.gmra.mrb[0].mxu0 %v2005
    %v2634 = vpop.f32.mrb[0].mxu0
    %v2635 = vadd.f32 %v1984, %v2634
    %v2636 = vpop.f32.mrb[0].mxu0
    %v2637 = vadd.f32 %v1984, %v2636
    %v2638 = vpop.f32.mrb[0].mxu0
    %v2639 = vadd.f32 %v1988, %v2638
    %v2640 = vpop.f32.mrb[0].mxu0
    %v2641 = vadd.f32 %v1988, %v2640
    %2642 = vdwg.mxu0
    %2643 = vmatprep.subr.bf16.mxu0 %v1935
    %2644 = vmatpush1.bf16.msra.mxu0 %v1934
    %2645 = vmatprep.subr.bf16.mxu0 %v1967
    %2646 = vmatpush1.bf16.msra.mxu0 %v1966
    %2647 = vmatprep.subr.bf16.mxu0 0
    %2648 = vmatpush1.bf16.msra.mxu0 0
    %2649 = vmatprep.subr.bf16.mxu0 0
    %2650 = vmatpush1.bf16.msra.mxu0 0
    %2651 = vmatprep.subr.bf16.mxu0 0
    %2652 = vmatpush1.bf16.msra.mxu0 0
    %2653 = vmatprep.subr.bf16.mxu0 0
    %2654 = vmatpush1.bf16.msra.mxu0 0
    %2655 = vmatprep.subr.bf16.mxu0 0
    %2656 = vmatpush1.bf16.msra.mxu0 0
    %2657 = vmatprep.subr.bf16.mxu0 0
    %2658 = vmatpush1.bf16.msra.mxu0 0
    %2659 = vmatprep.subr.bf16.mxu0 0
    %2660 = vmatpush1.bf16.msra.mxu0 0
    %2661 = vmatprep.subr.bf16.mxu0 0
    %2662 = vmatpush1.bf16.msra.mxu0 0
    %2663 = vmatprep.subr.bf16.mxu0 0
    %2664 = vmatpush1.bf16.msra.mxu0 0
    %2665 = vmatprep.subr.bf16.mxu0 0
    %2666 = vmatpush1.bf16.msra.mxu0 0
    %2667 = vmatprep.subr.bf16.mxu0 0
    %2668 = vmatpush1.bf16.msra.mxu0 0
    %2669 = vmatprep.subr.bf16.mxu0 0
    %2670 = vmatpush1.bf16.msra.mxu0 0
    %2671 = vmatprep.subr.bf16.mxu0 0
    %2672 = vmatpush1.bf16.msra.mxu0 0
    %2673 = vmatprep.subr.bf16.mxu0 0
    %2674 = vmatpush1.bf16.msra.mxu0 0
    %2675 = vmatprep.mubr.bf16.mxu0 0
    %2676 = vmatmul.mubr.bf16.gmra.mrb[0].mxu0 %v2002
    %v2677 = vpop.f32.mrb[0].mxu0
    %v2678 = vadd.f32 %v1976, %v2677
    %v2679 = vpop.f32.mrb[0].mxu0
    %v2680 = vadd.f32 %v1976, %v2679
    %v2681 = vpop.f32.mrb[0].mxu0
    %v2682 = vadd.f32 %v1980, %v2681
    %v2683 = vpop.f32.mrb[0].mxu0
    %v2684 = vadd.f32 %v1980, %v2683
    %2685 = vmatprep.mubr.bf16.mxu0 0
    %2686 = vmatmul.mubr.bf16.gmra.mrb[0].mxu0 %v2005
    %v2687 = vpop.f32.mrb[0].mxu0
    %v2688 = vadd.f32 %v1984, %v2687
    %v2689 = vpop.f32.mrb[0].mxu0
    %v2690 = vadd.f32 %v1984, %v2689
    %v2691 = vpop.f32.mrb[0].mxu0
    %v2692 = vadd.f32 %v1988, %v2691
    %v2693 = vpop.f32.mrb[0].mxu0
    %v2694 = vadd.f32 %v1988, %v2693
    %2695 = vdwg.mxu0
    %2696 = vmatprep.subr.bf16.mxu0 %v1937
    %2697 = vmatpush1.bf16.msra.mxu0 %v1936
    %2698 = vmatprep.subr.bf16.mxu0 %v1969
    %2699 = vmatpush1.bf16.msra.mxu0 %v1968
    %2700 = vmatprep.subr.bf16.mxu0 0
    %2701 = vmatpush1.bf16.msra.mxu0 0
    %2702 = vmatprep.subr.bf16.mxu0 0
    %2703 = vmatpush1.bf16.msra.mxu0 0
    %2704 = vmatprep.subr.bf16.mxu0 0
    %2705 = vmatpush1.bf16.msra.mxu0 0
    %2706 = vmatprep.subr.bf16.mxu0 0
    %2707 = vmatpush1.bf16.msra.mxu0 0
    %2708 = vmatprep.subr.bf16.mxu0 0
    %2709 = vmatpush1.bf16.msra.mxu0 0
    %2710 = vmatprep.subr.bf16.mxu0 0
    %2711 = vmatpush1.bf16.msra.mxu0 0
    %2712 = vmatprep.subr.bf16.mxu0 0
    %2713 = vmatpush1.bf16.msra.mxu0 0
    %2714 = vmatprep.subr.bf16.mxu0 0
    %2715 = vmatpush1.bf16.msra.mxu0 0
    %2716 = vmatprep.subr.bf16.mxu0 0
    %2717 = vmatpush1.bf16.msra.mxu0 0
    %2718 = vmatprep.subr.bf16.mxu0 0
    %2719 = vmatpush1.bf16.msra.mxu0 0
    %2720 = vmatprep.subr.bf16.mxu0 0
    %2721 = vmatpush1.bf16.msra.mxu0 0
    %2722 = vmatprep.subr.bf16.mxu0 0
    %2723 = vmatpush1.bf16.msra.mxu0 0
    %2724 = vmatprep.subr.bf16.mxu0 0
    %2725 = vmatpush1.bf16.msra.mxu0 0
    %2726 = vmatprep.subr.bf16.mxu0 0
    %2727 = vmatpush1.bf16.msra.mxu0 0
    %2728 = vmatprep.mubr.bf16.mxu0 0
    %2729 = vmatmul.mubr.bf16.gmra.mrb[0].mxu0 %v2002
    %v2730 = vpop.f32.mrb[0].mxu0
    %v2731 = vadd.f32 %v1976, %v2730
    %v2732 = vpop.f32.mrb[0].mxu0
    %v2733 = vadd.f32 %v1976, %v2732
    %v2734 = vpop.f32.mrb[0].mxu0
    %v2735 = vadd.f32 %v1980, %v2734
    %v2736 = vpop.f32.mrb[0].mxu0
    %v2737 = vadd.f32 %v1980, %v2736
    %2738 = vmatprep.mubr.bf16.mxu0 0
    %2739 = vmatmul.mubr.bf16.gmra.mrb[0].mxu0 %v2005
    %v2740 = vpop.f32.mrb[0].mxu0
    %v2741 = vadd.f32 %v1984, %v2740
    %v2742 = vpop.f32.mrb[0].mxu0
    %v2743 = vadd.f32 %v1984, %v2742
    %v2744 = vpop.f32.mrb[0].mxu0
    %v2745 = vadd.f32 %v1988, %v2744
    %v2746 = vpop.f32.mrb[0].mxu0
    %v2747 = vadd.f32 %v1988, %v2746
    %2748 = vdwg.mxu0
    %2749 = vmatprep.subr.bf16.mxu0 %v1939
    %2750 = vmatpush1.bf16.msra.mxu0 %v1938
    %2751 = vmatprep.subr.bf16.mxu0 %v1971
    %2752 = vmatpush1.bf16.msra.mxu0 %v1970
    %2753 = vmatprep.subr.bf16.mxu0 0
    %2754 = vmatpush1.bf16.msra.mxu0 0
    %2755 = vmatprep.subr.bf16.mxu0 0
    %2756 = vmatpush1.bf16.msra.mxu0 0
    %2757 = vmatprep.subr.bf16.mxu0 0
    %2758 = vmatpush1.bf16.msra.mxu0 0
    %2759 = vmatprep.subr.bf16.mxu0 0
    %2760 = vmatpush1.bf16.msra.mxu0 0
    %2761 = vmatprep.subr.bf16.mxu0 0
    %2762 = vmatpush1.bf16.msra.mxu0 0
    %2763 = vmatprep.subr.bf16.mxu0 0
    %2764 = vmatpush1.bf16.msra.mxu0 0
    %2765 = vmatprep.subr.bf16.mxu0 0
    %2766 = vmatpush1.bf16.msra.mxu0 0
    %2767 = vmatprep.subr.bf16.mxu0 0
    %2768 = vmatpush1.bf16.msra.mxu0 0
    %2769 = vmatprep.subr.bf16.mxu0 0
    %2770 = vmatpush1.bf16.msra.mxu0 0
    %2771 = vmatprep.subr.bf16.mxu0 0
    %2772 = vmatpush1.bf16.msra.mxu0 0
    %2773 = vmatprep.subr.bf16.mxu0 0
    %2774 = vmatpush1.bf16.msra.mxu0 0
    %2775 = vmatprep.subr.bf16.mxu0 0
    %2776 = vmatpush1.bf16.msra.mxu0 0
    %2777 = vmatprep.subr.bf16.mxu0 0
    %2778 = vmatpush1.bf16.msra.mxu0 0
    %2779 = vmatprep.subr.bf16.mxu0 0
    %2780 = vmatpush1.bf16.msra.mxu0 0
    %2781 = vmatprep.mubr.bf16.mxu0 0
    %2782 = vmatmul.mubr.bf16.gmra.mrb[0].mxu0 %v2002
    %v2783 = vpop.f32.mrb[0].mxu0
    %v2784 = vadd.f32 %v1976, %v2783
    %v2785 = vpop.f32.mrb[0].mxu0
    %v2786 = vadd.f32 %v1976, %v2785
    %v2787 = vpop.f32.mrb[0].mxu0
    %v2788 = vadd.f32 %v1980, %v2787
    %v2789 = vpop.f32.mrb[0].mxu0
    %v2790 = vadd.f32 %v1980, %v2789
    %2791 = vmatprep.mubr.bf16.mxu0 0
    %2792 = vmatmul.mubr.bf16.gmra.mrb[0].mxu0 %v2005
    %v2793 = vpop.f32.mrb[0].mxu0
    %v2794 = vadd.f32 %v1984, %v2793
    %v2795 = vpop.f32.mrb[0].mxu0
    %v2796 = vadd.f32 %v1984, %v2795
    %v2797 = vpop.f32.mrb[0].mxu0
    %v2798 = vadd.f32 %v1988, %v2797
    %v2799 = vpop.f32.mrb[0].mxu0
    %v2800 = vadd.f32 %v1988, %v2799
    %2801 = vdwg.mxu0
    %2802 = vmatprep.subr.bf16.mxu0 %v1941
    %2803 = vmatpush1.bf16.msra.mxu0 %v1940
    %2804 = vmatprep.subr.bf16.mxu0 %v1973
    %2805 = vmatpush1.bf16.msra.mxu0 %v1972
    %2806 = vmatprep.subr.bf16.mxu0 0
    %2807 = vmatpush1.bf16.msra.mxu0 0
    %2808 = vmatprep.subr.bf16.mxu0 0
    %2809 = vmatpush1.bf16.msra.mxu0 0
    %2810 = vmatprep.subr.bf16.mxu0 0
    %2811 = vmatpush1.bf16.msra.mxu0 0
    %2812 = vmatprep.subr.bf16.mxu0 0
    %2813 = vmatpush1.bf16.msra.mxu0 0
    %2814 = vmatprep.subr.bf16.mxu0 0
    %2815 = vmatpush1.bf16.msra.mxu0 0
    %2816 = vmatprep.subr.bf16.mxu0 0
    %2817 = vmatpush1.bf16.msra.mxu0 0
    %2818 = vmatprep.subr.bf16.mxu0 0
    %2819 = vmatpush1.bf16.msra.mxu0 0
    %2820 = vmatprep.subr.bf16.mxu0 0
    %2821 = vmatpush1.bf16.msra.mxu0 0
    %2822 = vmatprep.subr.bf16.mxu0 0
    %2823 = vmatpush1.bf16.msra.mxu0 0
    %2824 = vmatprep.subr.bf16.mxu0 0
    %2825 = vmatpush1.bf16.msra.mxu0 0
    %2826 = vmatprep.subr.bf16.mxu0 0
    %2827 = vmatpush1.bf16.msra.mxu0 0
    %2828 = vmatprep.subr.bf16.mxu0 0
    %2829 = vmatpush1.bf16.msra.mxu0 0
    %2830 = vmatprep.subr.bf16.mxu0 0
    %2831 = vmatpush1.bf16.msra.mxu0 0
    %2832 = vmatprep.subr.bf16.mxu0 0
    %2833 = vmatpush1.bf16.msra.mxu0 0
    %2834 = vmatprep.mubr.bf16.mxu0 0
    %2835 = vmatmul.mubr.bf16.gmra.mrb[0].mxu0 %v2002
    %v2836 = vpop.f32.mrb[0].mxu0
    %v2837 = vadd.f32 %v1976, %v2836
    %v2838 = vpop.f32.mrb[0].mxu0
    %v2839 = vadd.f32 %v1976, %v2838
    %v2840 = vpop.f32.mrb[0].mxu0
    %v2841 = vadd.f32 %v1980, %v2840
    %v2842 = vpop.f32.mrb[0].mxu0
    %v2843 = vadd.f32 %v1980, %v2842
    %2844 = vmatprep.mubr.bf16.mxu0 0
    %2845 = vmatmul.mubr.bf16.gmra.mrb[0].mxu0 %v2005
    %v2846 = vpop.f32.mrb[0].mxu0
    %v2847 = vadd.f32 %v1984, %v2846
    %v2848 = vpop.f32.mrb[0].mxu0
    %v2849 = vadd.f32 %v1984, %v2848
    %v2850 = vpop.f32.mrb[0].mxu0
    %v2851 = vadd.f32 %v1988, %v2850
    %v2852 = vpop.f32.mrb[0].mxu0
    %v2853 = vadd.f32 %v1988, %v2852
    %2854 = vdwg.mxu0
    %v2855 = vmax.f32 %v2042, 0.0
    %v2856 = vmax.f32 %v2044, 0.0
    %v2857 = vmax.f32 %v2095, 0.0
    %v2858 = vmax.f32 %v2097, 0.0
    %v2859 = vmax.f32 %v2148, 0.0
    %v2860 = vmax.f32 %v2150, 0.0
    %v2861 = vmax.f32 %v2201, 0.0
    %v2862 = vmax.f32 %v2203, 0.0
    %v2863 = vmax.f32 %v2254, 0.0
    %v2864 = vmax.f32 %v2256, 0.0
    %v2865 = vmax.f32 %v2307, 0.0
    %v2866 = vmax.f32 %v2309, 0.0
    %v2867 = vmax.f32 %v2360, 0.0
    %v2868 = vmax.f32 %v2362, 0.0
    %v2869 = vmax.f32 %v2413, 0.0
    %v2870 = vmax.f32 %v2415, 0.0
    %v2871 = vmax.f32 %v2466, 0.0
    %v2872 = vmax.f32 %v2468, 0.0
    %v2873 = vmax.f32 %v2519, 0.0
    %v2874 = vmax.f32 %v2521, 0.0
    %v2875 = vmax.f32 %v2572, 0.0
    %v2876 = vmax.f32 %v2574, 0.0
    %v2877 = vmax.f32 %v2625, 0.0
    %v2878 = vmax.f32 %v2627, 0.0
    %v2879 = vmax.f32 %v2678, 0.0
    %v2880 = vmax.f32 %v2680, 0.0
    %v2881 = vmax.f32 %v2731, 0.0
    %v2882 = vmax.f32 %v2733, 0.0
    %v2883 = vmax.f32 %v2784, 0.0
    %v2884 = vmax.f32 %v2786, 0.0
    %v2885 = vmax.f32 %v2837, 0.0
    %v2886 = vmax.f32 %v2839, 0.0
    %v2887 = vmax.f32 %v2046, 0.0
    %v2888 = vmax.f32 %v2048, 0.0
    %v2889 = vmax.f32 %v2099, 0.0
    %v2890 = vmax.f32 %v2101, 0.0
    %v2891 = vmax.f32 %v2152, 0.0
    %v2892 = vmax.f32 %v2154, 0.0
    %v2893 = vmax.f32 %v2205, 0.0
    %v2894 = vmax.f32 %v2207, 0.0
    %v2895 = vmax.f32 %v2258, 0.0
    %v2896 = vmax.f32 %v2260, 0.0
    %v2897 = vmax.f32 %v2311, 0.0
    %v2898 = vmax.f32 %v2313, 0.0
    %v2899 = vmax.f32 %v2364, 0.0
    %v2900 = vmax.f32 %v2366, 0.0
    %v2901 = vmax.f32 %v2417, 0.0
    %v2902 = vmax.f32 %v2419, 0.0
    %v2903 = vmax.f32 %v2470, 0.0
    %v2904 = vmax.f32 %v2472, 0.0
    %v2905 = vmax.f32 %v2523, 0.0
    %v2906 = vmax.f32 %v2525, 0.0
    %v2907 = vmax.f32 %v2576, 0.0
    %v2908 = vmax.f32 %v2578, 0.0
    %v2909 = vmax.f32 %v2629, 0.0
    %v2910 = vmax.f32 %v2631, 0.0
    %v2911 = vmax.f32 %v2682, 0.0
    %v2912 = vmax.f32 %v2684, 0.0
    %v2913 = vmax.f32 %v2735, 0.0
    %v2914 = vmax.f32 %v2737, 0.0
    %v2915 = vmax.f32 %v2788, 0.0
    %v2916 = vmax.f32 %v2790, 0.0
    %v2917 = vmax.f32 %v2841, 0.0
    %v2918 = vmax.f32 %v2843, 0.0
    %v2919 = vmax.f32 %v2052, 0.0
    %v2920 = vmax.f32 %v2054, 0.0
    %v2921 = vmax.f32 %v2105, 0.0
    %v2922 = vmax.f32 %v2107, 0.0
    %v2923 = vmax.f32 %v2158, 0.0
    %v2924 = vmax.f32 %v2160, 0.0
    %v2925 = vmax.f32 %v2211, 0.0
    %v2926 = vmax.f32 %v2213, 0.0
    %v2927 = vmax.f32 %v2264, 0.0
    %v2928 = vmax.f32 %v2266, 0.0
    %v2929 = vmax.f32 %v2317, 0.0
    %v2930 = vmax.f32 %v2319, 0.0
    %v2931 = vmax.f32 %v2370, 0.0
    %v2932 = vmax.f32 %v2372, 0.0
    %v2933 = vmax.f32 %v2423, 0.0
    %v2934 = vmax.f32 %v2425, 0.0
    %v2935 = vmax.f32 %v2476, 0.0
    %v2936 = vmax.f32 %v2478, 0.0
    %v2937 = vmax.f32 %v2529, 0.0
    %v2938 = vmax.f32 %v2531, 0.0
    %v2939 = vmax.f32 %v2582, 0.0
    %v2940 = vmax.f32 %v2584, 0.0
    %v2941 = vmax.f32 %v2635, 0.0
    %v2942 = vmax.f32 %v2637, 0.0
    %v2943 = vmax.f32 %v2688, 0.0
    %v2944 = vmax.f32 %v2690, 0.0
    %v2945 = vmax.f32 %v2741, 0.0
    %v2946 = vmax.f32 %v2743, 0.0
    %v2947 = vmax.f32 %v2794, 0.0
    %v2948 = vmax.f32 %v2796, 0.0
    %v2949 = vmax.f32 %v2847, 0.0
    %v2950 = vmax.f32 %v2849, 0.0
    %v2951 = vmax.f32 %v2056, 0.0
    %v2952 = vmax.f32 %v2058, 0.0
    %v2953 = vmax.f32 %v2109, 0.0
    %v2954 = vmax.f32 %v2111, 0.0
    %v2955 = vmax.f32 %v2162, 0.0
    %v2956 = vmax.f32 %v2164, 0.0
    %v2957 = vmax.f32 %v2215, 0.0
    %v2958 = vmax.f32 %v2217, 0.0
    %v2959 = vmax.f32 %v2268, 0.0
    %v2960 = vmax.f32 %v2270, 0.0
    %v2961 = vmax.f32 %v2321, 0.0
    %v2962 = vmax.f32 %v2323, 0.0
    %v2963 = vmax.f32 %v2374, 0.0
    %v2964 = vmax.f32 %v2376, 0.0
    %v2965 = vmax.f32 %v2427, 0.0
    %v2966 = vmax.f32 %v2429, 0.0
    %v2967 = vmax.f32 %v2480, 0.0
    %v2968 = vmax.f32 %v2482, 0.0
    %v2969 = vmax.f32 %v2533, 0.0
    %v2970 = vmax.f32 %v2535, 0.0
    %v2971 = vmax.f32 %v2586, 0.0
    %v2972 = vmax.f32 %v2588, 0.0
    %v2973 = vmax.f32 %v2639, 0.0
    %v2974 = vmax.f32 %v2641, 0.0
    %v2975 = vmax.f32 %v2692, 0.0
    %v2976 = vmax.f32 %v2694, 0.0
    %v2977 = vmax.f32 %v2745, 0.0
    %v2978 = vmax.f32 %v2747, 0.0
    %v2979 = vmax.f32 %v2798, 0.0
    %v2980 = vmax.f32 %v2800, 0.0
    %v2981 = vmax.f32 %v2851, 0.0
    %v2982 = vmax.f32 %v2853, 0.0
    %s2983 = scalar_lea.vmem [#allocation5], 16
    %v2984 = vld [vmem:[%s2983] sm:$0xf]
    %v2985 = vld [vmem:[%s2983 + $0x4] sm:$0xf]
    %v2986 = vld [vmem:[%s2983 + $0x8] sm:$0xf]
    %v2987 = vld [vmem:[%s2983 + $0xc] sm:$0xf]
    %v2988 = vpack.c.bf16 %v2887, %v2855
    %v2989 = vpack.c.bf16 %v2888, %v2856
    %v2990 = vpack.c.bf16 %v2889, %v2857
    %v2991 = vpack.c.bf16 %v2890, %v2858
    %v2992 = vpack.c.bf16 %v2891, %v2859
    %v2993 = vpack.c.bf16 %v2892, %v2860
    %v2994 = vpack.c.bf16 %v2893, %v2861
    %v2995 = vpack.c.bf16 %v2894, %v2862
    %v2996 = vpack.c.bf16 %v2895, %v2863
    %v2997 = vpack.c.bf16 %v2896, %v2864
    %v2998 = vpack.c.bf16 %v2897, %v2865
    %v2999 = vpack.c.bf16 %v2898, %v2866
    %v3000 = vpack.c.bf16 %v2899, %v2867
    %v3001 = vpack.c.bf16 %v2900, %v2868
    %v3002 = vpack.c.bf16 %v2901, %v2869
    %v3003 = vpack.c.bf16 %v2902, %v2870
    %v3004 = vpack.c.bf16 %v2903, %v2871
    %v3005 = vpack.c.bf16 %v2904, %v2872
    %v3006 = vpack.c.bf16 %v2905, %v2873
    %v3007 = vpack.c.bf16 %v2906, %v2874
    %v3008 = vpack.c.bf16 %v2907, %v2875
    %v3009 = vpack.c.bf16 %v2908, %v2876
    %v3010 = vpack.c.bf16 %v2909, %v2877
    %v3011 = vpack.c.bf16 %v2910, %v2878
    %v3012 = vpack.c.bf16 %v2911, %v2879
    %v3013 = vpack.c.bf16 %v2912, %v2880
    %v3014 = vpack.c.bf16 %v2913, %v2881
    %v3015 = vpack.c.bf16 %v2914, %v2882
    %v3016 = vpack.c.bf16 %v2915, %v2883
    %v3017 = vpack.c.bf16 %v2916, %v2884
    %v3018 = vpack.c.bf16 %v2917, %v2885
    %v3019 = vpack.c.bf16 %v2918, %v2886
    %v3020 = vpack.c.bf16 %v2951, %v2919
    %v3021 = vpack.c.bf16 %v2952, %v2920
    %v3022 = vpack.c.bf16 %v2953, %v2921
    %v3023 = vpack.c.bf16 %v2954, %v2922
    %v3024 = vpack.c.bf16 %v2955, %v2923
    %v3025 = vpack.c.bf16 %v2956, %v2924
    %v3026 = vpack.c.bf16 %v2957, %v2925
    %v3027 = vpack.c.bf16 %v2958, %v2926
    %v3028 = vpack.c.bf16 %v2959, %v2927
    %v3029 = vpack.c.bf16 %v2960, %v2928
    %v3030 = vpack.c.bf16 %v2961, %v2929
    %v3031 = vpack.c.bf16 %v2962, %v2930
    %v3032 = vpack.c.bf16 %v2963, %v2931
    %v3033 = vpack.c.bf16 %v2964, %v2932
    %v3034 = vpack.c.bf16 %v2965, %v2933
    %v3035 = vpack.c.bf16 %v2966, %v2934
    %v3036 = vpack.c.bf16 %v2967, %v2935
    %v3037 = vpack.c.bf16 %v2968, %v2936
    %v3038 = vpack.c.bf16 %v2969, %v2937
    %v3039 = vpack.c.bf16 %v2970, %v2938
    %v3040 = vpack.c.bf16 %v2971, %v2939
    %v3041 = vpack.c.bf16 %v2972, %v2940
    %v3042 = vpack.c.bf16 %v2973, %v2941
    %v3043 = vpack.c.bf16 %v2974, %v2942
    %v3044 = vpack.c.bf16 %v2975, %v2943
    %v3045 = vpack.c.bf16 %v2976, %v2944
    %v3046 = vpack.c.bf16 %v2977, %v2945
    %v3047 = vpack.c.bf16 %v2978, %v2946
    %v3048 = vpack.c.bf16 %v2979, %v2947
    %v3049 = vpack.c.bf16 %v2980, %v2948
    %v3050 = vpack.c.bf16 %v2981, %v2949
    %v3051 = vpack.c.bf16 %v2982, %v2950
    %v3056 = vunpack.c.l.b16 %v2984
    %v3057 = vunpack.c.l.b16 %v2985
    %v3058 = vunpack.c.l.b16 %v2986
    %v3059 = vunpack.c.l.b16 %v2987
    %v3060 = vpack.c.b16 %v3057, %v3056
    %v3061 = vpack.c.b16 %v3059, %v3058
    %v3063 = vsel %vm2000, %v3060, 0
    %v3066 = vsel %vm2000, %v3061, 0
    %3068 = vmatprep.subr.bf16.mxu0 %v2989
    %3069 = vmatpush1.bf16.msra.mxu0 %v2988
    %3070 = vmatprep.subr.bf16.mxu0 %v3021
    %3071 = vmatpush1.bf16.msra.mxu0 %v3020
    %3072 = vmatprep.subr.bf16.mxu0 0
    %3073 = vmatpush1.bf16.msra.mxu0 0
    %3074 = vmatprep.subr.bf16.mxu0 0
    %3075 = vmatpush1.bf16.msra.mxu0 0
    %3076 = vmatprep.subr.bf16.mxu0 0
    %3077 = vmatpush1.bf16.msra.mxu0 0
    %3078 = vmatprep.subr.bf16.mxu0 0
    %3079 = vmatpush1.bf16.msra.mxu0 0
    %3080 = vmatprep.subr.bf16.mxu0 0
    %3081 = vmatpush1.bf16.msra.mxu0 0
    %3082 = vmatprep.subr.bf16.mxu0 0
    %3083 = vmatpush1.bf16.msra.mxu0 0
    %3084 = vmatprep.subr.bf16.mxu0 0
    %3085 = vmatpush1.bf16.msra.mxu0 0
    %3086 = vmatprep.subr.bf16.mxu0 0
    %3087 = vmatpush1.bf16.msra.mxu0 0
    %3088 = vmatprep.subr.bf16.mxu0 0
    %3089 = vmatpush1.bf16.msra.mxu0 0
    %3090 = vmatprep.subr.bf16.mxu0 0
    %3091 = vmatpush1.bf16.msra.mxu0 0
    %3092 = vmatprep.subr.bf16.mxu0 0
    %3093 = vmatpush1.bf16.msra.mxu0 0
    %3094 = vmatprep.subr.bf16.mxu0 0
    %3095 = vmatpush1.bf16.msra.mxu0 0
    %3096 = vmatprep.subr.bf16.mxu0 0
    %3097 = vmatpush1.bf16.msra.mxu0 0
    %3098 = vmatprep.subr.bf16.mxu0 0
    %3099 = vmatpush1.bf16.msra.mxu0 0
    %3100 = vmatprep.mubr.bf16.mxu0 0
    %3101 = vmatmul.mubr.bf16.gmra.mrb[0].mxu0 %v3063
    %v3102 = vpop.f32.mrb[0].mxu0
    %v3103 = vadd.f32 %v1650, %v3102
    %v3104 = vpop.f32.mrb[0].mxu0
    %v3105 = vadd.f32 %v1651, %v3104
    %v3106 = vpop.f32.mrb[0].mxu0
    %v3107 = vadd.f32 %v1682, %v3106
    %v3108 = vpop.f32.mrb[0].mxu0
    %v3109 = vadd.f32 %v1683, %v3108
    %3110 = vmatprep.mubr.bf16.mxu0 0
    %3111 = vmatmul.mubr.bf16.gmra.mrb[0].mxu0 %v3066
    %v3112 = vpop.f32.mrb[0].mxu0
    %v3113 = vadd.f32 %v1714, %v3112
    %v3114 = vpop.f32.mrb[0].mxu0
    %v3115 = vadd.f32 %v1715, %v3114
    %v3116 = vpop.f32.mrb[0].mxu0
    %v3117 = vadd.f32 %v1746, %v3116
    %v3118 = vpop.f32.mrb[0].mxu0
    %v3119 = vadd.f32 %v1747, %v3118
    %3120 = vdwg.mxu0
    %3121 = vmatprep.subr.bf16.mxu0 %v2991
    %3122 = vmatpush1.bf16.msra.mxu0 %v2990
    %3123 = vmatprep.subr.bf16.mxu0 %v3023
    %3124 = vmatpush1.bf16.msra.mxu0 %v3022
    %3125 = vmatprep.subr.bf16.mxu0 0
    %3126 = vmatpush1.bf16.msra.mxu0 0
    %3127 = vmatprep.subr.bf16.mxu0 0
    %3128 = vmatpush1.bf16.msra.mxu0 0
    %3129 = vmatprep.subr.bf16.mxu0 0
    %3130 = vmatpush1.bf16.msra.mxu0 0
    %3131 = vmatprep.subr.bf16.mxu0 0
    %3132 = vmatpush1.bf16.msra.mxu0 0
    %3133 = vmatprep.subr.bf16.mxu0 0
    %3134 = vmatpush1.bf16.msra.mxu0 0
    %3135 = vmatprep.subr.bf16.mxu0 0
    %3136 = vmatpush1.bf16.msra.mxu0 0
    %3137 = vmatprep.subr.bf16.mxu0 0
    %3138 = vmatpush1.bf16.msra.mxu0 0
    %3139 = vmatprep.subr.bf16.mxu0 0
    %3140 = vmatpush1.bf16.msra.mxu0 0
    %3141 = vmatprep.subr.bf16.mxu0 0
    %3142 = vmatpush1.bf16.msra.mxu0 0
    %3143 = vmatprep.subr.bf16.mxu0 0
    %3144 = vmatpush1.bf16.msra.mxu0 0
    %3145 = vmatprep.subr.bf16.mxu0 0
    %3146 = vmatpush1.bf16.msra.mxu0 0
    %3147 = vmatprep.subr.bf16.mxu0 0
    %3148 = vmatpush1.bf16.msra.mxu0 0
    %3149 = vmatprep.subr.bf16.mxu0 0
    %3150 = vmatpush1.bf16.msra.mxu0 0
    %3151 = vmatprep.subr.bf16.mxu0 0
    %3152 = vmatpush1.bf16.msra.mxu0 0
    %3153 = vmatprep.mubr.bf16.mxu0 0
    %3154 = vmatmul.mubr.bf16.gmra.mrb[0].mxu0 %v3063
    %v3155 = vpop.f32.mrb[0].mxu0
    %v3156 = vadd.f32 %v1652, %v3155
    %v3157 = vpop.f32.mrb[0].mxu0
    %v3158 = vadd.f32 %v1653, %v3157
    %v3159 = vpop.f32.mrb[0].mxu0
    %v3160 = vadd.f32 %v1684, %v3159
    %v3161 = vpop.f32.mrb[0].mxu0
    %v3162 = vadd.f32 %v1685, %v3161
    %3163 = vmatprep.mubr.bf16.mxu0 0
    %3164 = vmatmul.mubr.bf16.gmra.mrb[0].mxu0 %v3066
    %v3165 = vpop.f32.mrb[0].mxu0
    %v3166 = vadd.f32 %v1716, %v3165
    %v3167 = vpop.f32.mrb[0].mxu0
    %v3168 = vadd.f32 %v1717, %v3167
    %v3169 = vpop.f32.mrb[0].mxu0
    %v3170 = vadd.f32 %v1748, %v3169
    %v3171 = vpop.f32.mrb[0].mxu0
    %v3172 = vadd.f32 %v1749, %v3171
    %3173 = vdwg.mxu0
    %3174 = vmatprep.subr.bf16.mxu0 %v2993
    %3175 = vmatpush1.bf16.msra.mxu0 %v2992
    %3176 = vmatprep.subr.bf16.mxu0 %v3025
    %3177 = vmatpush1.bf16.msra.mxu0 %v3024
    %3178 = vmatprep.subr.bf16.mxu0 0
    %3179 = vmatpush1.bf16.msra.mxu0 0
    %3180 = vmatprep.subr.bf16.mxu0 0
    %3181 = vmatpush1.bf16.msra.mxu0 0
    %3182 = vmatprep.subr.bf16.mxu0 0
    %3183 = vmatpush1.bf16.msra.mxu0 0
    %3184 = vmatprep.subr.bf16.mxu0 0
    %3185 = vmatpush1.bf16.msra.mxu0 0
    %3186 = vmatprep.subr.bf16.mxu0 0
    %3187 = vmatpush1.bf16.msra.mxu0 0
    %3188 = vmatprep.subr.bf16.mxu0 0
    %3189 = vmatpush1.bf16.msra.mxu0 0
    %3190 = vmatprep.subr.bf16.mxu0 0
    %3191 = vmatpush1.bf16.msra.mxu0 0
    %3192 = vmatprep.subr.bf16.mxu0 0
    %3193 = vmatpush1.bf16.msra.mxu0 0
    %3194 = vmatprep.subr.bf16.mxu0 0
    %3195 = vmatpush1.bf16.msra.mxu0 0
    %3196 = vmatprep.subr.bf16.mxu0 0
    %3197 = vmatpush1.bf16.msra.mxu0 0
    %3198 = vmatprep.subr.bf16.mxu0 0
    %3199 = vmatpush1.bf16.msra.mxu0 0
    %3200 = vmatprep.subr.bf16.mxu0 0
    %3201 = vmatpush1.bf16.msra.mxu0 0
    %3202 = vmatprep.subr.bf16.mxu0 0
    %3203 = vmatpush1.bf16.msra.mxu0 0
    %3204 = vmatprep.subr.bf16.mxu0 0
    %3205 = vmatpush1.bf16.msra.mxu0 0
    %3206 = vmatprep.mubr.bf16.mxu0 0
    %3207 = vmatmul.mubr.bf16.gmra.mrb[0].mxu0 %v3063
    %v3208 = vpop.f32.mrb[0].mxu0
    %v3209 = vadd.f32 %v1654, %v3208
    %v3210 = vpop.f32.mrb[0].mxu0
    %v3211 = vadd.f32 %v1655, %v3210
    %v3212 = vpop.f32.mrb[0].mxu0
    %v3213 = vadd.f32 %v1686, %v3212
    %v3214 = vpop.f32.mrb[0].mxu0
    %v3215 = vadd.f32 %v1687, %v3214
    %3216 = vmatprep.mubr.bf16.mxu0 0
    %3217 = vmatmul.mubr.bf16.gmra.mrb[0].mxu0 %v3066
    %v3218 = vpop.f32.mrb[0].mxu0
    %v3219 = vadd.f32 %v1718, %v3218
    %v3220 = vpop.f32.mrb[0].mxu0
    %v3221 = vadd.f32 %v1719, %v3220
    %v3222 = vpop.f32.mrb[0].mxu0
    %v3223 = vadd.f32 %v1750, %v3222
    %v3224 = vpop.f32.mrb[0].mxu0
    %v3225 = vadd.f32 %v1751, %v3224
    %3226 = vdwg.mxu0
    %3227 = vmatprep.subr.bf16.mxu0 %v2995
    %3228 = vmatpush1.bf16.msra.mxu0 %v2994
    %3229 = vmatprep.subr.bf16.mxu0 %v3027
    %3230 = vmatpush1.bf16.msra.mxu0 %v3026
    %3231 = vmatprep.subr.bf16.mxu0 0
    %3232 = vmatpush1.bf16.msra.mxu0 0
    %3233 = vmatprep.subr.bf16.mxu0 0
    %3234 = vmatpush1.bf16.msra.mxu0 0
    %3235 = vmatprep.subr.bf16.mxu0 0
    %3236 = vmatpush1.bf16.msra.mxu0 0
    %3237 = vmatprep.subr.bf16.mxu0 0
    %3238 = vmatpush1.bf16.msra.mxu0 0
    %3239 = vmatprep.subr.bf16.mxu0 0
    %3240 = vmatpush1.bf16.msra.mxu0 0
    %3241 = vmatprep.subr.bf16.mxu0 0
    %3242 = vmatpush1.bf16.msra.mxu0 0
    %3243 = vmatprep.subr.bf16.mxu0 0
    %3244 = vmatpush1.bf16.msra.mxu0 0
    %3245 = vmatprep.subr.bf16.mxu0 0
    %3246 = vmatpush1.bf16.msra.mxu0 0
    %3247 = vmatprep.subr.bf16.mxu0 0
    %3248 = vmatpush1.bf16.msra.mxu0 0
    %3249 = vmatprep.subr.bf16.mxu0 0
    %3250 = vmatpush1.bf16.msra.mxu0 0
    %3251 = vmatprep.subr.bf16.mxu0 0
    %3252 = vmatpush1.bf16.msra.mxu0 0
    %3253 = vmatprep.subr.bf16.mxu0 0
    %3254 = vmatpush1.bf16.msra.mxu0 0
    %3255 = vmatprep.subr.bf16.mxu0 0
    %3256 = vmatpush1.bf16.msra.mxu0 0
    %3257 = vmatprep.subr.bf16.mxu0 0
    %3258 = vmatpush1.bf16.msra.mxu0 0
    %3259 = vmatprep.mubr.bf16.mxu0 0
    %3260 = vmatmul.mubr.bf16.gmra.mrb[0].mxu0 %v3063
    %v3261 = vpop.f32.mrb[0].mxu0
    %v3262 = vadd.f32 %v1656, %v3261
    %v3263 = vpop.f32.mrb[0].mxu0
    %v3264 = vadd.f32 %v1657, %v3263
    %v3265 = vpop.f32.mrb[0].mxu0
    %v3266 = vadd.f32 %v1688, %v3265
    %v3267 = vpop.f32.mrb[0].mxu0
    %v3268 = vadd.f32 %v1689, %v3267
    %3269 = vmatprep.mubr.bf16.mxu0 0
    %3270 = vmatmul.mubr.bf16.gmra.mrb[0].mxu0 %v3066
    %v3271 = vpop.f32.mrb[0].mxu0
    %v3272 = vadd.f32 %v1720, %v3271
    %v3273 = vpop.f32.mrb[0].mxu0
    %v3274 = vadd.f32 %v1721, %v3273
    %v3275 = vpop.f32.mrb[0].mxu0
    %v3276 = vadd.f32 %v1752, %v3275
    %v3277 = vpop.f32.mrb[0].mxu0
    %v3278 = vadd.f32 %v1753, %v3277
    %3279 = vdwg.mxu0
    %3280 = vmatprep.subr.bf16.mxu0 %v2997
    %3281 = vmatpush1.bf16.msra.mxu0 %v2996
    %3282 = vmatprep.subr.bf16.mxu0 %v3029
    %3283 = vmatpush1.bf16.msra.mxu0 %v3028
    %3284 = vmatprep.subr.bf16.mxu0 0
    %3285 = vmatpush1.bf16.msra.mxu0 0
    %3286 = vmatprep.subr.bf16.mxu0 0
    %3287 = vmatpush1.bf16.msra.mxu0 0
    %3288 = vmatprep.subr.bf16.mxu0 0
    %3289 = vmatpush1.bf16.msra.mxu0 0
    %3290 = vmatprep.subr.bf16.mxu0 0
    %3291 = vmatpush1.bf16.msra.mxu0 0
    %3292 = vmatprep.subr.bf16.mxu0 0
    %3293 = vmatpush1.bf16.msra.mxu0 0
    %3294 = vmatprep.subr.bf16.mxu0 0
    %3295 = vmatpush1.bf16.msra.mxu0 0
    %3296 = vmatprep.subr.bf16.mxu0 0
    %3297 = vmatpush1.bf16.msra.mxu0 0
    %3298 = vmatprep.subr.bf16.mxu0 0
    %3299 = vmatpush1.bf16.msra.mxu0 0
    %3300 = vmatprep.subr.bf16.mxu0 0
    %3301 = vmatpush1.bf16.msra.mxu0 0
    %3302 = vmatprep.subr.bf16.mxu0 0
    %3303 = vmatpush1.bf16.msra.mxu0 0
    %3304 = vmatprep.subr.bf16.mxu0 0
    %3305 = vmatpush1.bf16.msra.mxu0 0
    %3306 = vmatprep.subr.bf16.mxu0 0
    %3307 = vmatpush1.bf16.msra.mxu0 0
    %3308 = vmatprep.subr.bf16.mxu0 0
    %3309 = vmatpush1.bf16.msra.mxu0 0
    %3310 = vmatprep.subr.bf16.mxu0 0
    %3311 = vmatpush1.bf16.msra.mxu0 0
    %3312 = vmatprep.mubr.bf16.mxu0 0
    %3313 = vmatmul.mubr.bf16.gmra.mrb[0].mxu0 %v3063
    %v3314 = vpop.f32.mrb[0].mxu0
    %v3315 = vadd.f32 %v1658, %v3314
    %v3316 = vpop.f32.mrb[0].mxu0
    %v3317 = vadd.f32 %v1659, %v3316
    %v3318 = vpop.f32.mrb[0].mxu0
    %v3319 = vadd.f32 %v1690, %v3318
    %v3320 = vpop.f32.mrb[0].mxu0
    %v3321 = vadd.f32 %v1691, %v3320
    %3322 = vmatprep.mubr.bf16.mxu0 0
    %3323 = vmatmul.mubr.bf16.gmra.mrb[0].mxu0 %v3066
    %v3324 = vpop.f32.mrb[0].mxu0
    %v3325 = vadd.f32 %v1722, %v3324
    %v3326 = vpop.f32.mrb[0].mxu0
    %v3327 = vadd.f32 %v1723, %v3326
    %v3328 = vpop.f32.mrb[0].mxu0
    %v3329 = vadd.f32 %v1754, %v3328
    %v3330 = vpop.f32.mrb[0].mxu0
    %v3331 = vadd.f32 %v1755, %v3330
    %3332 = vdwg.mxu0
    %3333 = vmatprep.subr.bf16.mxu0 %v2999
    %3334 = vmatpush1.bf16.msra.mxu0 %v2998
    %3335 = vmatprep.subr.bf16.mxu0 %v3031
    %3336 = vmatpush1.bf16.msra.mxu0 %v3030
    %3337 = vmatprep.subr.bf16.mxu0 0
    %3338 = vmatpush1.bf16.msra.mxu0 0
    %3339 = vmatprep.subr.bf16.mxu0 0
    %3340 = vmatpush1.bf16.msra.mxu0 0
    %3341 = vmatprep.subr.bf16.mxu0 0
    %3342 = vmatpush1.bf16.msra.mxu0 0
    %3343 = vmatprep.subr.bf16.mxu0 0
    %3344 = vmatpush1.bf16.msra.mxu0 0
    %3345 = vmatprep.subr.bf16.mxu0 0
    %3346 = vmatpush1.bf16.msra.mxu0 0
    %3347 = vmatprep.subr.bf16.mxu0 0
    %3348 = vmatpush1.bf16.msra.mxu0 0
    %3349 = vmatprep.subr.bf16.mxu0 0
    %3350 = vmatpush1.bf16.msra.mxu0 0
    %3351 = vmatprep.subr.bf16.mxu0 0
    %3352 = vmatpush1.bf16.msra.mxu0 0
    %3353 = vmatprep.subr.bf16.mxu0 0
    %3354 = vmatpush1.bf16.msra.mxu0 0
    %3355 = vmatprep.subr.bf16.mxu0 0
    %3356 = vmatpush1.bf16.msra.mxu0 0
    %3357 = vmatprep.subr.bf16.mxu0 0
    %3358 = vmatpush1.bf16.msra.mxu0 0
    %3359 = vmatprep.subr.bf16.mxu0 0
    %3360 = vmatpush1.bf16.msra.mxu0 0
    %3361 = vmatprep.subr.bf16.mxu0 0
    %3362 = vmatpush1.bf16.msra.mxu0 0
    %3363 = vmatprep.subr.bf16.mxu0 0
    %3364 = vmatpush1.bf16.msra.mxu0 0
    %3365 = vmatprep.mubr.bf16.mxu0 0
    %3366 = vmatmul.mubr.bf16.gmra.mrb[0].mxu0 %v3063
    %v3367 = vpop.f32.mrb[0].mxu0
    %v3368 = vadd.f32 %v1660, %v3367
    %v3369 = vpop.f32.mrb[0].mxu0
    %v3370 = vadd.f32 %v1661, %v3369
    %v3371 = vpop.f32.mrb[0].mxu0
    %v3372 = vadd.f32 %v1692, %v3371
    %v3373 = vpop.f32.mrb[0].mxu0
    %v3374 = vadd.f32 %v1693, %v3373
    %3375 = vmatprep.mubr.bf16.mxu0 0
    %3376 = vmatmul.mubr.bf16.gmra.mrb[0].mxu0 %v3066
    %v3377 = vpop.f32.mrb[0].mxu0
    %v3378 = vadd.f32 %v1724, %v3377
    %v3379 = vpop.f32.mrb[0].mxu0
    %v3380 = vadd.f32 %v1725, %v3379
    %v3381 = vpop.f32.mrb[0].mxu0
    %v3382 = vadd.f32 %v1756, %v3381
    %v3383 = vpop.f32.mrb[0].mxu0
    %v3384 = vadd.f32 %v1757, %v3383
    %3385 = vdwg.mxu0
    %3386 = vmatprep.subr.bf16.mxu0 %v3001
    %3387 = vmatpush1.bf16.msra.mxu0 %v3000
    %3388 = vmatprep.subr.bf16.mxu0 %v3033
    %3389 = vmatpush1.bf16.msra.mxu0 %v3032
    %3390 = vmatprep.subr.bf16.mxu0 0
    %3391 = vmatpush1.bf16.msra.mxu0 0
    %3392 = vmatprep.subr.bf16.mxu0 0
    %3393 = vmatpush1.bf16.msra.mxu0 0
    %3394 = vmatprep.subr.bf16.mxu0 0
    %3395 = vmatpush1.bf16.msra.mxu0 0
    %3396 = vmatprep.subr.bf16.mxu0 0
    %3397 = vmatpush1.bf16.msra.mxu0 0
    %3398 = vmatprep.subr.bf16.mxu0 0
    %3399 = vmatpush1.bf16.msra.mxu0 0
    %3400 = vmatprep.subr.bf16.mxu0 0
    %3401 = vmatpush1.bf16.msra.mxu0 0
    %3402 = vmatprep.subr.bf16.mxu0 0
    %3403 = vmatpush1.bf16.msra.mxu0 0
    %3404 = vmatprep.subr.bf16.mxu0 0
    %3405 = vmatpush1.bf16.msra.mxu0 0
    %3406 = vmatprep.subr.bf16.mxu0 0
    %3407 = vmatpush1.bf16.msra.mxu0 0
    %3408 = vmatprep.subr.bf16.mxu0 0
    %3409 = vmatpush1.bf16.msra.mxu0 0
    %3410 = vmatprep.subr.bf16.mxu0 0
    %3411 = vmatpush1.bf16.msra.mxu0 0
    %3412 = vmatprep.subr.bf16.mxu0 0
    %3413 = vmatpush1.bf16.msra.mxu0 0
    %3414 = vmatprep.subr.bf16.mxu0 0
    %3415 = vmatpush1.bf16.msra.mxu0 0
    %3416 = vmatprep.subr.bf16.mxu0 0
    %3417 = vmatpush1.bf16.msra.mxu0 0
    %3418 = vmatprep.mubr.bf16.mxu0 0
    %3419 = vmatmul.mubr.bf16.gmra.mrb[0].mxu0 %v3063
    %v3420 = vpop.f32.mrb[0].mxu0
    %v3421 = vadd.f32 %v1662, %v3420
    %v3422 = vpop.f32.mrb[0].mxu0
    %v3423 = vadd.f32 %v1663, %v3422
    %v3424 = vpop.f32.mrb[0].mxu0
    %v3425 = vadd.f32 %v1694, %v3424
    %v3426 = vpop.f32.mrb[0].mxu0
    %v3427 = vadd.f32 %v1695, %v3426
    %3428 = vmatprep.mubr.bf16.mxu0 0
    %3429 = vmatmul.mubr.bf16.gmra.mrb[0].mxu0 %v3066
    %v3430 = vpop.f32.mrb[0].mxu0
    %v3431 = vadd.f32 %v1726, %v3430
    %v3432 = vpop.f32.mrb[0].mxu0
    %v3433 = vadd.f32 %v1727, %v3432
    %v3434 = vpop.f32.mrb[0].mxu0
    %v3435 = vadd.f32 %v1758, %v3434
    %v3436 = vpop.f32.mrb[0].mxu0
    %v3437 = vadd.f32 %v1759, %v3436
    %3438 = vdwg.mxu0
    %3439 = vmatprep.subr.bf16.mxu0 %v3003
    %3440 = vmatpush1.bf16.msra.mxu0 %v3002
    %3441 = vmatprep.subr.bf16.mxu0 %v3035
    %3442 = vmatpush1.bf16.msra.mxu0 %v3034
    %3443 = vmatprep.subr.bf16.mxu0 0
    %3444 = vmatpush1.bf16.msra.mxu0 0
    %3445 = vmatprep.subr.bf16.mxu0 0
    %3446 = vmatpush1.bf16.msra.mxu0 0
    %3447 = vmatprep.subr.bf16.mxu0 0
    %3448 = vmatpush1.bf16.msra.mxu0 0
    %3449 = vmatprep.subr.bf16.mxu0 0
    %3450 = vmatpush1.bf16.msra.mxu0 0
    %3451 = vmatprep.subr.bf16.mxu0 0
    %3452 = vmatpush1.bf16.msra.mxu0 0
    %3453 = vmatprep.subr.bf16.mxu0 0
    %3454 = vmatpush1.bf16.msra.mxu0 0
    %3455 = vmatprep.subr.bf16.mxu0 0
    %3456 = vmatpush1.bf16.msra.mxu0 0
    %3457 = vmatprep.subr.bf16.mxu0 0
    %3458 = vmatpush1.bf16.msra.mxu0 0
    %3459 = vmatprep.subr.bf16.mxu0 0
    %3460 = vmatpush1.bf16.msra.mxu0 0
    %3461 = vmatprep.subr.bf16.mxu0 0
    %3462 = vmatpush1.bf16.msra.mxu0 0
    %3463 = vmatprep.subr.bf16.mxu0 0
    %3464 = vmatpush1.bf16.msra.mxu0 0
    %3465 = vmatprep.subr.bf16.mxu0 0
    %3466 = vmatpush1.bf16.msra.mxu0 0
    %3467 = vmatprep.subr.bf16.mxu0 0
    %3468 = vmatpush1.bf16.msra.mxu0 0
    %3469 = vmatprep.subr.bf16.mxu0 0
    %3470 = vmatpush1.bf16.msra.mxu0 0
    %3471 = vmatprep.mubr.bf16.mxu0 0
    %3472 = vmatmul.mubr.bf16.gmra.mrb[0].mxu0 %v3063
    %v3473 = vpop.f32.mrb[0].mxu0
    %v3474 = vadd.f32 %v1664, %v3473
    %v3475 = vpop.f32.mrb[0].mxu0
    %v3476 = vadd.f32 %v1665, %v3475
    %v3477 = vpop.f32.mrb[0].mxu0
    %v3478 = vadd.f32 %v1696, %v3477
    %v3479 = vpop.f32.mrb[0].mxu0
    %v3480 = vadd.f32 %v1697, %v3479
    %3481 = vmatprep.mubr.bf16.mxu0 0
    %3482 = vmatmul.mubr.bf16.gmra.mrb[0].mxu0 %v3066
    %v3483 = vpop.f32.mrb[0].mxu0
    %v3484 = vadd.f32 %v1728, %v3483
    %v3485 = vpop.f32.mrb[0].mxu0
    %v3486 = vadd.f32 %v1729, %v3485
    %v3487 = vpop.f32.mrb[0].mxu0
    %v3488 = vadd.f32 %v1760, %v3487
    %v3489 = vpop.f32.mrb[0].mxu0
    %v3490 = vadd.f32 %v1761, %v3489
    %3491 = vdwg.mxu0
    %3492 = vmatprep.subr.bf16.mxu0 %v3005
    %3493 = vmatpush1.bf16.msra.mxu0 %v3004
    %3494 = vmatprep.subr.bf16.mxu0 %v3037
    %3495 = vmatpush1.bf16.msra.mxu0 %v3036
    %3496 = vmatprep.subr.bf16.mxu0 0
    %3497 = vmatpush1.bf16.msra.mxu0 0
    %3498 = vmatprep.subr.bf16.mxu0 0
    %3499 = vmatpush1.bf16.msra.mxu0 0
    %3500 = vmatprep.subr.bf16.mxu0 0
    %3501 = vmatpush1.bf16.msra.mxu0 0
    %3502 = vmatprep.subr.bf16.mxu0 0
    %3503 = vmatpush1.bf16.msra.mxu0 0
    %3504 = vmatprep.subr.bf16.mxu0 0
    %3505 = vmatpush1.bf16.msra.mxu0 0
    %3506 = vmatprep.subr.bf16.mxu0 0
    %3507 = vmatpush1.bf16.msra.mxu0 0
    %3508 = vmatprep.subr.bf16.mxu0 0
    %3509 = vmatpush1.bf16.msra.mxu0 0
    %3510 = vmatprep.subr.bf16.mxu0 0
    %3511 = vmatpush1.bf16.msra.mxu0 0
    %3512 = vmatprep.subr.bf16.mxu0 0
    %3513 = vmatpush1.bf16.msra.mxu0 0
    %3514 = vmatprep.subr.bf16.mxu0 0
    %3515 = vmatpush1.bf16.msra.mxu0 0
    %3516 = vmatprep.subr.bf16.mxu0 0
    %3517 = vmatpush1.bf16.msra.mxu0 0
    %3518 = vmatprep.subr.bf16.mxu0 0
    %3519 = vmatpush1.bf16.msra.mxu0 0
    %3520 = vmatprep.subr.bf16.mxu0 0
    %3521 = vmatpush1.bf16.msra.mxu0 0
    %3522 = vmatprep.subr.bf16.mxu0 0
    %3523 = vmatpush1.bf16.msra.mxu0 0
    %3524 = vmatprep.mubr.bf16.mxu0 0
    %3525 = vmatmul.mubr.bf16.gmra.mrb[0].mxu0 %v3063
    %v3526 = vpop.f32.mrb[0].mxu0
    %v3527 = vadd.f32 %v1666, %v3526
    %v3528 = vpop.f32.mrb[0].mxu0
    %v3529 = vadd.f32 %v1667, %v3528
    %v3530 = vpop.f32.mrb[0].mxu0
    %v3531 = vadd.f32 %v1698, %v3530
    %v3532 = vpop.f32.mrb[0].mxu0
    %v3533 = vadd.f32 %v1699, %v3532
    %3534 = vmatprep.mubr.bf16.mxu0 0
    %3535 = vmatmul.mubr.bf16.gmra.mrb[0].mxu0 %v3066
    %v3536 = vpop.f32.mrb[0].mxu0
    %v3537 = vadd.f32 %v1730, %v3536
    %v3538 = vpop.f32.mrb[0].mxu0
    %v3539 = vadd.f32 %v1731, %v3538
    %v3540 = vpop.f32.mrb[0].mxu0
    %v3541 = vadd.f32 %v1762, %v3540
    %v3542 = vpop.f32.mrb[0].mxu0
    %v3543 = vadd.f32 %v1763, %v3542
    %3544 = vdwg.mxu0
    %3545 = vmatprep.subr.bf16.mxu0 %v3007
    %3546 = vmatpush1.bf16.msra.mxu0 %v3006
    %3547 = vmatprep.subr.bf16.mxu0 %v3039
    %3548 = vmatpush1.bf16.msra.mxu0 %v3038
    %3549 = vmatprep.subr.bf16.mxu0 0
    %3550 = vmatpush1.bf16.msra.mxu0 0
    %3551 = vmatprep.subr.bf16.mxu0 0
    %3552 = vmatpush1.bf16.msra.mxu0 0
    %3553 = vmatprep.subr.bf16.mxu0 0
    %3554 = vmatpush1.bf16.msra.mxu0 0
    %3555 = vmatprep.subr.bf16.mxu0 0
    %3556 = vmatpush1.bf16.msra.mxu0 0
    %3557 = vmatprep.subr.bf16.mxu0 0
    %3558 = vmatpush1.bf16.msra.mxu0 0
    %3559 = vmatprep.subr.bf16.mxu0 0
    %3560 = vmatpush1.bf16.msra.mxu0 0
    %3561 = vmatprep.subr.bf16.mxu0 0
    %3562 = vmatpush1.bf16.msra.mxu0 0
    %3563 = vmatprep.subr.bf16.mxu0 0
    %3564 = vmatpush1.bf16.msra.mxu0 0
    %3565 = vmatprep.subr.bf16.mxu0 0
    %3566 = vmatpush1.bf16.msra.mxu0 0
    %3567 = vmatprep.subr.bf16.mxu0 0
    %3568 = vmatpush1.bf16.msra.mxu0 0
    %3569 = vmatprep.subr.bf16.mxu0 0
    %3570 = vmatpush1.bf16.msra.mxu0 0
    %3571 = vmatprep.subr.bf16.mxu0 0
    %3572 = vmatpush1.bf16.msra.mxu0 0
    %3573 = vmatprep.subr.bf16.mxu0 0
    %3574 = vmatpush1.bf16.msra.mxu0 0
    %3575 = vmatprep.subr.bf16.mxu0 0
    %3576 = vmatpush1.bf16.msra.mxu0 0
    %3577 = vmatprep.mubr.bf16.mxu0 0
    %3578 = vmatmul.mubr.bf16.gmra.mrb[0].mxu0 %v3063
    %v3579 = vpop.f32.mrb[0].mxu0
    %v3580 = vadd.f32 %v1668, %v3579
    %v3581 = vpop.f32.mrb[0].mxu0
    %v3582 = vadd.f32 %v1669, %v3581
    %v3583 = vpop.f32.mrb[0].mxu0
    %v3584 = vadd.f32 %v1700, %v3583
    %v3585 = vpop.f32.mrb[0].mxu0
    %v3586 = vadd.f32 %v1701, %v3585
    %3587 = vmatprep.mubr.bf16.mxu0 0
    %3588 = vmatmul.mubr.bf16.gmra.mrb[0].mxu0 %v3066
    %v3589 = vpop.f32.mrb[0].mxu0
    %v3590 = vadd.f32 %v1732, %v3589
    %v3591 = vpop.f32.mrb[0].mxu0
    %v3592 = vadd.f32 %v1733, %v3591
    %v3593 = vpop.f32.mrb[0].mxu0
    %v3594 = vadd.f32 %v1764, %v3593
    %v3595 = vpop.f32.mrb[0].mxu0
    %v3596 = vadd.f32 %v1765, %v3595
    %3597 = vdwg.mxu0
    %3598 = vmatprep.subr.bf16.mxu0 %v3009
    %3599 = vmatpush1.bf16.msra.mxu0 %v3008
    %3600 = vmatprep.subr.bf16.mxu0 %v3041
    %3601 = vmatpush1.bf16.msra.mxu0 %v3040
    %3602 = vmatprep.subr.bf16.mxu0 0
    %3603 = vmatpush1.bf16.msra.mxu0 0
    %3604 = vmatprep.subr.bf16.mxu0 0
    %3605 = vmatpush1.bf16.msra.mxu0 0
    %3606 = vmatprep.subr.bf16.mxu0 0
    %3607 = vmatpush1.bf16.msra.mxu0 0
    %3608 = vmatprep.subr.bf16.mxu0 0
    %3609 = vmatpush1.bf16.msra.mxu0 0
    %3610 = vmatprep.subr.bf16.mxu0 0
    %3611 = vmatpush1.bf16.msra.mxu0 0
    %3612 = vmatprep.subr.bf16.mxu0 0
    %3613 = vmatpush1.bf16.msra.mxu0 0
    %3614 = vmatprep.subr.bf16.mxu0 0
    %3615 = vmatpush1.bf16.msra.mxu0 0
    %3616 = vmatprep.subr.bf16.mxu0 0
    %3617 = vmatpush1.bf16.msra.mxu0 0
    %3618 = vmatprep.subr.bf16.mxu0 0
    %3619 = vmatpush1.bf16.msra.mxu0 0
    %3620 = vmatprep.subr.bf16.mxu0 0
    %3621 = vmatpush1.bf16.msra.mxu0 0
    %3622 = vmatprep.subr.bf16.mxu0 0
    %3623 = vmatpush1.bf16.msra.mxu0 0
    %3624 = vmatprep.subr.bf16.mxu0 0
    %3625 = vmatpush1.bf16.msra.mxu0 0
    %3626 = vmatprep.subr.bf16.mxu0 0
    %3627 = vmatpush1.bf16.msra.mxu0 0
    %3628 = vmatprep.subr.bf16.mxu0 0
    %3629 = vmatpush1.bf16.msra.mxu0 0
    %3630 = vmatprep.mubr.bf16.mxu0 0
    %3631 = vmatmul.mubr.bf16.gmra.mrb[0].mxu0 %v3063
    %v3632 = vpop.f32.mrb[0].mxu0
    %v3633 = vadd.f32 %v1670, %v3632
    %v3634 = vpop.f32.mrb[0].mxu0
    %v3635 = vadd.f32 %v1671, %v3634
    %v3636 = vpop.f32.mrb[0].mxu0
    %v3637 = vadd.f32 %v1702, %v3636
    %v3638 = vpop.f32.mrb[0].mxu0
    %v3639 = vadd.f32 %v1703, %v3638
    %3640 = vmatprep.mubr.bf16.mxu0 0
    %3641 = vmatmul.mubr.bf16.gmra.mrb[0].mxu0 %v3066
    %v3642 = vpop.f32.mrb[0].mxu0
    %v3643 = vadd.f32 %v1734, %v3642
    %v3644 = vpop.f32.mrb[0].mxu0
    %v3645 = vadd.f32 %v1735, %v3644
    %v3646 = vpop.f32.mrb[0].mxu0
    %v3647 = vadd.f32 %v1766, %v3646
    %v3648 = vpop.f32.mrb[0].mxu0
    %v3649 = vadd.f32 %v1767, %v3648
    %3650 = vdwg.mxu0
    %3651 = vmatprep.subr.bf16.mxu0 %v3011
    %3652 = vmatpush1.bf16.msra.mxu0 %v3010
    %3653 = vmatprep.subr.bf16.mxu0 %v3043
    %3654 = vmatpush1.bf16.msra.mxu0 %v3042
    %3655 = vmatprep.subr.bf16.mxu0 0
    %3656 = vmatpush1.bf16.msra.mxu0 0
    %3657 = vmatprep.subr.bf16.mxu0 0
    %3658 = vmatpush1.bf16.msra.mxu0 0
    %3659 = vmatprep.subr.bf16.mxu0 0
    %3660 = vmatpush1.bf16.msra.mxu0 0
    %3661 = vmatprep.subr.bf16.mxu0 0
    %3662 = vmatpush1.bf16.msra.mxu0 0
    %3663 = vmatprep.subr.bf16.mxu0 0
    %3664 = vmatpush1.bf16.msra.mxu0 0
    %3665 = vmatprep.subr.bf16.mxu0 0
    %3666 = vmatpush1.bf16.msra.mxu0 0
    %3667 = vmatprep.subr.bf16.mxu0 0
    %3668 = vmatpush1.bf16.msra.mxu0 0
    %3669 = vmatprep.subr.bf16.mxu0 0
    %3670 = vmatpush1.bf16.msra.mxu0 0
    %3671 = vmatprep.subr.bf16.mxu0 0
    %3672 = vmatpush1.bf16.msra.mxu0 0
    %3673 = vmatprep.subr.bf16.mxu0 0
    %3674 = vmatpush1.bf16.msra.mxu0 0
    %3675 = vmatprep.subr.bf16.mxu0 0
    %3676 = vmatpush1.bf16.msra.mxu0 0
    %3677 = vmatprep.subr.bf16.mxu0 0
    %3678 = vmatpush1.bf16.msra.mxu0 0
    %3679 = vmatprep.subr.bf16.mxu0 0
    %3680 = vmatpush1.bf16.msra.mxu0 0
    %3681 = vmatprep.subr.bf16.mxu0 0
    %3682 = vmatpush1.bf16.msra.mxu0 0
    %3683 = vmatprep.mubr.bf16.mxu0 0
    %3684 = vmatmul.mubr.bf16.gmra.mrb[0].mxu0 %v3063
    %v3685 = vpop.f32.mrb[0].mxu0
    %v3686 = vadd.f32 %v1672, %v3685
    %v3687 = vpop.f32.mrb[0].mxu0
    %v3688 = vadd.f32 %v1673, %v3687
    %v3689 = vpop.f32.mrb[0].mxu0
    %v3690 = vadd.f32 %v1704, %v3689
    %v3691 = vpop.f32.mrb[0].mxu0
    %v3692 = vadd.f32 %v1705, %v3691
    %3693 = vmatprep.mubr.bf16.mxu0 0
    %3694 = vmatmul.mubr.bf16.gmra.mrb[0].mxu0 %v3066
    %v3695 = vpop.f32.mrb[0].mxu0
    %v3696 = vadd.f32 %v1736, %v3695
    %v3697 = vpop.f32.mrb[0].mxu0
    %v3698 = vadd.f32 %v1737, %v3697
    %v3699 = vpop.f32.mrb[0].mxu0
    %v3700 = vadd.f32 %v1768, %v3699
    %v3701 = vpop.f32.mrb[0].mxu0
    %v3702 = vadd.f32 %v1769, %v3701
    %3703 = vdwg.mxu0
    %3704 = vmatprep.subr.bf16.mxu0 %v3013
    %3705 = vmatpush1.bf16.msra.mxu0 %v3012
    %3706 = vmatprep.subr.bf16.mxu0 %v3045
    %3707 = vmatpush1.bf16.msra.mxu0 %v3044
    %3708 = vmatprep.subr.bf16.mxu0 0
    %3709 = vmatpush1.bf16.msra.mxu0 0
    %3710 = vmatprep.subr.bf16.mxu0 0
    %3711 = vmatpush1.bf16.msra.mxu0 0
    %3712 = vmatprep.subr.bf16.mxu0 0
    %3713 = vmatpush1.bf16.msra.mxu0 0
    %3714 = vmatprep.subr.bf16.mxu0 0
    %3715 = vmatpush1.bf16.msra.mxu0 0
    %3716 = vmatprep.subr.bf16.mxu0 0
    %3717 = vmatpush1.bf16.msra.mxu0 0
    %3718 = vmatprep.subr.bf16.mxu0 0
    %3719 = vmatpush1.bf16.msra.mxu0 0
    %3720 = vmatprep.subr.bf16.mxu0 0
    %3721 = vmatpush1.bf16.msra.mxu0 0
    %3722 = vmatprep.subr.bf16.mxu0 0
    %3723 = vmatpush1.bf16.msra.mxu0 0
    %3724 = vmatprep.subr.bf16.mxu0 0
    %3725 = vmatpush1.bf16.msra.mxu0 0
    %3726 = vmatprep.subr.bf16.mxu0 0
    %3727 = vmatpush1.bf16.msra.mxu0 0
    %3728 = vmatprep.subr.bf16.mxu0 0
    %3729 = vmatpush1.bf16.msra.mxu0 0
    %3730 = vmatprep.subr.bf16.mxu0 0
    %3731 = vmatpush1.bf16.msra.mxu0 0
    %3732 = vmatprep.subr.bf16.mxu0 0
    %3733 = vmatpush1.bf16.msra.mxu0 0
    %3734 = vmatprep.subr.bf16.mxu0 0
    %3735 = vmatpush1.bf16.msra.mxu0 0
    %3736 = vmatprep.mubr.bf16.mxu0 0
    %3737 = vmatmul.mubr.bf16.gmra.mrb[0].mxu0 %v3063
    %v3738 = vpop.f32.mrb[0].mxu0
    %v3739 = vadd.f32 %v1674, %v3738
    %v3740 = vpop.f32.mrb[0].mxu0
    %v3741 = vadd.f32 %v1675, %v3740
    %v3742 = vpop.f32.mrb[0].mxu0
    %v3743 = vadd.f32 %v1706, %v3742
    %v3744 = vpop.f32.mrb[0].mxu0
    %v3745 = vadd.f32 %v1707, %v3744
    %3746 = vmatprep.mubr.bf16.mxu0 0
    %3747 = vmatmul.mubr.bf16.gmra.mrb[0].mxu0 %v3066
    %v3748 = vpop.f32.mrb[0].mxu0
    %v3749 = vadd.f32 %v1738, %v3748
    %v3750 = vpop.f32.mrb[0].mxu0
    %v3751 = vadd.f32 %v1739, %v3750
    %v3752 = vpop.f32.mrb[0].mxu0
    %v3753 = vadd.f32 %v1770, %v3752
    %v3754 = vpop.f32.mrb[0].mxu0
    %v3755 = vadd.f32 %v1771, %v3754
    %3756 = vdwg.mxu0
    %3757 = vmatprep.subr.bf16.mxu0 %v3015
    %3758 = vmatpush1.bf16.msra.mxu0 %v3014
    %3759 = vmatprep.subr.bf16.mxu0 %v3047
    %3760 = vmatpush1.bf16.msra.mxu0 %v3046
    %3761 = vmatprep.subr.bf16.mxu0 0
    %3762 = vmatpush1.bf16.msra.mxu0 0
    %3763 = vmatprep.subr.bf16.mxu0 0
    %3764 = vmatpush1.bf16.msra.mxu0 0
    %3765 = vmatprep.subr.bf16.mxu0 0
    %3766 = vmatpush1.bf16.msra.mxu0 0
    %3767 = vmatprep.subr.bf16.mxu0 0
    %3768 = vmatpush1.bf16.msra.mxu0 0
    %3769 = vmatprep.subr.bf16.mxu0 0
    %3770 = vmatpush1.bf16.msra.mxu0 0
    %3771 = vmatprep.subr.bf16.mxu0 0
    %3772 = vmatpush1.bf16.msra.mxu0 0
    %3773 = vmatprep.subr.bf16.mxu0 0
    %3774 = vmatpush1.bf16.msra.mxu0 0
    %3775 = vmatprep.subr.bf16.mxu0 0
    %3776 = vmatpush1.bf16.msra.mxu0 0
    %3777 = vmatprep.subr.bf16.mxu0 0
    %3778 = vmatpush1.bf16.msra.mxu0 0
    %3779 = vmatprep.subr.bf16.mxu0 0
    %3780 = vmatpush1.bf16.msra.mxu0 0
    %3781 = vmatprep.subr.bf16.mxu0 0
    %3782 = vmatpush1.bf16.msra.mxu0 0
    %3783 = vmatprep.subr.bf16.mxu0 0
    %3784 = vmatpush1.bf16.msra.mxu0 0
    %3785 = vmatprep.subr.bf16.mxu0 0
    %3786 = vmatpush1.bf16.msra.mxu0 0
    %3787 = vmatprep.subr.bf16.mxu0 0
    %3788 = vmatpush1.bf16.msra.mxu0 0
    %3789 = vmatprep.mubr.bf16.mxu0 0
    %3790 = vmatmul.mubr.bf16.gmra.mrb[0].mxu0 %v3063
    %v3791 = vpop.f32.mrb[0].mxu0
    %v3792 = vadd.f32 %v1676, %v3791
    %v3793 = vpop.f32.mrb[0].mxu0
    %v3794 = vadd.f32 %v1677, %v3793
    %v3795 = vpop.f32.mrb[0].mxu0
    %v3796 = vadd.f32 %v1708, %v3795
    %v3797 = vpop.f32.mrb[0].mxu0
    %v3798 = vadd.f32 %v1709, %v3797
    %3799 = vmatprep.mubr.bf16.mxu0 0
    %3800 = vmatmul.mubr.bf16.gmra.mrb[0].mxu0 %v3066
    %v3801 = vpop.f32.mrb[0].mxu0
    %v3802 = vadd.f32 %v1740, %v3801
    %v3803 = vpop.f32.mrb[0].mxu0
    %v3804 = vadd.f32 %v1741, %v3803
    %v3805 = vpop.f32.mrb[0].mxu0
    %v3806 = vadd.f32 %v1772, %v3805
    %v3807 = vpop.f32.mrb[0].mxu0
    %v3808 = vadd.f32 %v1773, %v3807
    %3809 = vdwg.mxu0
    %3810 = vmatprep.subr.bf16.mxu0 %v3017
    %3811 = vmatpush1.bf16.msra.mxu0 %v3016
    %3812 = vmatprep.subr.bf16.mxu0 %v3049
    %3813 = vmatpush1.bf16.msra.mxu0 %v3048
    %3814 = vmatprep.subr.bf16.mxu0 0
    %3815 = vmatpush1.bf16.msra.mxu0 0
    %3816 = vmatprep.subr.bf16.mxu0 0
    %3817 = vmatpush1.bf16.msra.mxu0 0
    %3818 = vmatprep.subr.bf16.mxu0 0
    %3819 = vmatpush1.bf16.msra.mxu0 0
    %3820 = vmatprep.subr.bf16.mxu0 0
    %3821 = vmatpush1.bf16.msra.mxu0 0
    %3822 = vmatprep.subr.bf16.mxu0 0
    %3823 = vmatpush1.bf16.msra.mxu0 0
    %3824 = vmatprep.subr.bf16.mxu0 0
    %3825 = vmatpush1.bf16.msra.mxu0 0
    %3826 = vmatprep.subr.bf16.mxu0 0
    %3827 = vmatpush1.bf16.msra.mxu0 0
    %3828 = vmatprep.subr.bf16.mxu0 0
    %3829 = vmatpush1.bf16.msra.mxu0 0
    %3830 = vmatprep.subr.bf16.mxu0 0
    %3831 = vmatpush1.bf16.msra.mxu0 0
    %3832 = vmatprep.subr.bf16.mxu0 0
    %3833 = vmatpush1.bf16.msra.mxu0 0
    %3834 = vmatprep.subr.bf16.mxu0 0
    %3835 = vmatpush1.bf16.msra.mxu0 0
    %3836 = vmatprep.subr.bf16.mxu0 0
    %3837 = vmatpush1.bf16.msra.mxu0 0
    %3838 = vmatprep.subr.bf16.mxu0 0
    %3839 = vmatpush1.bf16.msra.mxu0 0
    %3840 = vmatprep.subr.bf16.mxu0 0
    %3841 = vmatpush1.bf16.msra.mxu0 0
    %3842 = vmatprep.mubr.bf16.mxu0 0
    %3843 = vmatmul.mubr.bf16.gmra.mrb[0].mxu0 %v3063
    %v3844 = vpop.f32.mrb[0].mxu0
    %v3845 = vadd.f32 %v1678, %v3844
    %v3846 = vpop.f32.mrb[0].mxu0
    %v3847 = vadd.f32 %v1679, %v3846
    %v3848 = vpop.f32.mrb[0].mxu0
    %v3849 = vadd.f32 %v1710, %v3848
    %v3850 = vpop.f32.mrb[0].mxu0
    %v3851 = vadd.f32 %v1711, %v3850
    %3852 = vmatprep.mubr.bf16.mxu0 0
    %3853 = vmatmul.mubr.bf16.gmra.mrb[0].mxu0 %v3066
    %v3854 = vpop.f32.mrb[0].mxu0
    %v3855 = vadd.f32 %v1742, %v3854
    %v3856 = vpop.f32.mrb[0].mxu0
    %v3857 = vadd.f32 %v1743, %v3856
    %v3858 = vpop.f32.mrb[0].mxu0
    %v3859 = vadd.f32 %v1774, %v3858
    %v3860 = vpop.f32.mrb[0].mxu0
    %v3861 = vadd.f32 %v1775, %v3860
    %3862 = vdwg.mxu0
    %3863 = vmatprep.subr.bf16.mxu0 %v3019
    %3864 = vmatpush1.bf16.msra.mxu0 %v3018
    %3865 = vmatprep.subr.bf16.mxu0 %v3051
    %3866 = vmatpush1.bf16.msra.mxu0 %v3050
    %3867 = vmatprep.subr.bf16.mxu0 0
    %3868 = vmatpush1.bf16.msra.mxu0 0
    %3869 = vmatprep.subr.bf16.mxu0 0
    %3870 = vmatpush1.bf16.msra.mxu0 0
    %3871 = vmatprep.subr.bf16.mxu0 0
    %3872 = vmatpush1.bf16.msra.mxu0 0
    %3873 = vmatprep.subr.bf16.mxu0 0
    %3874 = vmatpush1.bf16.msra.mxu0 0
    %3875 = vmatprep.subr.bf16.mxu0 0
    %3876 = vmatpush1.bf16.msra.mxu0 0
    %3877 = vmatprep.subr.bf16.mxu0 0
    %3878 = vmatpush1.bf16.msra.mxu0 0
    %3879 = vmatprep.subr.bf16.mxu0 0
    %3880 = vmatpush1.bf16.msra.mxu0 0
    %3881 = vmatprep.subr.bf16.mxu0 0
    %3882 = vmatpush1.bf16.msra.mxu0 0
    %3883 = vmatprep.subr.bf16.mxu0 0
    %3884 = vmatpush1.bf16.msra.mxu0 0
    %3885 = vmatprep.subr.bf16.mxu0 0
    %3886 = vmatpush1.bf16.msra.mxu0 0
    %3887 = vmatprep.subr.bf16.mxu0 0
    %3888 = vmatpush1.bf16.msra.mxu0 0
    %3889 = vmatprep.subr.bf16.mxu0 0
    %3890 = vmatpush1.bf16.msra.mxu0 0
    %3891 = vmatprep.subr.bf16.mxu0 0
    %3892 = vmatpush1.bf16.msra.mxu0 0
    %3893 = vmatprep.subr.bf16.mxu0 0
    %3894 = vmatpush1.bf16.msra.mxu0 0
    %3895 = vmatprep.mubr.bf16.mxu0 0
    %3896 = vmatmul.mubr.bf16.gmra.mrb[0].mxu0 %v3063
    %v3897 = vpop.f32.mrb[0].mxu0
    %v3898 = vadd.f32 %v1680, %v3897
    %v3899 = vpop.f32.mrb[0].mxu0
    %v3900 = vadd.f32 %v1681, %v3899
    %v3901 = vpop.f32.mrb[0].mxu0
    %v3902 = vadd.f32 %v1712, %v3901
    %v3903 = vpop.f32.mrb[0].mxu0
    %v3904 = vadd.f32 %v1713, %v3903
    %3905 = vmatprep.mubr.bf16.mxu0 0
    %3906 = vmatmul.mubr.bf16.gmra.mrb[0].mxu0 %v3066
    %v3907 = vpop.f32.mrb[0].mxu0
    %v3908 = vadd.f32 %v1744, %v3907
    %v3909 = vpop.f32.mrb[0].mxu0
    %v3910 = vadd.f32 %v1745, %v3909
    %v3911 = vpop.f32.mrb[0].mxu0
    %v3912 = vadd.f32 %v1776, %v3911
    %v3913 = vpop.f32.mrb[0].mxu0
    %v3914 = vadd.f32 %v1777, %v3913
    %3915 = vdwg.mxu0
    %v3916 = vmax.f32 %v3103, 0.0
    %v3917 = vmax.f32 %v3105, 0.0
    %v3918 = vmax.f32 %v3156, 0.0
    %v3919 = vmax.f32 %v3158, 0.0
    %v3920 = vmax.f32 %v3209, 0.0
    %v3921 = vmax.f32 %v3211, 0.0
    %v3922 = vmax.f32 %v3262, 0.0
    %v3923 = vmax.f32 %v3264, 0.0
    %v3924 = vmax.f32 %v3315, 0.0
    %v3925 = vmax.f32 %v3317, 0.0
    %v3926 = vmax.f32 %v3368, 0.0
    %v3927 = vmax.f32 %v3370, 0.0
    %v3928 = vmax.f32 %v3421, 0.0
    %v3929 = vmax.f32 %v3423, 0.0
    %v3930 = vmax.f32 %v3474, 0.0
    %v3931 = vmax.f32 %v3476, 0.0
    %v3932 = vmax.f32 %v3527, 0.0
    %v3933 = vmax.f32 %v3529, 0.0
    %v3934 = vmax.f32 %v3580, 0.0
    %v3935 = vmax.f32 %v3582, 0.0
    %v3936 = vmax.f32 %v3633, 0.0
    %v3937 = vmax.f32 %v3635, 0.0
    %v3938 = vmax.f32 %v3686, 0.0
    %v3939 = vmax.f32 %v3688, 0.0
    %v3940 = vmax.f32 %v3739, 0.0
    %v3941 = vmax.f32 %v3741, 0.0
    %v3942 = vmax.f32 %v3792, 0.0
    %v3943 = vmax.f32 %v3794, 0.0
    %v3944 = vmax.f32 %v3845, 0.0
    %v3945 = vmax.f32 %v3847, 0.0
    %v3946 = vmax.f32 %v3898, 0.0
    %v3947 = vmax.f32 %v3900, 0.0
    %v3948 = vmax.f32 %v3107, 0.0
    %v3949 = vmax.f32 %v3109, 0.0
    %v3950 = vmax.f32 %v3160, 0.0
    %v3951 = vmax.f32 %v3162, 0.0
    %v3952 = vmax.f32 %v3213, 0.0
    %v3953 = vmax.f32 %v3215, 0.0
    %v3954 = vmax.f32 %v3266, 0.0
    %v3955 = vmax.f32 %v3268, 0.0
    %v3956 = vmax.f32 %v3319, 0.0
    %v3957 = vmax.f32 %v3321, 0.0
    %v3958 = vmax.f32 %v3372, 0.0
    %v3959 = vmax.f32 %v3374, 0.0
    %v3960 = vmax.f32 %v3425, 0.0
    %v3961 = vmax.f32 %v3427, 0.0
    %v3962 = vmax.f32 %v3478, 0.0
    %v3963 = vmax.f32 %v3480, 0.0
    %v3964 = vmax.f32 %v3531, 0.0
    %v3965 = vmax.f32 %v3533, 0.0
    %v3966 = vmax.f32 %v3584, 0.0
    %v3967 = vmax.f32 %v3586, 0.0
    %v3968 = vmax.f32 %v3637, 0.0
    %v3969 = vmax.f32 %v3639, 0.0
    %v3970 = vmax.f32 %v3690, 0.0
    %v3971 = vmax.f32 %v3692, 0.0
    %v3972 = vmax.f32 %v3743, 0.0
    %v3973 = vmax.f32 %v3745, 0.0
    %v3974 = vmax.f32 %v3796, 0.0
    %v3975 = vmax.f32 %v3798, 0.0
    %v3976 = vmax.f32 %v3849, 0.0
    %v3977 = vmax.f32 %v3851, 0.0
    %v3978 = vmax.f32 %v3902, 0.0
    %v3979 = vmax.f32 %v3904, 0.0
    %v3980 = vmax.f32 %v3113, 0.0
    %v3981 = vmax.f32 %v3115, 0.0
    %v3982 = vmax.f32 %v3166, 0.0
    %v3983 = vmax.f32 %v3168, 0.0
    %v3984 = vmax.f32 %v3219, 0.0
    %v3985 = vmax.f32 %v3221, 0.0
    %v3986 = vmax.f32 %v3272, 0.0
    %v3987 = vmax.f32 %v3274, 0.0
    %v3988 = vmax.f32 %v3325, 0.0
    %v3989 = vmax.f32 %v3327, 0.0
    %v3990 = vmax.f32 %v3378, 0.0
    %v3991 = vmax.f32 %v3380, 0.0
    %v3992 = vmax.f32 %v3431, 0.0
    %v3993 = vmax.f32 %v3433, 0.0
    %v3994 = vmax.f32 %v3484, 0.0
    %v3995 = vmax.f32 %v3486, 0.0
    %v3996 = vmax.f32 %v3537, 0.0
    %v3997 = vmax.f32 %v3539, 0.0
    %v3998 = vmax.f32 %v3590, 0.0
    %v3999 = vmax.f32 %v3592, 0.0
    %v4000 = vmax.f32 %v3643, 0.0
    %v4001 = vmax.f32 %v3645, 0.0
    %v4002 = vmax.f32 %v3696, 0.0
    %v4003 = vmax.f32 %v3698, 0.0
    %v4004 = vmax.f32 %v3749, 0.0
    %v4005 = vmax.f32 %v3751, 0.0
    %v4006 = vmax.f32 %v3802, 0.0
    %v4007 = vmax.f32 %v3804, 0.0
    %v4008 = vmax.f32 %v3855, 0.0
    %v4009 = vmax.f32 %v3857, 0.0
    %v4010 = vmax.f32 %v3908, 0.0
    %v4011 = vmax.f32 %v3910, 0.0
    %v4012 = vmax.f32 %v3117, 0.0
    %v4013 = vmax.f32 %v3119, 0.0
    %v4014 = vmax.f32 %v3170, 0.0
    %v4015 = vmax.f32 %v3172, 0.0
    %v4016 = vmax.f32 %v3223, 0.0
    %v4017 = vmax.f32 %v3225, 0.0
    %v4018 = vmax.f32 %v3276, 0.0
    %v4019 = vmax.f32 %v3278, 0.0
    %v4020 = vmax.f32 %v3329, 0.0
    %v4021 = vmax.f32 %v3331, 0.0
    %v4022 = vmax.f32 %v3382, 0.0
    %v4023 = vmax.f32 %v3384, 0.0
    %v4024 = vmax.f32 %v3435, 0.0
    %v4025 = vmax.f32 %v3437, 0.0
    %v4026 = vmax.f32 %v3488, 0.0
    %v4027 = vmax.f32 %v3490, 0.0
    %v4028 = vmax.f32 %v3541, 0.0
    %v4029 = vmax.f32 %v3543, 0.0
    %v4030 = vmax.f32 %v3594, 0.0
    %v4031 = vmax.f32 %v3596, 0.0
    %v4032 = vmax.f32 %v3647, 0.0
    %v4033 = vmax.f32 %v3649, 0.0
    %v4034 = vmax.f32 %v3700, 0.0
    %v4035 = vmax.f32 %v3702, 0.0
    %v4036 = vmax.f32 %v3753, 0.0
    %v4037 = vmax.f32 %v3755, 0.0
    %v4038 = vmax.f32 %v3806, 0.0
    %v4039 = vmax.f32 %v3808, 0.0
    %v4040 = vmax.f32 %v3859, 0.0
    %v4041 = vmax.f32 %v3861, 0.0
    %v4042 = vmax.f32 %v3912, 0.0
    %v4043 = vmax.f32 %v3914, 0.0
    %s4044 = scalar_lea.vmem [#allocation5], 32
    %v4045 = vld [vmem:[%s4044] sm:$0xf]
    %v4046 = vld [vmem:[%s4044 + $0x4] sm:$0xf]
    %v4047 = vld [vmem:[%s4044 + $0x8] sm:$0xf]
    %v4048 = vld [vmem:[%s4044 + $0xc] sm:$0xf]
    %v4049 = vpack.c.bf16 %v3948, %v3916
    %v4050 = vpack.c.bf16 %v3949, %v3917
    %v4051 = vpack.c.bf16 %v3950, %v3918
    %v4052 = vpack.c.bf16 %v3951, %v3919
    %v4053 = vpack.c.bf16 %v3952, %v3920
    %v4054 = vpack.c.bf16 %v3953, %v3921
    %v4055 = vpack.c.bf16 %v3954, %v3922
    %v4056 = vpack.c.bf16 %v3955, %v3923
    %v4057 = vpack.c.bf16 %v3956, %v3924
    %v4058 = vpack.c.bf16 %v3957, %v3925
    %v4059 = vpack.c.bf16 %v3958, %v3926
    %v4060 = vpack.c.bf16 %v3959, %v3927
    %v4061 = vpack.c.bf16 %v3960, %v3928
    %v4062 = vpack.c.bf16 %v3961, %v3929
    %v4063 = vpack.c.bf16 %v3962, %v3930
    %v4064 = vpack.c.bf16 %v3963, %v3931
    %v4065 = vpack.c.bf16 %v3964, %v3932
    %v4066 = vpack.c.bf16 %v3965, %v3933
    %v4067 = vpack.c.bf16 %v3966, %v3934
    %v4068 = vpack.c.bf16 %v3967, %v3935
    %v4069 = vpack.c.bf16 %v3968, %v3936
    %v4070 = vpack.c.bf16 %v3969, %v3937
    %v4071 = vpack.c.bf16 %v3970, %v3938
    %v4072 = vpack.c.bf16 %v3971, %v3939
    %v4073 = vpack.c.bf16 %v3972, %v3940
    %v4074 = vpack.c.bf16 %v3973, %v3941
    %v4075 = vpack.c.bf16 %v3974, %v3942
    %v4076 = vpack.c.bf16 %v3975, %v3943
    %v4077 = vpack.c.bf16 %v3976, %v3944
    %v4078 = vpack.c.bf16 %v3977, %v3945
    %v4079 = vpack.c.bf16 %v3978, %v3946
    %v4080 = vpack.c.bf16 %v3979, %v3947
    %v4081 = vpack.c.bf16 %v4012, %v3980
    %v4082 = vpack.c.bf16 %v4013, %v3981
    %v4083 = vpack.c.bf16 %v4014, %v3982
    %v4084 = vpack.c.bf16 %v4015, %v3983
    %v4085 = vpack.c.bf16 %v4016, %v3984
    %v4086 = vpack.c.bf16 %v4017, %v3985
    %v4087 = vpack.c.bf16 %v4018, %v3986
    %v4088 = vpack.c.bf16 %v4019, %v3987
    %v4089 = vpack.c.bf16 %v4020, %v3988
    %v4090 = vpack.c.bf16 %v4021, %v3989
    %v4091 = vpack.c.bf16 %v4022, %v3990
    %v4092 = vpack.c.bf16 %v4023, %v3991
    %v4093 = vpack.c.bf16 %v4024, %v3992
    %v4094 = vpack.c.bf16 %v4025, %v3993
    %v4095 = vpack.c.bf16 %v4026, %v3994
    %v4096 = vpack.c.bf16 %v4027, %v3995
    %v4097 = vpack.c.bf16 %v4028, %v3996
    %v4098 = vpack.c.bf16 %v4029, %v3997
    %v4099 = vpack.c.bf16 %v4030, %v3998
    %v4100 = vpack.c.bf16 %v4031, %v3999
    %v4101 = vpack.c.bf16 %v4032, %v4000
    %v4102 = vpack.c.bf16 %v4033, %v4001
    %v4103 = vpack.c.bf16 %v4034, %v4002
    %v4104 = vpack.c.bf16 %v4035, %v4003
    %v4105 = vpack.c.bf16 %v4036, %v4004
    %v4106 = vpack.c.bf16 %v4037, %v4005
    %v4107 = vpack.c.bf16 %v4038, %v4006
    %v4108 = vpack.c.bf16 %v4039, %v4007
    %v4109 = vpack.c.bf16 %v4040, %v4008
    %v4110 = vpack.c.bf16 %v4041, %v4009
    %v4111 = vpack.c.bf16 %v4042, %v4010
    %v4112 = vpack.c.bf16 %v4043, %v4011
    %4113 = vset.pattern.permute.xlu0 7
    %4114 = vperm.xlu0 %4113, %v66
    %v4115 = vpop.permute.xlu0 %4114
    %4117 = vset.pattern.permute.xlu0 7
    %4118 = vperm.xlu0 %4117, %v67
    %v4119 = vpop.permute.xlu0 %4118
    %4121 = vset.pattern.permute.xlu0 7
    %4122 = vperm.xlu0 %4121, %v68
    %v4123 = vpop.permute.xlu0 %4122
    %4125 = vset.pattern.permute.xlu0 7
    %4126 = vperm.xlu0 %4125, %v69
    %v4127 = vpop.permute.xlu0 %4126
    %v4133 = vunpack.c.l.b16 %v4045
    %v4134 = vunpack.c.l.b16 %v4046
    %v4135 = vunpack.c.l.b16 %v4047
    %v4136 = vunpack.c.l.b16 %v4048
    %v4137 = vpack.c.b16 %v4134, %v4133
    %v4138 = vpack.c.b16 %v4136, %v4135
    %v4140 = vsel %vm2000, %v4137, 0
    %v4143 = vsel %vm2000, %v4138, 0
    %4145 = vmatprep.subr.bf16.mxu0 %v4050
    %4146 = vmatpush1.bf16.msra.mxu0 %v4049
    %4147 = vmatprep.subr.bf16.mxu0 %v4082
    %4148 = vmatpush1.bf16.msra.mxu0 %v4081
    %4149 = vmatprep.subr.bf16.mxu0 0
    %4150 = vmatpush1.bf16.msra.mxu0 0
    %4151 = vmatprep.subr.bf16.mxu0 0
    %4152 = vmatpush1.bf16.msra.mxu0 0
    %4153 = vmatprep.subr.bf16.mxu0 0
    %4154 = vmatpush1.bf16.msra.mxu0 0
    %4155 = vmatprep.subr.bf16.mxu0 0
    %4156 = vmatpush1.bf16.msra.mxu0 0
    %4157 = vmatprep.subr.bf16.mxu0 0
    %4158 = vmatpush1.bf16.msra.mxu0 0
    %4159 = vmatprep.subr.bf16.mxu0 0
    %4160 = vmatpush1.bf16.msra.mxu0 0
    %4161 = vmatprep.subr.bf16.mxu0 0
    %4162 = vmatpush1.bf16.msra.mxu0 0
    %4163 = vmatprep.subr.bf16.mxu0 0
    %4164 = vmatpush1.bf16.msra.mxu0 0
    %4165 = vmatprep.subr.bf16.mxu0 0
    %4166 = vmatpush1.bf16.msra.mxu0 0
    %4167 = vmatprep.subr.bf16.mxu0 0
    %4168 = vmatpush1.bf16.msra.mxu0 0
    %4169 = vmatprep.subr.bf16.mxu0 0
    %4170 = vmatpush1.bf16.msra.mxu0 0
    %4171 = vmatprep.subr.bf16.mxu0 0
    %4172 = vmatpush1.bf16.msra.mxu0 0
    %4173 = vmatprep.subr.bf16.mxu0 0
    %4174 = vmatpush1.bf16.msra.mxu0 0
    %4175 = vmatprep.subr.bf16.mxu0 0
    %4176 = vmatpush1.bf16.msra.mxu0 0
    %4177 = vmatprep.mubr.bf16.mxu0 0
    %4178 = vmatmul.mubr.bf16.gmra.mrb[0].mxu0 %v4140
    %v4179 = vpop.f32.mrb[0].mxu0
    %v4180 = vadd.f32 %v4115, %v4179
    %v4181 = vpop.f32.mrb[0].mxu0
    %v4182 = vadd.f32 %v4115, %v4181
    %v4183 = vpop.f32.mrb[0].mxu0
    %v4184 = vadd.f32 %v4119, %v4183
    %v4185 = vpop.f32.mrb[0].mxu0
    %v4186 = vadd.f32 %v4119, %v4185
    %4187 = vmatprep.mubr.bf16.mxu0 0
    %4188 = vmatmul.mubr.bf16.gmra.mrb[0].mxu0 %v4143
    %v4189 = vpop.f32.mrb[0].mxu0
    %v4190 = vadd.f32 %v4123, %v4189
    %v4191 = vpop.f32.mrb[0].mxu0
    %v4192 = vadd.f32 %v4123, %v4191
    %v4193 = vpop.f32.mrb[0].mxu0
    %v4194 = vadd.f32 %v4127, %v4193
    %v4195 = vpop.f32.mrb[0].mxu0
    %v4196 = vadd.f32 %v4127, %v4195
    %4197 = vdwg.mxu0
    %4198 = vmatprep.subr.bf16.mxu0 %v4052
    %4199 = vmatpush1.bf16.msra.mxu0 %v4051
    %4200 = vmatprep.subr.bf16.mxu0 %v4084
    %4201 = vmatpush1.bf16.msra.mxu0 %v4083
    %4202 = vmatprep.subr.bf16.mxu0 0
    %4203 = vmatpush1.bf16.msra.mxu0 0
    %4204 = vmatprep.subr.bf16.mxu0 0
    %4205 = vmatpush1.bf16.msra.mxu0 0
    %4206 = vmatprep.subr.bf16.mxu0 0
    %4207 = vmatpush1.bf16.msra.mxu0 0
    %4208 = vmatprep.subr.bf16.mxu0 0
    %4209 = vmatpush1.bf16.msra.mxu0 0
    %4210 = vmatprep.subr.bf16.mxu0 0
    %4211 = vmatpush1.bf16.msra.mxu0 0
    %4212 = vmatprep.subr.bf16.mxu0 0
    %4213 = vmatpush1.bf16.msra.mxu0 0
    %4214 = vmatprep.subr.bf16.mxu0 0
    %4215 = vmatpush1.bf16.msra.mxu0 0
    %4216 = vmatprep.subr.bf16.mxu0 0
    %4217 = vmatpush1.bf16.msra.mxu0 0
    %4218 = vmatprep.subr.bf16.mxu0 0
    %4219 = vmatpush1.bf16.msra.mxu0 0
    %4220 = vmatprep.subr.bf16.mxu0 0
    %4221 = vmatpush1.bf16.msra.mxu0 0
    %4222 = vmatprep.subr.bf16.mxu0 0
    %4223 = vmatpush1.bf16.msra.mxu0 0
    %4224 = vmatprep.subr.bf16.mxu0 0
    %4225 = vmatpush1.bf16.msra.mxu0 0
    %4226 = vmatprep.subr.bf16.mxu0 0
    %4227 = vmatpush1.bf16.msra.mxu0 0
    %4228 = vmatprep.subr.bf16.mxu0 0
    %4229 = vmatpush1.bf16.msra.mxu0 0
    %4230 = vmatprep.mubr.bf16.mxu0 0
    %4231 = vmatmul.mubr.bf16.gmra.mrb[0].mxu0 %v4140
    %v4232 = vpop.f32.mrb[0].mxu0
    %v4233 = vadd.f32 %v4115, %v4232
    %v4234 = vpop.f32.mrb[0].mxu0
    %v4235 = vadd.f32 %v4115, %v4234
    %v4236 = vpop.f32.mrb[0].mxu0
    %v4237 = vadd.f32 %v4119, %v4236
    %v4238 = vpop.f32.mrb[0].mxu0
    %v4239 = vadd.f32 %v4119, %v4238
    %4240 = vmatprep.mubr.bf16.mxu0 0
    %4241 = vmatmul.mubr.bf16.gmra.mrb[0].mxu0 %v4143
    %v4242 = vpop.f32.mrb[0].mxu0
    %v4243 = vadd.f32 %v4123, %v4242
    %v4244 = vpop.f32.mrb[0].mxu0
    %v4245 = vadd.f32 %v4123, %v4244
    %v4246 = vpop.f32.mrb[0].mxu0
    %v4247 = vadd.f32 %v4127, %v4246
    %v4248 = vpop.f32.mrb[0].mxu0
    %v4249 = vadd.f32 %v4127, %v4248
    %4250 = vdwg.mxu0
    %4251 = vmatprep.subr.bf16.mxu0 %v4054
    %4252 = vmatpush1.bf16.msra.mxu0 %v4053
    %4253 = vmatprep.subr.bf16.mxu0 %v4086
    %4254 = vmatpush1.bf16.msra.mxu0 %v4085
    %4255 = vmatprep.subr.bf16.mxu0 0
    %4256 = vmatpush1.bf16.msra.mxu0 0
    %4257 = vmatprep.subr.bf16.mxu0 0
    %4258 = vmatpush1.bf16.msra.mxu0 0
    %4259 = vmatprep.subr.bf16.mxu0 0
    %4260 = vmatpush1.bf16.msra.mxu0 0
    %4261 = vmatprep.subr.bf16.mxu0 0
    %4262 = vmatpush1.bf16.msra.mxu0 0
    %4263 = vmatprep.subr.bf16.mxu0 0
    %4264 = vmatpush1.bf16.msra.mxu0 0
    %4265 = vmatprep.subr.bf16.mxu0 0
    %4266 = vmatpush1.bf16.msra.mxu0 0
    %4267 = vmatprep.subr.bf16.mxu0 0
    %4268 = vmatpush1.bf16.msra.mxu0 0
    %4269 = vmatprep.subr.bf16.mxu0 0
    %4270 = vmatpush1.bf16.msra.mxu0 0
    %4271 = vmatprep.subr.bf16.mxu0 0
    %4272 = vmatpush1.bf16.msra.mxu0 0
    %4273 = vmatprep.subr.bf16.mxu0 0
    %4274 = vmatpush1.bf16.msra.mxu0 0
    %4275 = vmatprep.subr.bf16.mxu0 0
    %4276 = vmatpush1.bf16.msra.mxu0 0
    %4277 = vmatprep.subr.bf16.mxu0 0
    %4278 = vmatpush1.bf16.msra.mxu0 0
    %4279 = vmatprep.subr.bf16.mxu0 0
    %4280 = vmatpush1.bf16.msra.mxu0 0
    %4281 = vmatprep.subr.bf16.mxu0 0
    %4282 = vmatpush1.bf16.msra.mxu0 0
    %4283 = vmatprep.mubr.bf16.mxu0 0
    %4284 = vmatmul.mubr.bf16.gmra.mrb[0].mxu0 %v4140
    %v4285 = vpop.f32.mrb[0].mxu0
    %v4286 = vadd.f32 %v4115, %v4285
    %v4287 = vpop.f32.mrb[0].mxu0
    %v4288 = vadd.f32 %v4115, %v4287
    %v4289 = vpop.f32.mrb[0].mxu0
    %v4290 = vadd.f32 %v4119, %v4289
    %v4291 = vpop.f32.mrb[0].mxu0
    %v4292 = vadd.f32 %v4119, %v4291
    %4293 = vmatprep.mubr.bf16.mxu0 0
    %4294 = vmatmul.mubr.bf16.gmra.mrb[0].mxu0 %v4143
    %v4295 = vpop.f32.mrb[0].mxu0
    %v4296 = vadd.f32 %v4123, %v4295
    %v4297 = vpop.f32.mrb[0].mxu0
    %v4298 = vadd.f32 %v4123, %v4297
    %v4299 = vpop.f32.mrb[0].mxu0
    %v4300 = vadd.f32 %v4127, %v4299
    %v4301 = vpop.f32.mrb[0].mxu0
    %v4302 = vadd.f32 %v4127, %v4301
    %4303 = vdwg.mxu0
    %4304 = vmatprep.subr.bf16.mxu0 %v4056
    %4305 = vmatpush1.bf16.msra.mxu0 %v4055
    %4306 = vmatprep.subr.bf16.mxu0 %v4088
    %4307 = vmatpush1.bf16.msra.mxu0 %v4087
    %4308 = vmatprep.subr.bf16.mxu0 0
    %4309 = vmatpush1.bf16.msra.mxu0 0
    %4310 = vmatprep.subr.bf16.mxu0 0
    %4311 = vmatpush1.bf16.msra.mxu0 0
    %4312 = vmatprep.subr.bf16.mxu0 0
    %4313 = vmatpush1.bf16.msra.mxu0 0
    %4314 = vmatprep.subr.bf16.mxu0 0
    %4315 = vmatpush1.bf16.msra.mxu0 0
    %4316 = vmatprep.subr.bf16.mxu0 0
    %4317 = vmatpush1.bf16.msra.mxu0 0
    %4318 = vmatprep.subr.bf16.mxu0 0
    %4319 = vmatpush1.bf16.msra.mxu0 0
    %4320 = vmatprep.subr.bf16.mxu0 0
    %4321 = vmatpush1.bf16.msra.mxu0 0
    %4322 = vmatprep.subr.bf16.mxu0 0
    %4323 = vmatpush1.bf16.msra.mxu0 0
    %4324 = vmatprep.subr.bf16.mxu0 0
    %4325 = vmatpush1.bf16.msra.mxu0 0
    %4326 = vmatprep.subr.bf16.mxu0 0
    %4327 = vmatpush1.bf16.msra.mxu0 0
    %4328 = vmatprep.subr.bf16.mxu0 0
    %4329 = vmatpush1.bf16.msra.mxu0 0
    %4330 = vmatprep.subr.bf16.mxu0 0
    %4331 = vmatpush1.bf16.msra.mxu0 0
    %4332 = vmatprep.subr.bf16.mxu0 0
    %4333 = vmatpush1.bf16.msra.mxu0 0
    %4334 = vmatprep.subr.bf16.mxu0 0
    %4335 = vmatpush1.bf16.msra.mxu0 0
    %4336 = vmatprep.mubr.bf16.mxu0 0
    %4337 = vmatmul.mubr.bf16.gmra.mrb[0].mxu0 %v4140
    %v4338 = vpop.f32.mrb[0].mxu0
    %v4339 = vadd.f32 %v4115, %v4338
    %v4340 = vpop.f32.mrb[0].mxu0
    %v4341 = vadd.f32 %v4115, %v4340
    %v4342 = vpop.f32.mrb[0].mxu0
    %v4343 = vadd.f32 %v4119, %v4342
    %v4344 = vpop.f32.mrb[0].mxu0
    %v4345 = vadd.f32 %v4119, %v4344
    %4346 = vmatprep.mubr.bf16.mxu0 0
    %4347 = vmatmul.mubr.bf16.gmra.mrb[0].mxu0 %v4143
    %v4348 = vpop.f32.mrb[0].mxu0
    %v4349 = vadd.f32 %v4123, %v4348
    %v4350 = vpop.f32.mrb[0].mxu0
    %v4351 = vadd.f32 %v4123, %v4350
    %v4352 = vpop.f32.mrb[0].mxu0
    %v4353 = vadd.f32 %v4127, %v4352
    %v4354 = vpop.f32.mrb[0].mxu0
    %v4355 = vadd.f32 %v4127, %v4354
    %4356 = vdwg.mxu0
    %4357 = vmatprep.subr.bf16.mxu0 %v4058
    %4358 = vmatpush1.bf16.msra.mxu0 %v4057
    %4359 = vmatprep.subr.bf16.mxu0 %v4090
    %4360 = vmatpush1.bf16.msra.mxu0 %v4089
    %4361 = vmatprep.subr.bf16.mxu0 0
    %4362 = vmatpush1.bf16.msra.mxu0 0
    %4363 = vmatprep.subr.bf16.mxu0 0
    %4364 = vmatpush1.bf16.msra.mxu0 0
    %4365 = vmatprep.subr.bf16.mxu0 0
    %4366 = vmatpush1.bf16.msra.mxu0 0
    %4367 = vmatprep.subr.bf16.mxu0 0
    %4368 = vmatpush1.bf16.msra.mxu0 0
    %4369 = vmatprep.subr.bf16.mxu0 0
    %4370 = vmatpush1.bf16.msra.mxu0 0
    %4371 = vmatprep.subr.bf16.mxu0 0
    %4372 = vmatpush1.bf16.msra.mxu0 0
    %4373 = vmatprep.subr.bf16.mxu0 0
    %4374 = vmatpush1.bf16.msra.mxu0 0
    %4375 = vmatprep.subr.bf16.mxu0 0
    %4376 = vmatpush1.bf16.msra.mxu0 0
    %4377 = vmatprep.subr.bf16.mxu0 0
    %4378 = vmatpush1.bf16.msra.mxu0 0
    %4379 = vmatprep.subr.bf16.mxu0 0
    %4380 = vmatpush1.bf16.msra.mxu0 0
    %4381 = vmatprep.subr.bf16.mxu0 0
    %4382 = vmatpush1.bf16.msra.mxu0 0
    %4383 = vmatprep.subr.bf16.mxu0 0
    %4384 = vmatpush1.bf16.msra.mxu0 0
    %4385 = vmatprep.subr.bf16.mxu0 0
    %4386 = vmatpush1.bf16.msra.mxu0 0
    %4387 = vmatprep.subr.bf16.mxu0 0
    %4388 = vmatpush1.bf16.msra.mxu0 0
    %4389 = vmatprep.mubr.bf16.mxu0 0
    %4390 = vmatmul.mubr.bf16.gmra.mrb[0].mxu0 %v4140
    %v4391 = vpop.f32.mrb[0].mxu0
    %v4392 = vadd.f32 %v4115, %v4391
    %v4393 = vpop.f32.mrb[0].mxu0
    %v4394 = vadd.f32 %v4115, %v4393
    %v4395 = vpop.f32.mrb[0].mxu0
    %v4396 = vadd.f32 %v4119, %v4395
    %v4397 = vpop.f32.mrb[0].mxu0
    %v4398 = vadd.f32 %v4119, %v4397
    %4399 = vmatprep.mubr.bf16.mxu0 0
    %4400 = vmatmul.mubr.bf16.gmra.mrb[0].mxu0 %v4143
    %v4401 = vpop.f32.mrb[0].mxu0
    %v4402 = vadd.f32 %v4123, %v4401
    %v4403 = vpop.f32.mrb[0].mxu0
    %v4404 = vadd.f32 %v4123, %v4403
    %v4405 = vpop.f32.mrb[0].mxu0
    %v4406 = vadd.f32 %v4127, %v4405
    %v4407 = vpop.f32.mrb[0].mxu0
    %v4408 = vadd.f32 %v4127, %v4407
    %4409 = vdwg.mxu0
    %4410 = vmatprep.subr.bf16.mxu0 %v4060
    %4411 = vmatpush1.bf16.msra.mxu0 %v4059
    %4412 = vmatprep.subr.bf16.mxu0 %v4092
    %4413 = vmatpush1.bf16.msra.mxu0 %v4091
    %4414 = vmatprep.subr.bf16.mxu0 0
    %4415 = vmatpush1.bf16.msra.mxu0 0
    %4416 = vmatprep.subr.bf16.mxu0 0
    %4417 = vmatpush1.bf16.msra.mxu0 0
    %4418 = vmatprep.subr.bf16.mxu0 0
    %4419 = vmatpush1.bf16.msra.mxu0 0
    %4420 = vmatprep.subr.bf16.mxu0 0
    %4421 = vmatpush1.bf16.msra.mxu0 0
    %4422 = vmatprep.subr.bf16.mxu0 0
    %4423 = vmatpush1.bf16.msra.mxu0 0
    %4424 = vmatprep.subr.bf16.mxu0 0
    %4425 = vmatpush1.bf16.msra.mxu0 0
    %4426 = vmatprep.subr.bf16.mxu0 0
    %4427 = vmatpush1.bf16.msra.mxu0 0
    %4428 = vmatprep.subr.bf16.mxu0 0
    %4429 = vmatpush1.bf16.msra.mxu0 0
    %4430 = vmatprep.subr.bf16.mxu0 0
    %4431 = vmatpush1.bf16.msra.mxu0 0
    %4432 = vmatprep.subr.bf16.mxu0 0
    %4433 = vmatpush1.bf16.msra.mxu0 0
    %4434 = vmatprep.subr.bf16.mxu0 0
    %4435 = vmatpush1.bf16.msra.mxu0 0
    %4436 = vmatprep.subr.bf16.mxu0 0
    %4437 = vmatpush1.bf16.msra.mxu0 0
    %4438 = vmatprep.subr.bf16.mxu0 0
    %4439 = vmatpush1.bf16.msra.mxu0 0
    %4440 = vmatprep.subr.bf16.mxu0 0
    %4441 = vmatpush1.bf16.msra.mxu0 0
    %4442 = vmatprep.mubr.bf16.mxu0 0
    %4443 = vmatmul.mubr.bf16.gmra.mrb[0].mxu0 %v4140
    %v4444 = vpop.f32.mrb[0].mxu0
    %v4445 = vadd.f32 %v4115, %v4444
    %v4446 = vpop.f32.mrb[0].mxu0
    %v4447 = vadd.f32 %v4115, %v4446
    %v4448 = vpop.f32.mrb[0].mxu0
    %v4449 = vadd.f32 %v4119, %v4448
    %v4450 = vpop.f32.mrb[0].mxu0
    %v4451 = vadd.f32 %v4119, %v4450
    %4452 = vmatprep.mubr.bf16.mxu0 0
    %4453 = vmatmul.mubr.bf16.gmra.mrb[0].mxu0 %v4143
    %v4454 = vpop.f32.mrb[0].mxu0
    %v4455 = vadd.f32 %v4123, %v4454
    %v4456 = vpop.f32.mrb[0].mxu0
    %v4457 = vadd.f32 %v4123, %v4456
    %v4458 = vpop.f32.mrb[0].mxu0
    %v4459 = vadd.f32 %v4127, %v4458
    %v4460 = vpop.f32.mrb[0].mxu0
    %v4461 = vadd.f32 %v4127, %v4460
    %4462 = vdwg.mxu0
    %4463 = vmatprep.subr.bf16.mxu0 %v4062
    %4464 = vmatpush1.bf16.msra.mxu0 %v4061
    %4465 = vmatprep.subr.bf16.mxu0 %v4094
    %4466 = vmatpush1.bf16.msra.mxu0 %v4093
    %4467 = vmatprep.subr.bf16.mxu0 0
    %4468 = vmatpush1.bf16.msra.mxu0 0
    %4469 = vmatprep.subr.bf16.mxu0 0
    %4470 = vmatpush1.bf16.msra.mxu0 0
    %4471 = vmatprep.subr.bf16.mxu0 0
    %4472 = vmatpush1.bf16.msra.mxu0 0
    %4473 = vmatprep.subr.bf16.mxu0 0
    %4474 = vmatpush1.bf16.msra.mxu0 0
    %4475 = vmatprep.subr.bf16.mxu0 0
    %4476 = vmatpush1.bf16.msra.mxu0 0
    %4477 = vmatprep.subr.bf16.mxu0 0
    %4478 = vmatpush1.bf16.msra.mxu0 0
    %4479 = vmatprep.subr.bf16.mxu0 0
    %4480 = vmatpush1.bf16.msra.mxu0 0
    %4481 = vmatprep.subr.bf16.mxu0 0
    %4482 = vmatpush1.bf16.msra.mxu0 0
    %4483 = vmatprep.subr.bf16.mxu0 0
    %4484 = vmatpush1.bf16.msra.mxu0 0
    %4485 = vmatprep.subr.bf16.mxu0 0
    %4486 = vmatpush1.bf16.msra.mxu0 0
    %4487 = vmatprep.subr.bf16.mxu0 0
    %4488 = vmatpush1.bf16.msra.mxu0 0
    %4489 = vmatprep.subr.bf16.mxu0 0
    %4490 = vmatpush1.bf16.msra.mxu0 0
    %4491 = vmatprep.subr.bf16.mxu0 0
    %4492 = vmatpush1.bf16.msra.mxu0 0
    %4493 = vmatprep.subr.bf16.mxu0 0
    %4494 = vmatpush1.bf16.msra.mxu0 0
    %4495 = vmatprep.mubr.bf16.mxu0 0
    %4496 = vmatmul.mubr.bf16.gmra.mrb[0].mxu0 %v4140
    %v4497 = vpop.f32.mrb[0].mxu0
    %v4498 = vadd.f32 %v4115, %v4497
    %v4499 = vpop.f32.mrb[0].mxu0
    %v4500 = vadd.f32 %v4115, %v4499
    %v4501 = vpop.f32.mrb[0].mxu0
    %v4502 = vadd.f32 %v4119, %v4501
    %v4503 = vpop.f32.mrb[0].mxu0
    %v4504 = vadd.f32 %v4119, %v4503
    %4505 = vmatprep.mubr.bf16.mxu0 0
    %4506 = vmatmul.mubr.bf16.gmra.mrb[0].mxu0 %v4143
    %v4507 = vpop.f32.mrb[0].mxu0
    %v4508 = vadd.f32 %v4123, %v4507
    %v4509 = vpop.f32.mrb[0].mxu0
    %v4510 = vadd.f32 %v4123, %v4509
    %v4511 = vpop.f32.mrb[0].mxu0
    %v4512 = vadd.f32 %v4127, %v4511
    %v4513 = vpop.f32.mrb[0].mxu0
    %v4514 = vadd.f32 %v4127, %v4513
    %4515 = vdwg.mxu0
    %4516 = vmatprep.subr.bf16.mxu0 %v4064
    %4517 = vmatpush1.bf16.msra.mxu0 %v4063
    %4518 = vmatprep.subr.bf16.mxu0 %v4096
    %4519 = vmatpush1.bf16.msra.mxu0 %v4095
    %4520 = vmatprep.subr.bf16.mxu0 0
    %4521 = vmatpush1.bf16.msra.mxu0 0
    %4522 = vmatprep.subr.bf16.mxu0 0
    %4523 = vmatpush1.bf16.msra.mxu0 0
    %4524 = vmatprep.subr.bf16.mxu0 0
    %4525 = vmatpush1.bf16.msra.mxu0 0
    %4526 = vmatprep.subr.bf16.mxu0 0
    %4527 = vmatpush1.bf16.msra.mxu0 0
    %4528 = vmatprep.subr.bf16.mxu0 0
    %4529 = vmatpush1.bf16.msra.mxu0 0
    %4530 = vmatprep.subr.bf16.mxu0 0
    %4531 = vmatpush1.bf16.msra.mxu0 0
    %4532 = vmatprep.subr.bf16.mxu0 0
    %4533 = vmatpush1.bf16.msra.mxu0 0
    %4534 = vmatprep.subr.bf16.mxu0 0
    %4535 = vmatpush1.bf16.msra.mxu0 0
    %4536 = vmatprep.subr.bf16.mxu0 0
    %4537 = vmatpush1.bf16.msra.mxu0 0
    %4538 = vmatprep.subr.bf16.mxu0 0
    %4539 = vmatpush1.bf16.msra.mxu0 0
    %4540 = vmatprep.subr.bf16.mxu0 0
    %4541 = vmatpush1.bf16.msra.mxu0 0
    %4542 = vmatprep.subr.bf16.mxu0 0
    %4543 = vmatpush1.bf16.msra.mxu0 0
    %4544 = vmatprep.subr.bf16.mxu0 0
    %4545 = vmatpush1.bf16.msra.mxu0 0
    %4546 = vmatprep.subr.bf16.mxu0 0
    %4547 = vmatpush1.bf16.msra.mxu0 0
    %4548 = vmatprep.mubr.bf16.mxu0 0
    %4549 = vmatmul.mubr.bf16.gmra.mrb[0].mxu0 %v4140
    %v4550 = vpop.f32.mrb[0].mxu0
    %v4551 = vadd.f32 %v4115, %v4550
    %v4552 = vpop.f32.mrb[0].mxu0
    %v4553 = vadd.f32 %v4115, %v4552
    %v4554 = vpop.f32.mrb[0].mxu0
    %v4555 = vadd.f32 %v4119, %v4554
    %v4556 = vpop.f32.mrb[0].mxu0
    %v4557 = vadd.f32 %v4119, %v4556
    %4558 = vmatprep.mubr.bf16.mxu0 0
    %4559 = vmatmul.mubr.bf16.gmra.mrb[0].mxu0 %v4143
    %v4560 = vpop.f32.mrb[0].mxu0
    %v4561 = vadd.f32 %v4123, %v4560
    %v4562 = vpop.f32.mrb[0].mxu0
    %v4563 = vadd.f32 %v4123, %v4562
    %v4564 = vpop.f32.mrb[0].mxu0
    %v4565 = vadd.f32 %v4127, %v4564
    %v4566 = vpop.f32.mrb[0].mxu0
    %v4567 = vadd.f32 %v4127, %v4566
    %4568 = vdwg.mxu0
    %4569 = vmatprep.subr.bf16.mxu0 %v4066
    %4570 = vmatpush1.bf16.msra.mxu0 %v4065
    %4571 = vmatprep.subr.bf16.mxu0 %v4098
    %4572 = vmatpush1.bf16.msra.mxu0 %v4097
    %4573 = vmatprep.subr.bf16.mxu0 0
    %4574 = vmatpush1.bf16.msra.mxu0 0
    %4575 = vmatprep.subr.bf16.mxu0 0
    %4576 = vmatpush1.bf16.msra.mxu0 0
    %4577 = vmatprep.subr.bf16.mxu0 0
    %4578 = vmatpush1.bf16.msra.mxu0 0
    %4579 = vmatprep.subr.bf16.mxu0 0
    %4580 = vmatpush1.bf16.msra.mxu0 0
    %4581 = vmatprep.subr.bf16.mxu0 0
    %4582 = vmatpush1.bf16.msra.mxu0 0
    %4583 = vmatprep.subr.bf16.mxu0 0
    %4584 = vmatpush1.bf16.msra.mxu0 0
    %4585 = vmatprep.subr.bf16.mxu0 0
    %4586 = vmatpush1.bf16.msra.mxu0 0
    %4587 = vmatprep.subr.bf16.mxu0 0
    %4588 = vmatpush1.bf16.msra.mxu0 0
    %4589 = vmatprep.subr.bf16.mxu0 0
    %4590 = vmatpush1.bf16.msra.mxu0 0
    %4591 = vmatprep.subr.bf16.mxu0 0
    %4592 = vmatpush1.bf16.msra.mxu0 0
    %4593 = vmatprep.subr.bf16.mxu0 0
    %4594 = vmatpush1.bf16.msra.mxu0 0
    %4595 = vmatprep.subr.bf16.mxu0 0
    %4596 = vmatpush1.bf16.msra.mxu0 0
    %4597 = vmatprep.subr.bf16.mxu0 0
    %4598 = vmatpush1.bf16.msra.mxu0 0
    %4599 = vmatprep.subr.bf16.mxu0 0
    %4600 = vmatpush1.bf16.msra.mxu0 0
    %4601 = vmatprep.mubr.bf16.mxu0 0
    %4602 = vmatmul.mubr.bf16.gmra.mrb[0].mxu0 %v4140
    %v4603 = vpop.f32.mrb[0].mxu0
    %v4604 = vadd.f32 %v4115, %v4603
    %v4605 = vpop.f32.mrb[0].mxu0
    %v4606 = vadd.f32 %v4115, %v4605
    %v4607 = vpop.f32.mrb[0].mxu0
    %v4608 = vadd.f32 %v4119, %v4607
    %v4609 = vpop.f32.mrb[0].mxu0
    %v4610 = vadd.f32 %v4119, %v4609
    %4611 = vmatprep.mubr.bf16.mxu0 0
    %4612 = vmatmul.mubr.bf16.gmra.mrb[0].mxu0 %v4143
    %v4613 = vpop.f32.mrb[0].mxu0
    %v4614 = vadd.f32 %v4123, %v4613
    %v4615 = vpop.f32.mrb[0].mxu0
    %v4616 = vadd.f32 %v4123, %v4615
    %v4617 = vpop.f32.mrb[0].mxu0
    %v4618 = vadd.f32 %v4127, %v4617
    %v4619 = vpop.f32.mrb[0].mxu0
    %v4620 = vadd.f32 %v4127, %v4619
    %4621 = vdwg.mxu0
    %4622 = vmatprep.subr.bf16.mxu0 %v4068
    %4623 = vmatpush1.bf16.msra.mxu0 %v4067
    %4624 = vmatprep.subr.bf16.mxu0 %v4100
    %4625 = vmatpush1.bf16.msra.mxu0 %v4099
    %4626 = vmatprep.subr.bf16.mxu0 0
    %4627 = vmatpush1.bf16.msra.mxu0 0
    %4628 = vmatprep.subr.bf16.mxu0 0
    %4629 = vmatpush1.bf16.msra.mxu0 0
    %4630 = vmatprep.subr.bf16.mxu0 0
    %4631 = vmatpush1.bf16.msra.mxu0 0
    %4632 = vmatprep.subr.bf16.mxu0 0
    %4633 = vmatpush1.bf16.msra.mxu0 0
    %4634 = vmatprep.subr.bf16.mxu0 0
    %4635 = vmatpush1.bf16.msra.mxu0 0
    %4636 = vmatprep.subr.bf16.mxu0 0
    %4637 = vmatpush1.bf16.msra.mxu0 0
    %4638 = vmatprep.subr.bf16.mxu0 0
    %4639 = vmatpush1.bf16.msra.mxu0 0
    %4640 = vmatprep.subr.bf16.mxu0 0
    %4641 = vmatpush1.bf16.msra.mxu0 0
    %4642 = vmatprep.subr.bf16.mxu0 0
    %4643 = vmatpush1.bf16.msra.mxu0 0
    %4644 = vmatprep.subr.bf16.mxu0 0
    %4645 = vmatpush1.bf16.msra.mxu0 0
    %4646 = vmatprep.subr.bf16.mxu0 0
    %4647 = vmatpush1.bf16.msra.mxu0 0
    %4648 = vmatprep.subr.bf16.mxu0 0
    %4649 = vmatpush1.bf16.msra.mxu0 0
    %4650 = vmatprep.subr.bf16.mxu0 0
    %4651 = vmatpush1.bf16.msra.mxu0 0
    %4652 = vmatprep.subr.bf16.mxu0 0
    %4653 = vmatpush1.bf16.msra.mxu0 0
    %4654 = vmatprep.mubr.bf16.mxu0 0
    %4655 = vmatmul.mubr.bf16.gmra.mrb[0].mxu0 %v4140
    %v4656 = vpop.f32.mrb[0].mxu0
    %v4657 = vadd.f32 %v4115, %v4656
    %v4658 = vpop.f32.mrb[0].mxu0
    %v4659 = vadd.f32 %v4115, %v4658
    %v4660 = vpop.f32.mrb[0].mxu0
    %v4661 = vadd.f32 %v4119, %v4660
    %v4662 = vpop.f32.mrb[0].mxu0
    %v4663 = vadd.f32 %v4119, %v4662
    %4664 = vmatprep.mubr.bf16.mxu0 0
    %4665 = vmatmul.mubr.bf16.gmra.mrb[0].mxu0 %v4143
    %v4666 = vpop.f32.mrb[0].mxu0
    %v4667 = vadd.f32 %v4123, %v4666
    %v4668 = vpop.f32.mrb[0].mxu0
    %v4669 = vadd.f32 %v4123, %v4668
    %v4670 = vpop.f32.mrb[0].mxu0
    %v4671 = vadd.f32 %v4127, %v4670
    %v4672 = vpop.f32.mrb[0].mxu0
    %v4673 = vadd.f32 %v4127, %v4672
    %4674 = vdwg.mxu0
    %4675 = vmatprep.subr.bf16.mxu0 %v4070
    %4676 = vmatpush1.bf16.msra.mxu0 %v4069
    %4677 = vmatprep.subr.bf16.mxu0 %v4102
    %4678 = vmatpush1.bf16.msra.mxu0 %v4101
    %4679 = vmatprep.subr.bf16.mxu0 0
    %4680 = vmatpush1.bf16.msra.mxu0 0
    %4681 = vmatprep.subr.bf16.mxu0 0
    %4682 = vmatpush1.bf16.msra.mxu0 0
    %4683 = vmatprep.subr.bf16.mxu0 0
    %4684 = vmatpush1.bf16.msra.mxu0 0
    %4685 = vmatprep.subr.bf16.mxu0 0
    %4686 = vmatpush1.bf16.msra.mxu0 0
    %4687 = vmatprep.subr.bf16.mxu0 0
    %4688 = vmatpush1.bf16.msra.mxu0 0
    %4689 = vmatprep.subr.bf16.mxu0 0
    %4690 = vmatpush1.bf16.msra.mxu0 0
    %4691 = vmatprep.subr.bf16.mxu0 0
    %4692 = vmatpush1.bf16.msra.mxu0 0
    %4693 = vmatprep.subr.bf16.mxu0 0
    %4694 = vmatpush1.bf16.msra.mxu0 0
    %4695 = vmatprep.subr.bf16.mxu0 0
    %4696 = vmatpush1.bf16.msra.mxu0 0
    %4697 = vmatprep.subr.bf16.mxu0 0
    %4698 = vmatpush1.bf16.msra.mxu0 0
    %4699 = vmatprep.subr.bf16.mxu0 0
    %4700 = vmatpush1.bf16.msra.mxu0 0
    %4701 = vmatprep.subr.bf16.mxu0 0
    %4702 = vmatpush1.bf16.msra.mxu0 0
    %4703 = vmatprep.subr.bf16.mxu0 0
    %4704 = vmatpush1.bf16.msra.mxu0 0
    %4705 = vmatprep.subr.bf16.mxu0 0
    %4706 = vmatpush1.bf16.msra.mxu0 0
    %4707 = vmatprep.mubr.bf16.mxu0 0
    %4708 = vmatmul.mubr.bf16.gmra.mrb[0].mxu0 %v4140
    %v4709 = vpop.f32.mrb[0].mxu0
    %v4710 = vadd.f32 %v4115, %v4709
    %v4711 = vpop.f32.mrb[0].mxu0
    %v4712 = vadd.f32 %v4115, %v4711
    %v4713 = vpop.f32.mrb[0].mxu0
    %v4714 = vadd.f32 %v4119, %v4713
    %v4715 = vpop.f32.mrb[0].mxu0
    %v4716 = vadd.f32 %v4119, %v4715
    %4717 = vmatprep.mubr.bf16.mxu0 0
    %4718 = vmatmul.mubr.bf16.gmra.mrb[0].mxu0 %v4143
    %v4719 = vpop.f32.mrb[0].mxu0
    %v4720 = vadd.f32 %v4123, %v4719
    %v4721 = vpop.f32.mrb[0].mxu0
    %v4722 = vadd.f32 %v4123, %v4721
    %v4723 = vpop.f32.mrb[0].mxu0
    %v4724 = vadd.f32 %v4127, %v4723
    %v4725 = vpop.f32.mrb[0].mxu0
    %v4726 = vadd.f32 %v4127, %v4725
    %4727 = vdwg.mxu0
    %4728 = vmatprep.subr.bf16.mxu0 %v4072
    %4729 = vmatpush1.bf16.msra.mxu0 %v4071
    %4730 = vmatprep.subr.bf16.mxu0 %v4104
    %4731 = vmatpush1.bf16.msra.mxu0 %v4103
    %4732 = vmatprep.subr.bf16.mxu0 0
    %4733 = vmatpush1.bf16.msra.mxu0 0
    %4734 = vmatprep.subr.bf16.mxu0 0
    %4735 = vmatpush1.bf16.msra.mxu0 0
    %4736 = vmatprep.subr.bf16.mxu0 0
    %4737 = vmatpush1.bf16.msra.mxu0 0
    %4738 = vmatprep.subr.bf16.mxu0 0
    %4739 = vmatpush1.bf16.msra.mxu0 0
    %4740 = vmatprep.subr.bf16.mxu0 0
    %4741 = vmatpush1.bf16.msra.mxu0 0
    %4742 = vmatprep.subr.bf16.mxu0 0
    %4743 = vmatpush1.bf16.msra.mxu0 0
    %4744 = vmatprep.subr.bf16.mxu0 0
    %4745 = vmatpush1.bf16.msra.mxu0 0
    %4746 = vmatprep.subr.bf16.mxu0 0
    %4747 = vmatpush1.bf16.msra.mxu0 0
    %4748 = vmatprep.subr.bf16.mxu0 0
    %4749 = vmatpush1.bf16.msra.mxu0 0
    %4750 = vmatprep.subr.bf16.mxu0 0
    %4751 = vmatpush1.bf16.msra.mxu0 0
    %4752 = vmatprep.subr.bf16.mxu0 0
    %4753 = vmatpush1.bf16.msra.mxu0 0
    %4754 = vmatprep.subr.bf16.mxu0 0
    %4755 = vmatpush1.bf16.msra.mxu0 0
    %4756 = vmatprep.subr.bf16.mxu0 0
    %4757 = vmatpush1.bf16.msra.mxu0 0
    %4758 = vmatprep.subr.bf16.mxu0 0
    %4759 = vmatpush1.bf16.msra.mxu0 0
    %4760 = vmatprep.mubr.bf16.mxu0 0
    %4761 = vmatmul.mubr.bf16.gmra.mrb[0].mxu0 %v4140
    %v4762 = vpop.f32.mrb[0].mxu0
    %v4763 = vadd.f32 %v4115, %v4762
    %v4764 = vpop.f32.mrb[0].mxu0
    %v4765 = vadd.f32 %v4115, %v4764
    %v4766 = vpop.f32.mrb[0].mxu0
    %v4767 = vadd.f32 %v4119, %v4766
    %v4768 = vpop.f32.mrb[0].mxu0
    %v4769 = vadd.f32 %v4119, %v4768
    %4770 = vmatprep.mubr.bf16.mxu0 0
    %4771 = vmatmul.mubr.bf16.gmra.mrb[0].mxu0 %v4143
    %v4772 = vpop.f32.mrb[0].mxu0
    %v4773 = vadd.f32 %v4123, %v4772
    %v4774 = vpop.f32.mrb[0].mxu0
    %v4775 = vadd.f32 %v4123, %v4774
    %v4776 = vpop.f32.mrb[0].mxu0
    %v4777 = vadd.f32 %v4127, %v4776
    %v4778 = vpop.f32.mrb[0].mxu0
    %v4779 = vadd.f32 %v4127, %v4778
    %4780 = vdwg.mxu0
    %4781 = vmatprep.subr.bf16.mxu0 %v4074
    %4782 = vmatpush1.bf16.msra.mxu0 %v4073
    %4783 = vmatprep.subr.bf16.mxu0 %v4106
    %4784 = vmatpush1.bf16.msra.mxu0 %v4105
    %4785 = vmatprep.subr.bf16.mxu0 0
    %4786 = vmatpush1.bf16.msra.mxu0 0
    %4787 = vmatprep.subr.bf16.mxu0 0
    %4788 = vmatpush1.bf16.msra.mxu0 0
    %4789 = vmatprep.subr.bf16.mxu0 0
    %4790 = vmatpush1.bf16.msra.mxu0 0
    %4791 = vmatprep.subr.bf16.mxu0 0
    %4792 = vmatpush1.bf16.msra.mxu0 0
    %4793 = vmatprep.subr.bf16.mxu0 0
    %4794 = vmatpush1.bf16.msra.mxu0 0
    %4795 = vmatprep.subr.bf16.mxu0 0
    %4796 = vmatpush1.bf16.msra.mxu0 0
    %4797 = vmatprep.subr.bf16.mxu0 0
    %4798 = vmatpush1.bf16.msra.mxu0 0
    %4799 = vmatprep.subr.bf16.mxu0 0
    %4800 = vmatpush1.bf16.msra.mxu0 0
    %4801 = vmatprep.subr.bf16.mxu0 0
    %4802 = vmatpush1.bf16.msra.mxu0 0
    %4803 = vmatprep.subr.bf16.mxu0 0
    %4804 = vmatpush1.bf16.msra.mxu0 0
    %4805 = vmatprep.subr.bf16.mxu0 0
    %4806 = vmatpush1.bf16.msra.mxu0 0
    %4807 = vmatprep.subr.bf16.mxu0 0
    %4808 = vmatpush1.bf16.msra.mxu0 0
    %4809 = vmatprep.subr.bf16.mxu0 0
    %4810 = vmatpush1.bf16.msra.mxu0 0
    %4811 = vmatprep.subr.bf16.mxu0 0
    %4812 = vmatpush1.bf16.msra.mxu0 0
    %4813 = vmatprep.mubr.bf16.mxu0 0
    %4814 = vmatmul.mubr.bf16.gmra.mrb[0].mxu0 %v4140
    %v4815 = vpop.f32.mrb[0].mxu0
    %v4816 = vadd.f32 %v4115, %v4815
    %v4817 = vpop.f32.mrb[0].mxu0
    %v4818 = vadd.f32 %v4115, %v4817
    %v4819 = vpop.f32.mrb[0].mxu0
    %v4820 = vadd.f32 %v4119, %v4819
    %v4821 = vpop.f32.mrb[0].mxu0
    %v4822 = vadd.f32 %v4119, %v4821
    %4823 = vmatprep.mubr.bf16.mxu0 0
    %4824 = vmatmul.mubr.bf16.gmra.mrb[0].mxu0 %v4143
    %v4825 = vpop.f32.mrb[0].mxu0
    %v4826 = vadd.f32 %v4123, %v4825
    %v4827 = vpop.f32.mrb[0].mxu0
    %v4828 = vadd.f32 %v4123, %v4827
    %v4829 = vpop.f32.mrb[0].mxu0
    %v4830 = vadd.f32 %v4127, %v4829
    %v4831 = vpop.f32.mrb[0].mxu0
    %v4832 = vadd.f32 %v4127, %v4831
    %4833 = vdwg.mxu0
    %4834 = vmatprep.subr.bf16.mxu0 %v4076
    %4835 = vmatpush1.bf16.msra.mxu0 %v4075
    %4836 = vmatprep.subr.bf16.mxu0 %v4108
    %4837 = vmatpush1.bf16.msra.mxu0 %v4107
    %4838 = vmatprep.subr.bf16.mxu0 0
    %4839 = vmatpush1.bf16.msra.mxu0 0
    %4840 = vmatprep.subr.bf16.mxu0 0
    %4841 = vmatpush1.bf16.msra.mxu0 0
    %4842 = vmatprep.subr.bf16.mxu0 0
    %4843 = vmatpush1.bf16.msra.mxu0 0
    %4844 = vmatprep.subr.bf16.mxu0 0
    %4845 = vmatpush1.bf16.msra.mxu0 0
    %4846 = vmatprep.subr.bf16.mxu0 0
    %4847 = vmatpush1.bf16.msra.mxu0 0
    %4848 = vmatprep.subr.bf16.mxu0 0
    %4849 = vmatpush1.bf16.msra.mxu0 0
    %4850 = vmatprep.subr.bf16.mxu0 0
    %4851 = vmatpush1.bf16.msra.mxu0 0
    %4852 = vmatprep.subr.bf16.mxu0 0
    %4853 = vmatpush1.bf16.msra.mxu0 0
    %4854 = vmatprep.subr.bf16.mxu0 0
    %4855 = vmatpush1.bf16.msra.mxu0 0
    %4856 = vmatprep.subr.bf16.mxu0 0
    %4857 = vmatpush1.bf16.msra.mxu0 0
    %4858 = vmatprep.subr.bf16.mxu0 0
    %4859 = vmatpush1.bf16.msra.mxu0 0
    %4860 = vmatprep.subr.bf16.mxu0 0
    %4861 = vmatpush1.bf16.msra.mxu0 0
    %4862 = vmatprep.subr.bf16.mxu0 0
    %4863 = vmatpush1.bf16.msra.mxu0 0
    %4864 = vmatprep.subr.bf16.mxu0 0
    %4865 = vmatpush1.bf16.msra.mxu0 0
    %4866 = vmatprep.mubr.bf16.mxu0 0
    %4867 = vmatmul.mubr.bf16.gmra.mrb[0].mxu0 %v4140
    %v4868 = vpop.f32.mrb[0].mxu0
    %v4869 = vadd.f32 %v4115, %v4868
    %v4870 = vpop.f32.mrb[0].mxu0
    %v4871 = vadd.f32 %v4115, %v4870
    %v4872 = vpop.f32.mrb[0].mxu0
    %v4873 = vadd.f32 %v4119, %v4872
    %v4874 = vpop.f32.mrb[0].mxu0
    %v4875 = vadd.f32 %v4119, %v4874
    %4876 = vmatprep.mubr.bf16.mxu0 0
    %4877 = vmatmul.mubr.bf16.gmra.mrb[0].mxu0 %v4143
    %v4878 = vpop.f32.mrb[0].mxu0
    %v4879 = vadd.f32 %v4123, %v4878
    %v4880 = vpop.f32.mrb[0].mxu0
    %v4881 = vadd.f32 %v4123, %v4880
    %v4882 = vpop.f32.mrb[0].mxu0
    %v4883 = vadd.f32 %v4127, %v4882
    %v4884 = vpop.f32.mrb[0].mxu0
    %v4885 = vadd.f32 %v4127, %v4884
    %4886 = vdwg.mxu0
    %4887 = vmatprep.subr.bf16.mxu0 %v4078
    %4888 = vmatpush1.bf16.msra.mxu0 %v4077
    %4889 = vmatprep.subr.bf16.mxu0 %v4110
    %4890 = vmatpush1.bf16.msra.mxu0 %v4109
    %4891 = vmatprep.subr.bf16.mxu0 0
    %4892 = vmatpush1.bf16.msra.mxu0 0
    %4893 = vmatprep.subr.bf16.mxu0 0
    %4894 = vmatpush1.bf16.msra.mxu0 0
    %4895 = vmatprep.subr.bf16.mxu0 0
    %4896 = vmatpush1.bf16.msra.mxu0 0
    %4897 = vmatprep.subr.bf16.mxu0 0
    %4898 = vmatpush1.bf16.msra.mxu0 0
    %4899 = vmatprep.subr.bf16.mxu0 0
    %4900 = vmatpush1.bf16.msra.mxu0 0
    %4901 = vmatprep.subr.bf16.mxu0 0
    %4902 = vmatpush1.bf16.msra.mxu0 0
    %4903 = vmatprep.subr.bf16.mxu0 0
    %4904 = vmatpush1.bf16.msra.mxu0 0
    %4905 = vmatprep.subr.bf16.mxu0 0
    %4906 = vmatpush1.bf16.msra.mxu0 0
    %4907 = vmatprep.subr.bf16.mxu0 0
    %4908 = vmatpush1.bf16.msra.mxu0 0
    %4909 = vmatprep.subr.bf16.mxu0 0
    %4910 = vmatpush1.bf16.msra.mxu0 0
    %4911 = vmatprep.subr.bf16.mxu0 0
    %4912 = vmatpush1.bf16.msra.mxu0 0
    %4913 = vmatprep.subr.bf16.mxu0 0
    %4914 = vmatpush1.bf16.msra.mxu0 0
    %4915 = vmatprep.subr.bf16.mxu0 0
    %4916 = vmatpush1.bf16.msra.mxu0 0
    %4917 = vmatprep.subr.bf16.mxu0 0
    %4918 = vmatpush1.bf16.msra.mxu0 0
    %4919 = vmatprep.mubr.bf16.mxu0 0
    %4920 = vmatmul.mubr.bf16.gmra.mrb[0].mxu0 %v4140
    %v4921 = vpop.f32.mrb[0].mxu0
    %v4922 = vadd.f32 %v4115, %v4921
    %v4923 = vpop.f32.mrb[0].mxu0
    %v4924 = vadd.f32 %v4115, %v4923
    %v4925 = vpop.f32.mrb[0].mxu0
    %v4926 = vadd.f32 %v4119, %v4925
    %v4927 = vpop.f32.mrb[0].mxu0
    %v4928 = vadd.f32 %v4119, %v4927
    %4929 = vmatprep.mubr.bf16.mxu0 0
    %4930 = vmatmul.mubr.bf16.gmra.mrb[0].mxu0 %v4143
    %v4931 = vpop.f32.mrb[0].mxu0
    %v4932 = vadd.f32 %v4123, %v4931
    %v4933 = vpop.f32.mrb[0].mxu0
    %v4934 = vadd.f32 %v4123, %v4933
    %v4935 = vpop.f32.mrb[0].mxu0
    %v4936 = vadd.f32 %v4127, %v4935
    %v4937 = vpop.f32.mrb[0].mxu0
    %v4938 = vadd.f32 %v4127, %v4937
    %4939 = vdwg.mxu0
    %4940 = vmatprep.subr.bf16.mxu0 %v4080
    %4941 = vmatpush1.bf16.msra.mxu0 %v4079
    %4942 = vmatprep.subr.bf16.mxu0 %v4112
    %4943 = vmatpush1.bf16.msra.mxu0 %v4111
    %4944 = vmatprep.subr.bf16.mxu0 0
    %4945 = vmatpush1.bf16.msra.mxu0 0
    %4946 = vmatprep.subr.bf16.mxu0 0
    %4947 = vmatpush1.bf16.msra.mxu0 0
    %4948 = vmatprep.subr.bf16.mxu0 0
    %4949 = vmatpush1.bf16.msra.mxu0 0
    %4950 = vmatprep.subr.bf16.mxu0 0
    %4951 = vmatpush1.bf16.msra.mxu0 0
    %4952 = vmatprep.subr.bf16.mxu0 0
    %4953 = vmatpush1.bf16.msra.mxu0 0
    %4954 = vmatprep.subr.bf16.mxu0 0
    %4955 = vmatpush1.bf16.msra.mxu0 0
    %4956 = vmatprep.subr.bf16.mxu0 0
    %4957 = vmatpush1.bf16.msra.mxu0 0
    %4958 = vmatprep.subr.bf16.mxu0 0
    %4959 = vmatpush1.bf16.msra.mxu0 0
    %4960 = vmatprep.subr.bf16.mxu0 0
    %4961 = vmatpush1.bf16.msra.mxu0 0
    %4962 = vmatprep.subr.bf16.mxu0 0
    %4963 = vmatpush1.bf16.msra.mxu0 0
    %4964 = vmatprep.subr.bf16.mxu0 0
    %4965 = vmatpush1.bf16.msra.mxu0 0
    %4966 = vmatprep.subr.bf16.mxu0 0
    %4967 = vmatpush1.bf16.msra.mxu0 0
    %4968 = vmatprep.subr.bf16.mxu0 0
    %4969 = vmatpush1.bf16.msra.mxu0 0
    %4970 = vmatprep.subr.bf16.mxu0 0
    %4971 = vmatpush1.bf16.msra.mxu0 0
    %4972 = vmatprep.mubr.bf16.mxu0 0
    %4973 = vmatmul.mubr.bf16.gmra.mrb[0].mxu0 %v4140
    %v4974 = vpop.f32.mrb[0].mxu0
    %v4975 = vadd.f32 %v4115, %v4974
    %v4976 = vpop.f32.mrb[0].mxu0
    %v4977 = vadd.f32 %v4115, %v4976
    %v4978 = vpop.f32.mrb[0].mxu0
    %v4979 = vadd.f32 %v4119, %v4978
    %v4980 = vpop.f32.mrb[0].mxu0
    %v4981 = vadd.f32 %v4119, %v4980
    %4982 = vmatprep.mubr.bf16.mxu0 0
    %4983 = vmatmul.mubr.bf16.gmra.mrb[0].mxu0 %v4143
    %v4984 = vpop.f32.mrb[0].mxu0
    %v4985 = vadd.f32 %v4123, %v4984
    %v4986 = vpop.f32.mrb[0].mxu0
    %v4987 = vadd.f32 %v4123, %v4986
    %v4988 = vpop.f32.mrb[0].mxu0
    %v4989 = vadd.f32 %v4127, %v4988
    %v4990 = vpop.f32.mrb[0].mxu0
    %v4991 = vadd.f32 %v4127, %v4990
    %4992 = vdwg.mxu0
    %v4993 = vmax.f32 %v4180, 0.0
    %v4994 = vmax.f32 %v4182, 0.0
    %v4995 = vmax.f32 %v4233, 0.0
    %v4996 = vmax.f32 %v4235, 0.0
    %v4997 = vmax.f32 %v4286, 0.0
    %v4998 = vmax.f32 %v4288, 0.0
    %v4999 = vmax.f32 %v4339, 0.0
    %v5000 = vmax.f32 %v4341, 0.0
    %v5001 = vmax.f32 %v4392, 0.0
    %v5002 = vmax.f32 %v4394, 0.0
    %v5003 = vmax.f32 %v4445, 0.0
    %v5004 = vmax.f32 %v4447, 0.0
    %v5005 = vmax.f32 %v4498, 0.0
    %v5006 = vmax.f32 %v4500, 0.0
    %v5007 = vmax.f32 %v4551, 0.0
    %v5008 = vmax.f32 %v4553, 0.0
    %v5009 = vmax.f32 %v4604, 0.0
    %v5010 = vmax.f32 %v4606, 0.0
    %v5011 = vmax.f32 %v4657, 0.0
    %v5012 = vmax.f32 %v4659, 0.0
    %v5013 = vmax.f32 %v4710, 0.0
    %v5014 = vmax.f32 %v4712, 0.0
    %v5015 = vmax.f32 %v4763, 0.0
    %v5016 = vmax.f32 %v4765, 0.0
    %v5017 = vmax.f32 %v4816, 0.0
    %v5018 = vmax.f32 %v4818, 0.0
    %v5019 = vmax.f32 %v4869, 0.0
    %v5020 = vmax.f32 %v4871, 0.0
    %v5021 = vmax.f32 %v4922, 0.0
    %v5022 = vmax.f32 %v4924, 0.0
    %v5023 = vmax.f32 %v4975, 0.0
    %v5024 = vmax.f32 %v4977, 0.0
    %v5025 = vmax.f32 %v4184, 0.0
    %v5026 = vmax.f32 %v4186, 0.0
    %v5027 = vmax.f32 %v4237, 0.0
    %v5028 = vmax.f32 %v4239, 0.0
    %v5029 = vmax.f32 %v4290, 0.0
    %v5030 = vmax.f32 %v4292, 0.0
    %v5031 = vmax.f32 %v4343, 0.0
    %v5032 = vmax.f32 %v4345, 0.0
    %v5033 = vmax.f32 %v4396, 0.0
    %v5034 = vmax.f32 %v4398, 0.0
    %v5035 = vmax.f32 %v4449, 0.0
    %v5036 = vmax.f32 %v4451, 0.0
    %v5037 = vmax.f32 %v4502, 0.0
    %v5038 = vmax.f32 %v4504, 0.0
    %v5039 = vmax.f32 %v4555, 0.0
    %v5040 = vmax.f32 %v4557, 0.0
    %v5041 = vmax.f32 %v4608, 0.0
    %v5042 = vmax.f32 %v4610, 0.0
    %v5043 = vmax.f32 %v4661, 0.0
    %v5044 = vmax.f32 %v4663, 0.0
    %v5045 = vmax.f32 %v4714, 0.0
    %v5046 = vmax.f32 %v4716, 0.0
    %v5047 = vmax.f32 %v4767, 0.0
    %v5048 = vmax.f32 %v4769, 0.0
    %v5049 = vmax.f32 %v4820, 0.0
    %v5050 = vmax.f32 %v4822, 0.0
    %v5051 = vmax.f32 %v4873, 0.0
    %v5052 = vmax.f32 %v4875, 0.0
    %v5053 = vmax.f32 %v4926, 0.0
    %v5054 = vmax.f32 %v4928, 0.0
    %v5055 = vmax.f32 %v4979, 0.0
    %v5056 = vmax.f32 %v4981, 0.0
    %v5057 = vmax.f32 %v4190, 0.0
    %v5058 = vmax.f32 %v4192, 0.0
    %v5059 = vmax.f32 %v4243, 0.0
    %v5060 = vmax.f32 %v4245, 0.0
    %v5061 = vmax.f32 %v4296, 0.0
    %v5062 = vmax.f32 %v4298, 0.0
    %v5063 = vmax.f32 %v4349, 0.0
    %v5064 = vmax.f32 %v4351, 0.0
    %v5065 = vmax.f32 %v4402, 0.0
    %v5066 = vmax.f32 %v4404, 0.0
    %v5067 = vmax.f32 %v4455, 0.0
    %v5068 = vmax.f32 %v4457, 0.0
    %v5069 = vmax.f32 %v4508, 0.0
    %v5070 = vmax.f32 %v4510, 0.0
    %v5071 = vmax.f32 %v4561, 0.0
    %v5072 = vmax.f32 %v4563, 0.0
    %v5073 = vmax.f32 %v4614, 0.0
    %v5074 = vmax.f32 %v4616, 0.0
    %v5075 = vmax.f32 %v4667, 0.0
    %v5076 = vmax.f32 %v4669, 0.0
    %v5077 = vmax.f32 %v4720, 0.0
    %v5078 = vmax.f32 %v4722, 0.0
    %v5079 = vmax.f32 %v4773, 0.0
    %v5080 = vmax.f32 %v4775, 0.0
    %v5081 = vmax.f32 %v4826, 0.0
    %v5082 = vmax.f32 %v4828, 0.0
    %v5083 = vmax.f32 %v4879, 0.0
    %v5084 = vmax.f32 %v4881, 0.0
    %v5085 = vmax.f32 %v4932, 0.0
    %v5086 = vmax.f32 %v4934, 0.0
    %v5087 = vmax.f32 %v4985, 0.0
    %v5088 = vmax.f32 %v4987, 0.0
    %v5089 = vmax.f32 %v4194, 0.0
    %v5090 = vmax.f32 %v4196, 0.0
    %v5091 = vmax.f32 %v4247, 0.0
    %v5092 = vmax.f32 %v4249, 0.0
    %v5093 = vmax.f32 %v4300, 0.0
    %v5094 = vmax.f32 %v4302, 0.0
    %v5095 = vmax.f32 %v4353, 0.0
    %v5096 = vmax.f32 %v4355, 0.0
    %v5097 = vmax.f32 %v4406, 0.0
    %v5098 = vmax.f32 %v4408, 0.0
    %v5099 = vmax.f32 %v4459, 0.0
    %v5100 = vmax.f32 %v4461, 0.0
    %v5101 = vmax.f32 %v4512, 0.0
    %v5102 = vmax.f32 %v4514, 0.0
    %v5103 = vmax.f32 %v4565, 0.0
    %v5104 = vmax.f32 %v4567, 0.0
    %v5105 = vmax.f32 %v4618, 0.0
    %v5106 = vmax.f32 %v4620, 0.0
    %v5107 = vmax.f32 %v4671, 0.0
    %v5108 = vmax.f32 %v4673, 0.0
    %v5109 = vmax.f32 %v4724, 0.0
    %v5110 = vmax.f32 %v4726, 0.0
    %v5111 = vmax.f32 %v4777, 0.0
    %v5112 = vmax.f32 %v4779, 0.0
    %v5113 = vmax.f32 %v4830, 0.0
    %v5114 = vmax.f32 %v4832, 0.0
    %v5115 = vmax.f32 %v4883, 0.0
    %v5116 = vmax.f32 %v4885, 0.0
    %v5117 = vmax.f32 %v4936, 0.0
    %v5118 = vmax.f32 %v4938, 0.0
    %v5119 = vmax.f32 %v4989, 0.0
    %v5120 = vmax.f32 %v4991, 0.0
    %v5121 = vld [vmem:[%s2] sm:$0xf]
    %v5122 = vpack.c.bf16 %v5025, %v4993
    %v5123 = vpack.c.bf16 %v5026, %v4994
    %v5124 = vpack.c.bf16 %v5027, %v4995
    %v5125 = vpack.c.bf16 %v5028, %v4996
    %v5126 = vpack.c.bf16 %v5029, %v4997
    %v5127 = vpack.c.bf16 %v5030, %v4998
    %v5128 = vpack.c.bf16 %v5031, %v4999
    %v5129 = vpack.c.bf16 %v5032, %v5000
    %v5130 = vpack.c.bf16 %v5033, %v5001
    %v5131 = vpack.c.bf16 %v5034, %v5002
    %v5132 = vpack.c.bf16 %v5035, %v5003
    %v5133 = vpack.c.bf16 %v5036, %v5004
    %v5134 = vpack.c.bf16 %v5037, %v5005
    %v5135 = vpack.c.bf16 %v5038, %v5006
    %v5136 = vpack.c.bf16 %v5039, %v5007
    %v5137 = vpack.c.bf16 %v5040, %v5008
    %v5138 = vpack.c.bf16 %v5041, %v5009
    %v5139 = vpack.c.bf16 %v5042, %v5010
    %v5140 = vpack.c.bf16 %v5043, %v5011
    %v5141 = vpack.c.bf16 %v5044, %v5012
    %v5142 = vpack.c.bf16 %v5045, %v5013
    %v5143 = vpack.c.bf16 %v5046, %v5014
    %v5144 = vpack.c.bf16 %v5047, %v5015
    %v5145 = vpack.c.bf16 %v5048, %v5016
    %v5146 = vpack.c.bf16 %v5049, %v5017
    %v5147 = vpack.c.bf16 %v5050, %v5018
    %v5148 = vpack.c.bf16 %v5051, %v5019
    %v5149 = vpack.c.bf16 %v5052, %v5020
    %v5150 = vpack.c.bf16 %v5053, %v5021
    %v5151 = vpack.c.bf16 %v5054, %v5022
    %v5152 = vpack.c.bf16 %v5055, %v5023
    %v5153 = vpack.c.bf16 %v5056, %v5024
    %v5154 = vpack.c.bf16 %v5089, %v5057
    %v5155 = vpack.c.bf16 %v5090, %v5058
    %v5156 = vpack.c.bf16 %v5091, %v5059
    %v5157 = vpack.c.bf16 %v5092, %v5060
    %v5158 = vpack.c.bf16 %v5093, %v5061
    %v5159 = vpack.c.bf16 %v5094, %v5062
    %v5160 = vpack.c.bf16 %v5095, %v5063
    %v5161 = vpack.c.bf16 %v5096, %v5064
    %v5162 = vpack.c.bf16 %v5097, %v5065
    %v5163 = vpack.c.bf16 %v5098, %v5066
    %v5164 = vpack.c.bf16 %v5099, %v5067
    %v5165 = vpack.c.bf16 %v5100, %v5068
    %v5166 = vpack.c.bf16 %v5101, %v5069
    %v5167 = vpack.c.bf16 %v5102, %v5070
    %v5168 = vpack.c.bf16 %v5103, %v5071
    %v5169 = vpack.c.bf16 %v5104, %v5072
    %v5170 = vpack.c.bf16 %v5105, %v5073
    %v5171 = vpack.c.bf16 %v5106, %v5074
    %v5172 = vpack.c.bf16 %v5107, %v5075
    %v5173 = vpack.c.bf16 %v5108, %v5076
    %v5174 = vpack.c.bf16 %v5109, %v5077
    %v5175 = vpack.c.bf16 %v5110, %v5078
    %v5176 = vpack.c.bf16 %v5111, %v5079
    %v5177 = vpack.c.bf16 %v5112, %v5080
    %v5178 = vpack.c.bf16 %v5113, %v5081
    %v5179 = vpack.c.bf16 %v5114, %v5082
    %v5180 = vpack.c.bf16 %v5115, %v5083
    %v5181 = vpack.c.bf16 %v5116, %v5084
    %v5182 = vpack.c.bf16 %v5117, %v5085
    %v5183 = vpack.c.bf16 %v5118, %v5086
    %v5184 = vpack.c.bf16 %v5119, %v5087
    %v5185 = vpack.c.bf16 %v5120, %v5088
    %v5187 = vsel %vm2000, %v5121, 0
    %5189 = vmatprep.subr.bf16.mxu0 %v5123
    %5190 = vmatpush1.bf16.msra.mxu0 %v5122
    %5191 = vmatprep.subr.bf16.mxu0 %v5155
    %5192 = vmatpush1.bf16.msra.mxu0 %v5154
    %5193 = vmatprep.subr.bf16.mxu0 0
    %5194 = vmatpush1.bf16.msra.mxu0 0
    %5195 = vmatprep.subr.bf16.mxu0 0
    %5196 = vmatpush1.bf16.msra.mxu0 0
    %5197 = vmatprep.subr.bf16.mxu0 0
    %5198 = vmatpush1.bf16.msra.mxu0 0
    %5199 = vmatprep.subr.bf16.mxu0 0
    %5200 = vmatpush1.bf16.msra.mxu0 0
    %5201 = vmatprep.subr.bf16.mxu0 0
    %5202 = vmatpush1.bf16.msra.mxu0 0
    %5203 = vmatprep.subr.bf16.mxu0 0
    %5204 = vmatpush1.bf16.msra.mxu0 0
    %5205 = vmatprep.subr.bf16.mxu0 0
    %5206 = vmatpush1.bf16.msra.mxu0 0
    %5207 = vmatprep.subr.bf16.mxu0 0
    %5208 = vmatpush1.bf16.msra.mxu0 0
    %5209 = vmatprep.subr.bf16.mxu0 0
    %5210 = vmatpush1.bf16.msra.mxu0 0
    %5211 = vmatprep.subr.bf16.mxu0 0
    %5212 = vmatpush1.bf16.msra.mxu0 0
    %5213 = vmatprep.subr.bf16.mxu0 0
    %5214 = vmatpush1.bf16.msra.mxu0 0
    %5215 = vmatprep.subr.bf16.mxu0 0
    %5216 = vmatpush1.bf16.msra.mxu0 0
    %5217 = vmatprep.subr.bf16.mxu0 0
    %5218 = vmatpush1.bf16.msra.mxu0 0
    %5219 = vmatprep.subr.bf16.mxu0 0
    %5220 = vmatpush1.bf16.msra.mxu0 0
    %5221 = vmatprep.mubr.bf16.mxu0 0
    %5222 = vmatmul.mubr.bf16.gmra.mrb[0].mxu0 %v5187
    %v5223 = vpop.f32.mrb[0].mxu0
    %v5224 = vadd.f32 0.0, %v5223
    %v5225 = vpop.f32.mrb[0].mxu0
    %v5226 = vadd.f32 0.0, %v5225
    %v5227 = vpop.f32.mrb[0].mxu0
    %v5228 = vpop.f32.mrb[0].mxu0
    %5229 = vdwg.mxu0
    %5230 = vmatprep.subr.bf16.mxu0 %v5125
    %5231 = vmatpush1.bf16.msra.mxu0 %v5124
    %5232 = vmatprep.subr.bf16.mxu0 %v5157
    %5233 = vmatpush1.bf16.msra.mxu0 %v5156
    %5234 = vmatprep.subr.bf16.mxu0 0
    %5235 = vmatpush1.bf16.msra.mxu0 0
    %5236 = vmatprep.subr.bf16.mxu0 0
    %5237 = vmatpush1.bf16.msra.mxu0 0
    %5238 = vmatprep.subr.bf16.mxu0 0
    %5239 = vmatpush1.bf16.msra.mxu0 0
    %5240 = vmatprep.subr.bf16.mxu0 0
    %5241 = vmatpush1.bf16.msra.mxu0 0
    %5242 = vmatprep.subr.bf16.mxu0 0
    %5243 = vmatpush1.bf16.msra.mxu0 0
    %5244 = vmatprep.subr.bf16.mxu0 0
    %5245 = vmatpush1.bf16.msra.mxu0 0
    %5246 = vmatprep.subr.bf16.mxu0 0
    %5247 = vmatpush1.bf16.msra.mxu0 0
    %5248 = vmatprep.subr.bf16.mxu0 0
    %5249 = vmatpush1.bf16.msra.mxu0 0
    %5250 = vmatprep.subr.bf16.mxu0 0
    %5251 = vmatpush1.bf16.msra.mxu0 0
    %5252 = vmatprep.subr.bf16.mxu0 0
    %5253 = vmatpush1.bf16.msra.mxu0 0
    %5254 = vmatprep.subr.bf16.mxu0 0
    %5255 = vmatpush1.bf16.msra.mxu0 0
    %5256 = vmatprep.subr.bf16.mxu0 0
    %5257 = vmatpush1.bf16.msra.mxu0 0
    %5258 = vmatprep.subr.bf16.mxu0 0
    %5259 = vmatpush1.bf16.msra.mxu0 0
    %5260 = vmatprep.subr.bf16.mxu0 0
    %5261 = vmatpush1.bf16.msra.mxu0 0
    %5262 = vmatprep.mubr.bf16.mxu0 0
    %5263 = vmatmul.mubr.bf16.gmra.mrb[0].mxu0 %v5187
    %v5264 = vpop.f32.mrb[0].mxu0
    %v5265 = vadd.f32 0.0, %v5264
    %v5266 = vpop.f32.mrb[0].mxu0
    %v5267 = vadd.f32 0.0, %v5266
    %v5268 = vpop.f32.mrb[0].mxu0
    %v5269 = vpop.f32.mrb[0].mxu0
    %5270 = vdwg.mxu0
    %5271 = vmatprep.subr.bf16.mxu0 %v5127
    %5272 = vmatpush1.bf16.msra.mxu0 %v5126
    %5273 = vmatprep.subr.bf16.mxu0 %v5159
    %5274 = vmatpush1.bf16.msra.mxu0 %v5158
    %5275 = vmatprep.subr.bf16.mxu0 0
    %5276 = vmatpush1.bf16.msra.mxu0 0
    %5277 = vmatprep.subr.bf16.mxu0 0
    %5278 = vmatpush1.bf16.msra.mxu0 0
    %5279 = vmatprep.subr.bf16.mxu0 0
    %5280 = vmatpush1.bf16.msra.mxu0 0
    %5281 = vmatprep.subr.bf16.mxu0 0
    %5282 = vmatpush1.bf16.msra.mxu0 0
    %5283 = vmatprep.subr.bf16.mxu0 0
    %5284 = vmatpush1.bf16.msra.mxu0 0
    %5285 = vmatprep.subr.bf16.mxu0 0
    %5286 = vmatpush1.bf16.msra.mxu0 0
    %5287 = vmatprep.subr.bf16.mxu0 0
    %5288 = vmatpush1.bf16.msra.mxu0 0
    %5289 = vmatprep.subr.bf16.mxu0 0
    %5290 = vmatpush1.bf16.msra.mxu0 0
    %5291 = vmatprep.subr.bf16.mxu0 0
    %5292 = vmatpush1.bf16.msra.mxu0 0
    %5293 = vmatprep.subr.bf16.mxu0 0
    %5294 = vmatpush1.bf16.msra.mxu0 0
    %5295 = vmatprep.subr.bf16.mxu0 0
    %5296 = vmatpush1.bf16.msra.mxu0 0
    %5297 = vmatprep.subr.bf16.mxu0 0
    %5298 = vmatpush1.bf16.msra.mxu0 0
    %5299 = vmatprep.subr.bf16.mxu0 0
    %5300 = vmatpush1.bf16.msra.mxu0 0
    %5301 = vmatprep.subr.bf16.mxu0 0
    %5302 = vmatpush1.bf16.msra.mxu0 0
    %5303 = vmatprep.mubr.bf16.mxu0 0
    %5304 = vmatmul.mubr.bf16.gmra.mrb[0].mxu0 %v5187
    %v5305 = vpop.f32.mrb[0].mxu0
    %v5306 = vadd.f32 0.0, %v5305
    %v5307 = vpop.f32.mrb[0].mxu0
    %v5308 = vadd.f32 0.0, %v5307
    %v5309 = vpop.f32.mrb[0].mxu0
    %v5310 = vpop.f32.mrb[0].mxu0
    %5311 = vdwg.mxu0
    %5312 = vmatprep.subr.bf16.mxu0 %v5129
    %5313 = vmatpush1.bf16.msra.mxu0 %v5128
    %5314 = vmatprep.subr.bf16.mxu0 %v5161
    %5315 = vmatpush1.bf16.msra.mxu0 %v5160
    %5316 = vmatprep.subr.bf16.mxu0 0
    %5317 = vmatpush1.bf16.msra.mxu0 0
    %5318 = vmatprep.subr.bf16.mxu0 0
    %5319 = vmatpush1.bf16.msra.mxu0 0
    %5320 = vmatprep.subr.bf16.mxu0 0
    %5321 = vmatpush1.bf16.msra.mxu0 0
    %5322 = vmatprep.subr.bf16.mxu0 0
    %5323 = vmatpush1.bf16.msra.mxu0 0
    %5324 = vmatprep.subr.bf16.mxu0 0
    %5325 = vmatpush1.bf16.msra.mxu0 0
    %5326 = vmatprep.subr.bf16.mxu0 0
    %5327 = vmatpush1.bf16.msra.mxu0 0
    %5328 = vmatprep.subr.bf16.mxu0 0
    %5329 = vmatpush1.bf16.msra.mxu0 0
    %5330 = vmatprep.subr.bf16.mxu0 0
    %5331 = vmatpush1.bf16.msra.mxu0 0
    %5332 = vmatprep.subr.bf16.mxu0 0
    %5333 = vmatpush1.bf16.msra.mxu0 0
    %5334 = vmatprep.subr.bf16.mxu0 0
    %5335 = vmatpush1.bf16.msra.mxu0 0
    %5336 = vmatprep.subr.bf16.mxu0 0
    %5337 = vmatpush1.bf16.msra.mxu0 0
    %5338 = vmatprep.subr.bf16.mxu0 0
    %5339 = vmatpush1.bf16.msra.mxu0 0
    %5340 = vmatprep.subr.bf16.mxu0 0
    %5341 = vmatpush1.bf16.msra.mxu0 0
    %5342 = vmatprep.subr.bf16.mxu0 0
    %5343 = vmatpush1.bf16.msra.mxu0 0
    %5344 = vmatprep.mubr.bf16.mxu0 0
    %5345 = vmatmul.mubr.bf16.gmra.mrb[0].mxu0 %v5187
    %v5346 = vpop.f32.mrb[0].mxu0
    %v5347 = vadd.f32 0.0, %v5346
    %v5348 = vpop.f32.mrb[0].mxu0
    %v5349 = vadd.f32 0.0, %v5348
    %v5350 = vpop.f32.mrb[0].mxu0
    %v5351 = vpop.f32.mrb[0].mxu0
    %5352 = vdwg.mxu0
    %5353 = vmatprep.subr.bf16.mxu0 %v5131
    %5354 = vmatpush1.bf16.msra.mxu0 %v5130
    %5355 = vmatprep.subr.bf16.mxu0 %v5163
    %5356 = vmatpush1.bf16.msra.mxu0 %v5162
    %5357 = vmatprep.subr.bf16.mxu0 0
    %5358 = vmatpush1.bf16.msra.mxu0 0
    %5359 = vmatprep.subr.bf16.mxu0 0
    %5360 = vmatpush1.bf16.msra.mxu0 0
    %5361 = vmatprep.subr.bf16.mxu0 0
    %5362 = vmatpush1.bf16.msra.mxu0 0
    %5363 = vmatprep.subr.bf16.mxu0 0
    %5364 = vmatpush1.bf16.msra.mxu0 0
    %5365 = vmatprep.subr.bf16.mxu0 0
    %5366 = vmatpush1.bf16.msra.mxu0 0
    %5367 = vmatprep.subr.bf16.mxu0 0
    %5368 = vmatpush1.bf16.msra.mxu0 0
    %5369 = vmatprep.subr.bf16.mxu0 0
    %5370 = vmatpush1.bf16.msra.mxu0 0
    %5371 = vmatprep.subr.bf16.mxu0 0
    %5372 = vmatpush1.bf16.msra.mxu0 0
    %5373 = vmatprep.subr.bf16.mxu0 0
    %5374 = vmatpush1.bf16.msra.mxu0 0
    %5375 = vmatprep.subr.bf16.mxu0 0
    %5376 = vmatpush1.bf16.msra.mxu0 0
    %5377 = vmatprep.subr.bf16.mxu0 0
    %5378 = vmatpush1.bf16.msra.mxu0 0
    %5379 = vmatprep.subr.bf16.mxu0 0
    %5380 = vmatpush1.bf16.msra.mxu0 0
    %5381 = vmatprep.subr.bf16.mxu0 0
    %5382 = vmatpush1.bf16.msra.mxu0 0
    %5383 = vmatprep.subr.bf16.mxu0 0
    %5384 = vmatpush1.bf16.msra.mxu0 0
    %5385 = vmatprep.mubr.bf16.mxu0 0
    %5386 = vmatmul.mubr.bf16.gmra.mrb[0].mxu0 %v5187
    %v5387 = vpop.f32.mrb[0].mxu0
    %v5388 = vadd.f32 0.0, %v5387
    %v5389 = vpop.f32.mrb[0].mxu0
    %v5390 = vadd.f32 0.0, %v5389
    %v5391 = vpop.f32.mrb[0].mxu0
    %v5392 = vpop.f32.mrb[0].mxu0
    %5393 = vdwg.mxu0
    %5394 = vmatprep.subr.bf16.mxu0 %v5133
    %5395 = vmatpush1.bf16.msra.mxu0 %v5132
    %5396 = vmatprep.subr.bf16.mxu0 %v5165
    %5397 = vmatpush1.bf16.msra.mxu0 %v5164
    %5398 = vmatprep.subr.bf16.mxu0 0
    %5399 = vmatpush1.bf16.msra.mxu0 0
    %5400 = vmatprep.subr.bf16.mxu0 0
    %5401 = vmatpush1.bf16.msra.mxu0 0
    %5402 = vmatprep.subr.bf16.mxu0 0
    %5403 = vmatpush1.bf16.msra.mxu0 0
    %5404 = vmatprep.subr.bf16.mxu0 0
    %5405 = vmatpush1.bf16.msra.mxu0 0
    %5406 = vmatprep.subr.bf16.mxu0 0
    %5407 = vmatpush1.bf16.msra.mxu0 0
    %5408 = vmatprep.subr.bf16.mxu0 0
    %5409 = vmatpush1.bf16.msra.mxu0 0
    %5410 = vmatprep.subr.bf16.mxu0 0
    %5411 = vmatpush1.bf16.msra.mxu0 0
    %5412 = vmatprep.subr.bf16.mxu0 0
    %5413 = vmatpush1.bf16.msra.mxu0 0
    %5414 = vmatprep.subr.bf16.mxu0 0
    %5415 = vmatpush1.bf16.msra.mxu0 0
    %5416 = vmatprep.subr.bf16.mxu0 0
    %5417 = vmatpush1.bf16.msra.mxu0 0
    %5418 = vmatprep.subr.bf16.mxu0 0
    %5419 = vmatpush1.bf16.msra.mxu0 0
    %5420 = vmatprep.subr.bf16.mxu0 0
    %5421 = vmatpush1.bf16.msra.mxu0 0
    %5422 = vmatprep.subr.bf16.mxu0 0
    %5423 = vmatpush1.bf16.msra.mxu0 0
    %5424 = vmatprep.subr.bf16.mxu0 0
    %5425 = vmatpush1.bf16.msra.mxu0 0
    %5426 = vmatprep.mubr.bf16.mxu0 0
    %5427 = vmatmul.mubr.bf16.gmra.mrb[0].mxu0 %v5187
    %v5428 = vpop.f32.mrb[0].mxu0
    %v5429 = vadd.f32 0.0, %v5428
    %v5430 = vpop.f32.mrb[0].mxu0
    %v5431 = vadd.f32 0.0, %v5430
    %v5432 = vpop.f32.mrb[0].mxu0
    %v5433 = vpop.f32.mrb[0].mxu0
    %5434 = vdwg.mxu0
    %5435 = vmatprep.subr.bf16.mxu0 %v5135
    %5436 = vmatpush1.bf16.msra.mxu0 %v5134
    %5437 = vmatprep.subr.bf16.mxu0 %v5167
    %5438 = vmatpush1.bf16.msra.mxu0 %v5166
    %5439 = vmatprep.subr.bf16.mxu0 0
    %5440 = vmatpush1.bf16.msra.mxu0 0
    %5441 = vmatprep.subr.bf16.mxu0 0
    %5442 = vmatpush1.bf16.msra.mxu0 0
    %5443 = vmatprep.subr.bf16.mxu0 0
    %5444 = vmatpush1.bf16.msra.mxu0 0
    %5445 = vmatprep.subr.bf16.mxu0 0
    %5446 = vmatpush1.bf16.msra.mxu0 0
    %5447 = vmatprep.subr.bf16.mxu0 0
    %5448 = vmatpush1.bf16.msra.mxu0 0
    %5449 = vmatprep.subr.bf16.mxu0 0
    %5450 = vmatpush1.bf16.msra.mxu0 0
    %5451 = vmatprep.subr.bf16.mxu0 0
    %5452 = vmatpush1.bf16.msra.mxu0 0
    %5453 = vmatprep.subr.bf16.mxu0 0
    %5454 = vmatpush1.bf16.msra.mxu0 0
    %5455 = vmatprep.subr.bf16.mxu0 0
    %5456 = vmatpush1.bf16.msra.mxu0 0
    %5457 = vmatprep.subr.bf16.mxu0 0
    %5458 = vmatpush1.bf16.msra.mxu0 0
    %5459 = vmatprep.subr.bf16.mxu0 0
    %5460 = vmatpush1.bf16.msra.mxu0 0
    %5461 = vmatprep.subr.bf16.mxu0 0
    %5462 = vmatpush1.bf16.msra.mxu0 0
    %5463 = vmatprep.subr.bf16.mxu0 0
    %5464 = vmatpush1.bf16.msra.mxu0 0
    %5465 = vmatprep.subr.bf16.mxu0 0
    %5466 = vmatpush1.bf16.msra.mxu0 0
    %5467 = vmatprep.mubr.bf16.mxu0 0
    %5468 = vmatmul.mubr.bf16.gmra.mrb[0].mxu0 %v5187
    %v5469 = vpop.f32.mrb[0].mxu0
    %v5470 = vadd.f32 0.0, %v5469
    %v5471 = vpop.f32.mrb[0].mxu0
    %v5472 = vadd.f32 0.0, %v5471
    %v5473 = vpop.f32.mrb[0].mxu0
    %v5474 = vpop.f32.mrb[0].mxu0
    %5475 = vdwg.mxu0
    %5476 = vmatprep.subr.bf16.mxu0 %v5137
    %5477 = vmatpush1.bf16.msra.mxu0 %v5136
    %5478 = vmatprep.subr.bf16.mxu0 %v5169
    %5479 = vmatpush1.bf16.msra.mxu0 %v5168
    %5480 = vmatprep.subr.bf16.mxu0 0
    %5481 = vmatpush1.bf16.msra.mxu0 0
    %5482 = vmatprep.subr.bf16.mxu0 0
    %5483 = vmatpush1.bf16.msra.mxu0 0
    %5484 = vmatprep.subr.bf16.mxu0 0
    %5485 = vmatpush1.bf16.msra.mxu0 0
    %5486 = vmatprep.subr.bf16.mxu0 0
    %5487 = vmatpush1.bf16.msra.mxu0 0
    %5488 = vmatprep.subr.bf16.mxu0 0
    %5489 = vmatpush1.bf16.msra.mxu0 0
    %5490 = vmatprep.subr.bf16.mxu0 0
    %5491 = vmatpush1.bf16.msra.mxu0 0
    %5492 = vmatprep.subr.bf16.mxu0 0
    %5493 = vmatpush1.bf16.msra.mxu0 0
    %5494 = vmatprep.subr.bf16.mxu0 0
    %5495 = vmatpush1.bf16.msra.mxu0 0
    %5496 = vmatprep.subr.bf16.mxu0 0
    %5497 = vmatpush1.bf16.msra.mxu0 0
    %5498 = vmatprep.subr.bf16.mxu0 0
    %5499 = vmatpush1.bf16.msra.mxu0 0
    %5500 = vmatprep.subr.bf16.mxu0 0
    %5501 = vmatpush1.bf16.msra.mxu0 0
    %5502 = vmatprep.subr.bf16.mxu0 0
    %5503 = vmatpush1.bf16.msra.mxu0 0
    %5504 = vmatprep.subr.bf16.mxu0 0
    %5505 = vmatpush1.bf16.msra.mxu0 0
    %5506 = vmatprep.subr.bf16.mxu0 0
    %5507 = vmatpush1.bf16.msra.mxu0 0
    %5508 = vmatprep.mubr.bf16.mxu0 0
    %5509 = vmatmul.mubr.bf16.gmra.mrb[0].mxu0 %v5187
    %v5510 = vpop.f32.mrb[0].mxu0
    %v5511 = vadd.f32 0.0, %v5510
    %v5512 = vpop.f32.mrb[0].mxu0
    %v5513 = vadd.f32 0.0, %v5512
    %v5514 = vpop.f32.mrb[0].mxu0
    %v5515 = vpop.f32.mrb[0].mxu0
    %5516 = vdwg.mxu0
    %5517 = vmatprep.subr.bf16.mxu0 %v5139
    %5518 = vmatpush1.bf16.msra.mxu0 %v5138
    %5519 = vmatprep.subr.bf16.mxu0 %v5171
    %5520 = vmatpush1.bf16.msra.mxu0 %v5170
    %5521 = vmatprep.subr.bf16.mxu0 0
    %5522 = vmatpush1.bf16.msra.mxu0 0
    %5523 = vmatprep.subr.bf16.mxu0 0
    %5524 = vmatpush1.bf16.msra.mxu0 0
    %5525 = vmatprep.subr.bf16.mxu0 0
    %5526 = vmatpush1.bf16.msra.mxu0 0
    %5527 = vmatprep.subr.bf16.mxu0 0
    %5528 = vmatpush1.bf16.msra.mxu0 0
    %5529 = vmatprep.subr.bf16.mxu0 0
    %5530 = vmatpush1.bf16.msra.mxu0 0
    %5531 = vmatprep.subr.bf16.mxu0 0
    %5532 = vmatpush1.bf16.msra.mxu0 0
    %5533 = vmatprep.subr.bf16.mxu0 0
    %5534 = vmatpush1.bf16.msra.mxu0 0
    %5535 = vmatprep.subr.bf16.mxu0 0
    %5536 = vmatpush1.bf16.msra.mxu0 0
    %5537 = vmatprep.subr.bf16.mxu0 0
    %5538 = vmatpush1.bf16.msra.mxu0 0
    %5539 = vmatprep.subr.bf16.mxu0 0
    %5540 = vmatpush1.bf16.msra.mxu0 0
    %5541 = vmatprep.subr.bf16.mxu0 0
    %5542 = vmatpush1.bf16.msra.mxu0 0
    %5543 = vmatprep.subr.bf16.mxu0 0
    %5544 = vmatpush1.bf16.msra.mxu0 0
    %5545 = vmatprep.subr.bf16.mxu0 0
    %5546 = vmatpush1.bf16.msra.mxu0 0
    %5547 = vmatprep.subr.bf16.mxu0 0
    %5548 = vmatpush1.bf16.msra.mxu0 0
    %5549 = vmatprep.mubr.bf16.mxu0 0
    %5550 = vmatmul.mubr.bf16.gmra.mrb[0].mxu0 %v5187
    %v5551 = vpop.f32.mrb[0].mxu0
    %v5552 = vadd.f32 0.0, %v5551
    %v5553 = vpop.f32.mrb[0].mxu0
    %v5554 = vadd.f32 0.0, %v5553
    %v5555 = vpop.f32.mrb[0].mxu0
    %v5556 = vpop.f32.mrb[0].mxu0
    %5557 = vdwg.mxu0
    %5558 = vmatprep.subr.bf16.mxu0 %v5141
    %5559 = vmatpush1.bf16.msra.mxu0 %v5140
    %5560 = vmatprep.subr.bf16.mxu0 %v5173
    %5561 = vmatpush1.bf16.msra.mxu0 %v5172
    %5562 = vmatprep.subr.bf16.mxu0 0
    %5563 = vmatpush1.bf16.msra.mxu0 0
    %5564 = vmatprep.subr.bf16.mxu0 0
    %5565 = vmatpush1.bf16.msra.mxu0 0
    %5566 = vmatprep.subr.bf16.mxu0 0
    %5567 = vmatpush1.bf16.msra.mxu0 0
    %5568 = vmatprep.subr.bf16.mxu0 0
    %5569 = vmatpush1.bf16.msra.mxu0 0
    %5570 = vmatprep.subr.bf16.mxu0 0
    %5571 = vmatpush1.bf16.msra.mxu0 0
    %5572 = vmatprep.subr.bf16.mxu0 0
    %5573 = vmatpush1.bf16.msra.mxu0 0
    %5574 = vmatprep.subr.bf16.mxu0 0
    %5575 = vmatpush1.bf16.msra.mxu0 0
    %5576 = vmatprep.subr.bf16.mxu0 0
    %5577 = vmatpush1.bf16.msra.mxu0 0
    %5578 = vmatprep.subr.bf16.mxu0 0
    %5579 = vmatpush1.bf16.msra.mxu0 0
    %5580 = vmatprep.subr.bf16.mxu0 0
    %5581 = vmatpush1.bf16.msra.mxu0 0
    %5582 = vmatprep.subr.bf16.mxu0 0
    %5583 = vmatpush1.bf16.msra.mxu0 0
    %5584 = vmatprep.subr.bf16.mxu0 0
    %5585 = vmatpush1.bf16.msra.mxu0 0
    %5586 = vmatprep.subr.bf16.mxu0 0
    %5587 = vmatpush1.bf16.msra.mxu0 0
    %5588 = vmatprep.subr.bf16.mxu0 0
    %5589 = vmatpush1.bf16.msra.mxu0 0
    %5590 = vmatprep.mubr.bf16.mxu0 0
    %5591 = vmatmul.mubr.bf16.gmra.mrb[0].mxu0 %v5187
    %v5592 = vpop.f32.mrb[0].mxu0
    %v5593 = vadd.f32 0.0, %v5592
    %v5594 = vpop.f32.mrb[0].mxu0
    %v5595 = vadd.f32 0.0, %v5594
    %v5596 = vpop.f32.mrb[0].mxu0
    %v5597 = vpop.f32.mrb[0].mxu0
    %5598 = vdwg.mxu0
    %5599 = vmatprep.subr.bf16.mxu0 %v5143
    %5600 = vmatpush1.bf16.msra.mxu0 %v5142
    %5601 = vmatprep.subr.bf16.mxu0 %v5175
    %5602 = vmatpush1.bf16.msra.mxu0 %v5174
    %5603 = vmatprep.subr.bf16.mxu0 0
    %5604 = vmatpush1.bf16.msra.mxu0 0
    %5605 = vmatprep.subr.bf16.mxu0 0
    %5606 = vmatpush1.bf16.msra.mxu0 0
    %5607 = vmatprep.subr.bf16.mxu0 0
    %5608 = vmatpush1.bf16.msra.mxu0 0
    %5609 = vmatprep.subr.bf16.mxu0 0
    %5610 = vmatpush1.bf16.msra.mxu0 0
    %5611 = vmatprep.subr.bf16.mxu0 0
    %5612 = vmatpush1.bf16.msra.mxu0 0
    %5613 = vmatprep.subr.bf16.mxu0 0
    %5614 = vmatpush1.bf16.msra.mxu0 0
    %5615 = vmatprep.subr.bf16.mxu0 0
    %5616 = vmatpush1.bf16.msra.mxu0 0
    %5617 = vmatprep.subr.bf16.mxu0 0
    %5618 = vmatpush1.bf16.msra.mxu0 0
    %5619 = vmatprep.subr.bf16.mxu0 0
    %5620 = vmatpush1.bf16.msra.mxu0 0
    %5621 = vmatprep.subr.bf16.mxu0 0
    %5622 = vmatpush1.bf16.msra.mxu0 0
    %5623 = vmatprep.subr.bf16.mxu0 0
    %5624 = vmatpush1.bf16.msra.mxu0 0
    %5625 = vmatprep.subr.bf16.mxu0 0
    %5626 = vmatpush1.bf16.msra.mxu0 0
    %5627 = vmatprep.subr.bf16.mxu0 0
    %5628 = vmatpush1.bf16.msra.mxu0 0
    %5629 = vmatprep.subr.bf16.mxu0 0
    %5630 = vmatpush1.bf16.msra.mxu0 0
    %5631 = vmatprep.mubr.bf16.mxu0 0
    %5632 = vmatmul.mubr.bf16.gmra.mrb[0].mxu0 %v5187
    %v5633 = vpop.f32.mrb[0].mxu0
    %v5634 = vadd.f32 0.0, %v5633
    %v5635 = vpop.f32.mrb[0].mxu0
    %v5636 = vadd.f32 0.0, %v5635
    %v5637 = vpop.f32.mrb[0].mxu0
    %v5638 = vpop.f32.mrb[0].mxu0
    %5639 = vdwg.mxu0
    %5640 = vmatprep.subr.bf16.mxu0 %v5145
    %5641 = vmatpush1.bf16.msra.mxu0 %v5144
    %5642 = vmatprep.subr.bf16.mxu0 %v5177
    %5643 = vmatpush1.bf16.msra.mxu0 %v5176
    %5644 = vmatprep.subr.bf16.mxu0 0
    %5645 = vmatpush1.bf16.msra.mxu0 0
    %5646 = vmatprep.subr.bf16.mxu0 0
    %5647 = vmatpush1.bf16.msra.mxu0 0
    %5648 = vmatprep.subr.bf16.mxu0 0
    %5649 = vmatpush1.bf16.msra.mxu0 0
    %5650 = vmatprep.subr.bf16.mxu0 0
    %5651 = vmatpush1.bf16.msra.mxu0 0
    %5652 = vmatprep.subr.bf16.mxu0 0
    %5653 = vmatpush1.bf16.msra.mxu0 0
    %5654 = vmatprep.subr.bf16.mxu0 0
    %5655 = vmatpush1.bf16.msra.mxu0 0
    %5656 = vmatprep.subr.bf16.mxu0 0
    %5657 = vmatpush1.bf16.msra.mxu0 0
    %5658 = vmatprep.subr.bf16.mxu0 0
    %5659 = vmatpush1.bf16.msra.mxu0 0
    %5660 = vmatprep.subr.bf16.mxu0 0
    %5661 = vmatpush1.bf16.msra.mxu0 0
    %5662 = vmatprep.subr.bf16.mxu0 0
    %5663 = vmatpush1.bf16.msra.mxu0 0
    %5664 = vmatprep.subr.bf16.mxu0 0
    %5665 = vmatpush1.bf16.msra.mxu0 0
    %5666 = vmatprep.subr.bf16.mxu0 0
    %5667 = vmatpush1.bf16.msra.mxu0 0
    %5668 = vmatprep.subr.bf16.mxu0 0
    %5669 = vmatpush1.bf16.msra.mxu0 0
    %5670 = vmatprep.subr.bf16.mxu0 0
    %5671 = vmatpush1.bf16.msra.mxu0 0
    %5672 = vmatprep.mubr.bf16.mxu0 0
    %5673 = vmatmul.mubr.bf16.gmra.mrb[0].mxu0 %v5187
    %v5674 = vpop.f32.mrb[0].mxu0
    %v5675 = vadd.f32 0.0, %v5674
    %v5676 = vpop.f32.mrb[0].mxu0
    %v5677 = vadd.f32 0.0, %v5676
    %v5678 = vpop.f32.mrb[0].mxu0
    %v5679 = vpop.f32.mrb[0].mxu0
    %5680 = vdwg.mxu0
    %5681 = vmatprep.subr.bf16.mxu0 %v5147
    %5682 = vmatpush1.bf16.msra.mxu0 %v5146
    %5683 = vmatprep.subr.bf16.mxu0 %v5179
    %5684 = vmatpush1.bf16.msra.mxu0 %v5178
    %5685 = vmatprep.subr.bf16.mxu0 0
    %5686 = vmatpush1.bf16.msra.mxu0 0
    %5687 = vmatprep.subr.bf16.mxu0 0
    %5688 = vmatpush1.bf16.msra.mxu0 0
    %5689 = vmatprep.subr.bf16.mxu0 0
    %5690 = vmatpush1.bf16.msra.mxu0 0
    %5691 = vmatprep.subr.bf16.mxu0 0
    %5692 = vmatpush1.bf16.msra.mxu0 0
    %5693 = vmatprep.subr.bf16.mxu0 0
    %5694 = vmatpush1.bf16.msra.mxu0 0
    %5695 = vmatprep.subr.bf16.mxu0 0
    %5696 = vmatpush1.bf16.msra.mxu0 0
    %5697 = vmatprep.subr.bf16.mxu0 0
    %5698 = vmatpush1.bf16.msra.mxu0 0
    %5699 = vmatprep.subr.bf16.mxu0 0
    %5700 = vmatpush1.bf16.msra.mxu0 0
    %5701 = vmatprep.subr.bf16.mxu0 0
    %5702 = vmatpush1.bf16.msra.mxu0 0
    %5703 = vmatprep.subr.bf16.mxu0 0
    %5704 = vmatpush1.bf16.msra.mxu0 0
    %5705 = vmatprep.subr.bf16.mxu0 0
    %5706 = vmatpush1.bf16.msra.mxu0 0
    %5707 = vmatprep.subr.bf16.mxu0 0
    %5708 = vmatpush1.bf16.msra.mxu0 0
    %5709 = vmatprep.subr.bf16.mxu0 0
    %5710 = vmatpush1.bf16.msra.mxu0 0
    %5711 = vmatprep.subr.bf16.mxu0 0
    %5712 = vmatpush1.bf16.msra.mxu0 0
    %5713 = vmatprep.mubr.bf16.mxu0 0
    %5714 = vmatmul.mubr.bf16.gmra.mrb[0].mxu0 %v5187
    %v5715 = vpop.f32.mrb[0].mxu0
    %v5716 = vadd.f32 0.0, %v5715
    %v5717 = vpop.f32.mrb[0].mxu0
    %v5718 = vadd.f32 0.0, %v5717
    %v5719 = vpop.f32.mrb[0].mxu0
    %v5720 = vpop.f32.mrb[0].mxu0
    %5721 = vdwg.mxu0
    %5722 = vmatprep.subr.bf16.mxu0 %v5149
    %5723 = vmatpush1.bf16.msra.mxu0 %v5148
    %5724 = vmatprep.subr.bf16.mxu0 %v5181
    %5725 = vmatpush1.bf16.msra.mxu0 %v5180
    %5726 = vmatprep.subr.bf16.mxu0 0
    %5727 = vmatpush1.bf16.msra.mxu0 0
    %5728 = vmatprep.subr.bf16.mxu0 0
    %5729 = vmatpush1.bf16.msra.mxu0 0
    %5730 = vmatprep.subr.bf16.mxu0 0
    %5731 = vmatpush1.bf16.msra.mxu0 0
    %5732 = vmatprep.subr.bf16.mxu0 0
    %5733 = vmatpush1.bf16.msra.mxu0 0
    %5734 = vmatprep.subr.bf16.mxu0 0
    %5735 = vmatpush1.bf16.msra.mxu0 0
    %5736 = vmatprep.subr.bf16.mxu0 0
    %5737 = vmatpush1.bf16.msra.mxu0 0
    %5738 = vmatprep.subr.bf16.mxu0 0
    %5739 = vmatpush1.bf16.msra.mxu0 0
    %5740 = vmatprep.subr.bf16.mxu0 0
    %5741 = vmatpush1.bf16.msra.mxu0 0
    %5742 = vmatprep.subr.bf16.mxu0 0
    %5743 = vmatpush1.bf16.msra.mxu0 0
    %5744 = vmatprep.subr.bf16.mxu0 0
    %5745 = vmatpush1.bf16.msra.mxu0 0
    %5746 = vmatprep.subr.bf16.mxu0 0
    %5747 = vmatpush1.bf16.msra.mxu0 0
    %5748 = vmatprep.subr.bf16.mxu0 0
    %5749 = vmatpush1.bf16.msra.mxu0 0
    %5750 = vmatprep.subr.bf16.mxu0 0
    %5751 = vmatpush1.bf16.msra.mxu0 0
    %5752 = vmatprep.subr.bf16.mxu0 0
    %5753 = vmatpush1.bf16.msra.mxu0 0
    %5754 = vmatprep.mubr.bf16.mxu0 0
    %5755 = vmatmul.mubr.bf16.gmra.mrb[0].mxu0 %v5187
    %v5756 = vpop.f32.mrb[0].mxu0
    %v5757 = vadd.f32 0.0, %v5756
    %v5758 = vpop.f32.mrb[0].mxu0
    %v5759 = vadd.f32 0.0, %v5758
    %v5760 = vpop.f32.mrb[0].mxu0
    %v5761 = vpop.f32.mrb[0].mxu0
    %5762 = vdwg.mxu0
    %5763 = vmatprep.subr.bf16.mxu0 %v5151
    %5764 = vmatpush1.bf16.msra.mxu0 %v5150
    %5765 = vmatprep.subr.bf16.mxu0 %v5183
    %5766 = vmatpush1.bf16.msra.mxu0 %v5182
    %5767 = vmatprep.subr.bf16.mxu0 0
    %5768 = vmatpush1.bf16.msra.mxu0 0
    %5769 = vmatprep.subr.bf16.mxu0 0
    %5770 = vmatpush1.bf16.msra.mxu0 0
    %5771 = vmatprep.subr.bf16.mxu0 0
    %5772 = vmatpush1.bf16.msra.mxu0 0
    %5773 = vmatprep.subr.bf16.mxu0 0
    %5774 = vmatpush1.bf16.msra.mxu0 0
    %5775 = vmatprep.subr.bf16.mxu0 0
    %5776 = vmatpush1.bf16.msra.mxu0 0
    %5777 = vmatprep.subr.bf16.mxu0 0
    %5778 = vmatpush1.bf16.msra.mxu0 0
    %5779 = vmatprep.subr.bf16.mxu0 0
    %5780 = vmatpush1.bf16.msra.mxu0 0
    %5781 = vmatprep.subr.bf16.mxu0 0
    %5782 = vmatpush1.bf16.msra.mxu0 0
    %5783 = vmatprep.subr.bf16.mxu0 0
    %5784 = vmatpush1.bf16.msra.mxu0 0
    %5785 = vmatprep.subr.bf16.mxu0 0
    %5786 = vmatpush1.bf16.msra.mxu0 0
    %5787 = vmatprep.subr.bf16.mxu0 0
    %5788 = vmatpush1.bf16.msra.mxu0 0
    %5789 = vmatprep.subr.bf16.mxu0 0
    %5790 = vmatpush1.bf16.msra.mxu0 0
    %5791 = vmatprep.subr.bf16.mxu0 0
    %5792 = vmatpush1.bf16.msra.mxu0 0
    %5793 = vmatprep.subr.bf16.mxu0 0
    %5794 = vmatpush1.bf16.msra.mxu0 0
    %5795 = vmatprep.mubr.bf16.mxu0 0
    %5796 = vmatmul.mubr.bf16.gmra.mrb[0].mxu0 %v5187
    %v5797 = vpop.f32.mrb[0].mxu0
    %v5798 = vadd.f32 0.0, %v5797
    %v5799 = vpop.f32.mrb[0].mxu0
    %v5800 = vadd.f32 0.0, %v5799
    %v5801 = vpop.f32.mrb[0].mxu0
    %v5802 = vpop.f32.mrb[0].mxu0
    %5803 = vdwg.mxu0
    %5804 = vmatprep.subr.bf16.mxu0 %v5153
    %5805 = vmatpush1.bf16.msra.mxu0 %v5152
    %5806 = vmatprep.subr.bf16.mxu0 %v5185
    %5807 = vmatpush1.bf16.msra.mxu0 %v5184
    %5808 = vmatprep.subr.bf16.mxu0 0
    %5809 = vmatpush1.bf16.msra.mxu0 0
    %5810 = vmatprep.subr.bf16.mxu0 0
    %5811 = vmatpush1.bf16.msra.mxu0 0
    %5812 = vmatprep.subr.bf16.mxu0 0
    %5813 = vmatpush1.bf16.msra.mxu0 0
    %5814 = vmatprep.subr.bf16.mxu0 0
    %5815 = vmatpush1.bf16.msra.mxu0 0
    %5816 = vmatprep.subr.bf16.mxu0 0
    %5817 = vmatpush1.bf16.msra.mxu0 0
    %5818 = vmatprep.subr.bf16.mxu0 0
    %5819 = vmatpush1.bf16.msra.mxu0 0
    %5820 = vmatprep.subr.bf16.mxu0 0
    %5821 = vmatpush1.bf16.msra.mxu0 0
    %5822 = vmatprep.subr.bf16.mxu0 0
    %5823 = vmatpush1.bf16.msra.mxu0 0
    %5824 = vmatprep.subr.bf16.mxu0 0
    %5825 = vmatpush1.bf16.msra.mxu0 0
    %5826 = vmatprep.subr.bf16.mxu0 0
    %5827 = vmatpush1.bf16.msra.mxu0 0
    %5828 = vmatprep.subr.bf16.mxu0 0
    %5829 = vmatpush1.bf16.msra.mxu0 0
    %5830 = vmatprep.subr.bf16.mxu0 0
    %5831 = vmatpush1.bf16.msra.mxu0 0
    %5832 = vmatprep.subr.bf16.mxu0 0
    %5833 = vmatpush1.bf16.msra.mxu0 0
    %5834 = vmatprep.subr.bf16.mxu0 0
    %5835 = vmatpush1.bf16.msra.mxu0 0
    %5836 = vmatprep.mubr.bf16.mxu0 0
    %5837 = vmatmul.mubr.bf16.gmra.mrb[0].mxu0 %v5187
    %v5838 = vpop.f32.mrb[0].mxu0
    %v5839 = vadd.f32 0.0, %v5838
    %v5840 = vpop.f32.mrb[0].mxu0
    %v5841 = vadd.f32 0.0, %v5840
    %v5842 = vpop.f32.mrb[0].mxu0
    %v5843 = vpop.f32.mrb[0].mxu0
    %5844 = vdwg.mxu0
    %5845 = vset.pattern.permute.xlu0 8
    %5846 = vperm.xlu0 %5845, %v66
    %v5847 = vpop.permute.xlu0 %5846
    %v5849 = vadd.f32 %v5224, %v5847
    %v5850 = vadd.f32 %v5226, %v5847
    %v5851 = vadd.f32 %v5265, %v5847
    %v5852 = vadd.f32 %v5267, %v5847
    %v5853 = vadd.f32 %v5306, %v5847
    %v5854 = vadd.f32 %v5308, %v5847
    %v5855 = vadd.f32 %v5347, %v5847
    %v5856 = vadd.f32 %v5349, %v5847
    %v5857 = vadd.f32 %v5388, %v5847
    %v5858 = vadd.f32 %v5390, %v5847
    %v5859 = vadd.f32 %v5429, %v5847
    %v5860 = vadd.f32 %v5431, %v5847
    %v5861 = vadd.f32 %v5470, %v5847
    %v5862 = vadd.f32 %v5472, %v5847
    %v5863 = vadd.f32 %v5511, %v5847
    %v5864 = vadd.f32 %v5513, %v5847
    %v5865 = vadd.f32 %v5552, %v5847
    %v5866 = vadd.f32 %v5554, %v5847
    %v5867 = vadd.f32 %v5593, %v5847
    %v5868 = vadd.f32 %v5595, %v5847
    %v5869 = vadd.f32 %v5634, %v5847
    %v5870 = vadd.f32 %v5636, %v5847
    %v5871 = vadd.f32 %v5675, %v5847
    %v5872 = vadd.f32 %v5677, %v5847
    %v5873 = vadd.f32 %v5716, %v5847
    %v5874 = vadd.f32 %v5718, %v5847
    %v5875 = vadd.f32 %v5757, %v5847
    %v5876 = vadd.f32 %v5759, %v5847
    %v5877 = vadd.f32 %v5798, %v5847
    %v5878 = vadd.f32 %v5800, %v5847
    %v5879 = vadd.f32 %v5839, %v5847
    %v5880 = vadd.f32 %v5841, %v5847
    %v5913 = vcombine.low %v5849, %v5850
    %v5914 = vcombine.low %v5851, %v5852
    %v5915 = vcombine.low %v5853, %v5854
    %v5916 = vcombine.low %v5855, %v5856
    %v5917 = vcombine.low %v5857, %v5858
    %v5918 = vcombine.low %v5859, %v5860
    %v5919 = vcombine.low %v5861, %v5862
    %v5920 = vcombine.low %v5863, %v5864
    %v5921 = vcombine.low %v5865, %v5866
    %v5922 = vcombine.low %v5867, %v5868
    %v5923 = vcombine.low %v5869, %v5870
    %v5924 = vcombine.low %v5871, %v5872
    %v5925 = vcombine.low %v5873, %v5874
    %v5926 = vcombine.low %v5875, %v5876
    %v5927 = vcombine.low %v5877, %v5878
    %v5928 = vcombine.low %v5879, %v5880
    %5945 = vst [vmem:[#allocation8] sm:$0x77] %v5913
    %5946 = vst [vmem:[#allocation8 + $0x8] sm:$0x77] %v5914
    %5947 = vst [vmem:[#allocation8 + $0x10] sm:$0x77] %v5915
    %5948 = vst [vmem:[#allocation8 + $0x18] sm:$0x77] %v5916
    %5949 = vst [vmem:[#allocation8 + $0x20] sm:$0x77] %v5917
    %5950 = vst [vmem:[#allocation8 + $0x28] sm:$0x77] %v5918
    %5951 = vst [vmem:[#allocation8 + $0x30] sm:$0x77] %v5919
    %5952 = vst [vmem:[#allocation8 + $0x38] sm:$0x77] %v5920
    %5953 = vst [vmem:[#allocation8 + $0x40] sm:$0x77] %v5921
    %5954 = vst [vmem:[#allocation8 + $0x48] sm:$0x77] %v5922
    %5955 = vst [vmem:[#allocation8 + $0x50] sm:$0x77] %v5923
    %5956 = vst [vmem:[#allocation8 + $0x58] sm:$0x77] %v5924
    %5957 = vst [vmem:[#allocation8 + $0x60] sm:$0x77] %v5925
    %5958 = vst [vmem:[#allocation8 + $0x68] sm:$0x77] %v5926
    %5959 = vst [vmem:[#allocation8 + $0x70] sm:$0x77] %v5927
    %5960 = vst [vmem:[#allocation8 + $0x78] sm:$0x77] %v5928
    // Predicated region
    $region30: #{tpu_custom_call.1} parent=1 // pred_check
      _
    $region31: #{tpu_custom_call.1} parent=1 // pred_check_branch
      %5962 = sbr.rel (0) target = $region33
    $region32: #{tpu_custom_call.1} parent=1 // pred_region
      %s5964 = ssub.s32 2048, 2048
      %5965 = vsyncadd [#allocation4], %s5964
      %s5967 = sshll.u32 [#allocation8], 4
      %s5968 = int_to_ptr.vmem [resolvable:$true] %s5967
      %5970 = dma.vmem_to_hbm [thread:$0]  %s5968, 2048, %s4, [#allocation4]
    $region33: #{tpu_custom_call.1} parent=1 // pred_fallthru
      _
    // Predicated region
    $region34: #{tpu_custom_call.1} parent=1 // pred_check
      _
    $region35: #{tpu_custom_call.1} parent=1 // pred_check_branch
      %5972 = sbr.rel (0) target = $region37
    $region36: #{tpu_custom_call.1} parent=1 // pred_region
      %5973 = dma.done [#allocation4], 2048
    $region37: #{tpu_custom_call.1} parent=1 // pred_fallthru
      _
    %5974 = vsyncpa [#allocation3], 1
    %5975 = vsyncpa [#allocation6], 1
    %5976 = vsyncpa [#allocation4], 1

</llo_original>
